<compile_context>
chip_gen: v7x
topology: tpu7x:2x2x1
jax: 0.10.0
libtpu: 0.0.40
codegen_flags: <defaults>
</compile_context>

<pallas_src>
import functools

import jax
import jax.numpy as jnp
from jax.experimental import pallas as pl
from jax.experimental.pallas import tpu as pltpu

BN_EPS = 1e-5


# ------------------------------- fused kernel --------------------------------
def _bn_relu(z, gamma, beta):
    # Training-mode BatchNorm (biased variance over all N*H*W rows), f32 epilogue.
    mean = jnp.mean(z, axis=0, keepdims=True)
    var = jnp.mean(jnp.square(z - mean), axis=0, keepdims=True)
    y = (z - mean) * jax.lax.rsqrt(var + BN_EPS) * gamma + beta
    return jnp.maximum(y, 0.0)


def _simkd_kernel(x_ref, w1_ref, g1_ref, b1_ref,
                  w2_ref, g2_ref, b2_ref,
                  w3_ref, g3_ref, b3_ref,
                  wc_ref, bc_ref,
                  feat_ref, pred_ref,
                  pad_ref, *, N, H, W):
    # x_ref    : (N*H*W, s_n)  bf16, channel-minor rows
    # w1_ref   : (s_n, mid)    bf16      g/b*_ref : (1, C) f32
    # w2_ref   : (3, 3, mid, mid) bf16
    # w3_ref   : (mid, t_n)    bf16
    # wc_ref   : (t_n, n_cls)  bf16      bc_ref   : (1, n_cls) f32
    # feat_ref : (N*H*W, t_n)  f32       pred_ref : (N, n_cls) f32
    # pad_ref  : (N, H+2, W+2, mid) bf16 VMEM scratch for the padded 3x3 conv input
    M = N * H * W
    mid = w1_ref.shape[1]

    # ---- conv1x1 (s_n -> mid) + BN + ReLU ------------------------------------
    z1 = jnp.dot(x_ref[...], w1_ref[...], preferred_element_type=jnp.float32)
    y1 = _bn_relu(z1, g1_ref[...], b1_ref[...])                       # (M, mid) f32

    # ---- conv3x3, padding=1 (mid -> mid): 9 whole-image tap matmuls ----------
    pad_ref[...] = jnp.zeros(pad_ref.shape, pad_ref.dtype)
    pad_ref[:, 1:H + 1, 1:W + 1, :] = (
        y1.reshape(N, H, W, mid).astype(pad_ref.dtype))
    acc = jnp.zeros((M, mid), jnp.float32)
    for kh in range(3):
        for kw in range(3):
            win = pad_ref[:, kh:kh + H, kw:kw + W, :].reshape(M, mid)
            acc = acc + jnp.dot(win, w2_ref[kh, kw],
                                preferred_element_type=jnp.float32)
    y2 = _bn_relu(acc, g2_ref[...], b2_ref[...])                      # (M, mid) f32

    # ---- conv1x1 (mid -> t_n) + BN + ReLU ------------------------------------
    z3 = jnp.dot(y2.astype(w3_ref.dtype), w3_ref[...],
                 preferred_element_type=jnp.float32)
    y3 = _bn_relu(z3, g3_ref[...], b3_ref[...])                       # (M, t_n) f32
    feat_ref[...] = y3                                                # lane-dense store

    # ---- global average pool + classifier (cls_t) ----------------------------
    hw = H * W
    rows = [jnp.mean(y3[n * hw:(n + 1) * hw, :], axis=0, keepdims=True)
            for n in range(N)]
    pooled = jnp.concatenate(rows, axis=0)                            # (N, t_n) f32
    pred = jnp.dot(pooled.astype(wc_ref.dtype), wc_ref[...],
                   preferred_element_type=jnp.float32)
    pred_ref[...] = pred + bc_ref[...]


def _transfer_and_classify(x_flat, p, *, N, H, W):
    # x_flat: (N*H*W, s_n) bf16 channel-minor rows.
    M, s_n = x_flat.shape
    mid = p["conv1"].shape[1]
    t_n = p["conv3"].shape[1]
    n_cls = p["cls_w"].shape[1]

    def full(*shape):
        return pl.BlockSpec(shape, lambda i, _n=len(shape): (0,) * _n)

    kernel = functools.partial(_simkd_kernel, N=N, H=H, W=W)
    feat_flat, pred = pl.pallas_call(
        kernel,
        out_shape=(jax.ShapeDtypeStruct((M, t_n), jnp.float32),
                   jax.ShapeDtypeStruct((N, n_cls), jnp.float32)),
        grid_spec=pltpu.PrefetchScalarGridSpec(
            num_scalar_prefetch=0,
            grid=(1,),
            in_specs=[
                full(M, s_n),
                full(s_n, mid), full(1, mid), full(1, mid),
                full(3, 3, mid, mid), full(1, mid), full(1, mid),
                full(mid, t_n), full(1, t_n), full(1, t_n),
                full(t_n, n_cls), full(1, n_cls),
            ],
            out_specs=[full(M, t_n), full(N, n_cls)],
            scratch_shapes=[pltpu.VMEM((N, H + 2, W + 2, mid), jnp.bfloat16)],
        ),
        compiler_params=pltpu.CompilerParams(
            dimension_semantics=("arbitrary",),
        ),
    )(x_flat,
      p["conv1"], p["bn1_g"], p["bn1_b"],
      p["conv2"], p["bn2_g"], p["bn2_b"],
      p["conv3"], p["bn3_g"], p["bn3_b"],
      p["cls_w"], p["cls_b"])
    return feat_flat, pred


# ------------------------------ wrapper / forward -----------------------------
def _adaptive_avg_pool_nchw(x, out_hw):
    # Pure reshape+mean layout glue (divisible bins, as used by SimKD in practice).
    # TODO(synk): uneven-bin adaptive_avg_pool2d (non-divisible H/W) is not implemented.
    N, C, H, W = x.shape
    oh, ow = out_hw
    if oh == H and ow == W:
        return x
    assert H % oh == 0 and W % ow == 0
    kh, kw = H // oh, W // ow
    return x.reshape(N, C, oh, kh, ow, kw).mean(axis=(3, 5))


@jax.jit
def simkd_forward(feat_s, feat_t, params):
    # feat_s: (N, s_n, sH, sW), feat_t: (N, t_n, tH, tW)  -- NCHW, like torch.
    s_H, t_H = feat_s.shape[2], feat_t.shape[2]
    if s_H > t_H:
        source = _adaptive_avg_pool_nchw(feat_s.astype(jnp.float32), (t_H, t_H))
        target = feat_t
    else:
        source = feat_s.astype(jnp.float32)
        target = _adaptive_avg_pool_nchw(feat_t.astype(jnp.float32), (s_H, s_H))
    trans_feat_t = target

    N, _, H, W = source.shape
    # NCHW -> channel-minor rows (N*H*W, s_n); bf16 feed for the MXU.
    x_flat = jnp.transpose(source, (0, 2, 3, 1)).reshape(N * H * W, -1)
    x_flat = x_flat.astype(jnp.bfloat16)

    kp = dict(params)
    for k in ("conv1", "conv2", "conv3", "cls_w"):
        kp[k] = params[k].astype(jnp.bfloat16)

    feat_flat, pred_feat_s = _transfer_and_classify(x_flat, kp, N=N, H=H, W=W)
    trans_feat_s = jnp.transpose(feat_flat.reshape(N, H, W, -1), (0, 3, 1, 2))
    return trans_feat_s, trans_feat_t, pred_feat_s


# --------------------------------- parameters ---------------------------------
def init_params(key, *, s_n, t_n, factor=2, num_classes=100):
    # Mimic torch defaults: conv kaiming_uniform(a=sqrt(5)) == U(+-1/sqrt(fan_in)),
    # BN gamma=1/beta=0, Linear U(+-1/sqrt(in_features)).
    mid = t_n // factor

    def conv_u(k, kh, kw, cin, cout):
        bound = 1.0 / (cin * kh * kw) ** 0.5
        # stored (kh, kw, cin, cout) == torch (cout, cin, kh, kw).transpose(2, 3, 1, 0)
        return jax.random.uniform(k, (kh, kw, cin, cout), jnp.float32, -bound, bound)

    ks = jax.random.split(key, 5)
    w1 = conv_u(ks[0], 1, 1, s_n, mid).reshape(s_n, mid)
    w2 = conv_u(ks[1], 3, 3, mid, mid)
    w3 = conv_u(ks[2], 1, 1, mid, t_n).reshape(mid, t_n)
    lb = 1.0 / t_n ** 0.5
    wc = jax.random.uniform(ks[3], (t_n, num_classes), jnp.float32, -lb, lb)
    bc = jax.random.uniform(ks[4], (num_classes,), jnp.float32, -lb, lb)
    return {
        "conv1": w1,
        "bn1_g": jnp.ones((1, mid), jnp.float32), "bn1_b": jnp.zeros((1, mid), jnp.float32),
        "conv2": w2,
        "bn2_g": jnp.ones((1, mid), jnp.float32), "bn2_b": jnp.zeros((1, mid), jnp.float32),
        "conv3": w3,
        "bn3_g": jnp.ones((1, t_n), jnp.float32), "bn3_b": jnp.zeros((1, t_n), jnp.float32),
        "cls_w": wc, "cls_b": bc.reshape(1, num_classes),
    }


if __name__ == "__main__":
    key = jax.random.PRNGKey(0)
    k_s, k_t, k_p = jax.random.split(key, 3)
    N, s_n, t_n, factor, num_classes = 2, 64, 128, 2, 100
    feat_s = jax.random.normal(k_s, (N, s_n, 16, 16), dtype=jnp.float32)   # student features
    feat_t = jax.random.normal(k_t, (N, t_n, 8, 8), dtype=jnp.float32)     # teacher features
    params = init_params(k_p, s_n=s_n, t_n=t_n, factor=factor, num_classes=num_classes)

    trans_s, trans_t, pred = simkd_forward(feat_s, feat_t, params)
    for a in (trans_s, trans_t, pred):
        jax.block_until_ready(a)

    assert trans_s.shape == (N, t_n, 8, 8), trans_s.shape
    assert trans_t.shape == (N, t_n, 8, 8), trans_t.shape
    assert pred.shape == (N, num_classes), pred.shape
    assert bool(jnp.all(jnp.isfinite(trans_s)))
    assert bool(jnp.all(jnp.isfinite(trans_t)))
    assert bool(jnp.all(jnp.isfinite(pred)))
    print("KERNEL_OK")
</pallas_src>

<mosaic_0001>
module attributes {stable_mosaic.version = 11 : i64} {
  func.func @_simkd_kernel(%arg0: i32, %arg1: memref<128x64xbf16, #tpu.memory_space<vmem>>, %arg2: memref<64x64xbf16, #tpu.memory_space<vmem>>, %arg3: memref<1x64xf32, #tpu.memory_space<vmem>>, %arg4: memref<1x64xf32, #tpu.memory_space<vmem>>, %arg5: memref<3x3x64x64xbf16, #tpu.memory_space<vmem>>, %arg6: memref<1x64xf32, #tpu.memory_space<vmem>>, %arg7: memref<1x64xf32, #tpu.memory_space<vmem>>, %arg8: memref<64x128xbf16, #tpu.memory_space<vmem>>, %arg9: memref<1x128xf32, #tpu.memory_space<vmem>>, %arg10: memref<1x128xf32, #tpu.memory_space<vmem>>, %arg11: memref<128x100xbf16, #tpu.memory_space<vmem>>, %arg12: memref<1x100xf32, #tpu.memory_space<vmem>>, %arg13: memref<128x128xf32, #tpu.memory_space<vmem>>, %arg14: memref<2x100xf32, #tpu.memory_space<vmem>>, %arg15: memref<2x10x10x64xbf16, #tpu.memory_space<vmem>>) attributes {dimension_semantics = [#tpu.dimension_semantics<arbitrary>], iteration_bounds = array<i64: 1>, scalar_prefetch = 0 : i64, scratch_operands = 1 : i64, tpu.core_type = #tpu.core_type<tc>, window_params = [{pipeline_mode = #tpu.pipeline_mode<synchronous>, transform_indices = @transform_0, window_bounds = array<i64: 128, 64>}, {pipeline_mode = #tpu.pipeline_mode<synchronous>, transform_indices = @transform_1, window_bounds = array<i64: 64, 64>}, {pipeline_mode = #tpu.pipeline_mode<synchronous>, transform_indices = @transform_2, window_bounds = array<i64: 1, 64>}, {pipeline_mode = #tpu.pipeline_mode<synchronous>, transform_indices = @transform_3, window_bounds = array<i64: 1, 64>}, {pipeline_mode = #tpu.pipeline_mode<synchronous>, transform_indices = @transform_4, window_bounds = array<i64: 3, 3, 64, 64>}, {pipeline_mode = #tpu.pipeline_mode<synchronous>, transform_indices = @transform_5, window_bounds = array<i64: 1, 64>}, {pipeline_mode = #tpu.pipeline_mode<synchronous>, transform_indices = @transform_6, window_bounds = array<i64: 1, 64>}, {pipeline_mode = #tpu.pipeline_mode<synchronous>, transform_indices = @transform_7, window_bounds = array<i64: 64, 128>}, {pipeline_mode = #tpu.pipeline_mode<synchronous>, transform_indices = @transform_8, window_bounds = array<i64: 1, 128>}, {pipeline_mode = #tpu.pipeline_mode<synchronous>, transform_indices = @transform_9, window_bounds = array<i64: 1, 128>}, {pipeline_mode = #tpu.pipeline_mode<synchronous>, transform_indices = @transform_10, window_bounds = array<i64: 128, 100>}, {pipeline_mode = #tpu.pipeline_mode<synchronous>, transform_indices = @transform_11, window_bounds = array<i64: 1, 100>}, {pipeline_mode = #tpu.pipeline_mode<synchronous>, transform_indices = @transform_12, window_bounds = array<i64: 128, 128>}, {pipeline_mode = #tpu.pipeline_mode<synchronous>, transform_indices = @transform_13, window_bounds = array<i64: 2, 100>}]} {
    %c0 = arith.constant 0 : index
    %c0_0 = arith.constant 0 : index
    %0 = vector.load %arg1[%c0, %c0_0] : memref<128x64xbf16, #tpu.memory_space<vmem>>, vector<128x64xbf16>
    %c0_1 = arith.constant 0 : index
    %c0_2 = arith.constant 0 : index
    %1 = vector.load %arg2[%c0_1, %c0_2] : memref<64x64xbf16, #tpu.memory_space<vmem>>, vector<64x64xbf16>
    %cst = arith.constant dense<0.000000e+00> : vector<128x64xf32>
    %2 = tpu.matmul %0, %1, %cst {dimension_numbers = #tpu.dot_dimension_numbers<[1], [0], [0], [1], [0, 0, 1, 1], [], []>} : vector<128x64xbf16>, vector<64x64xbf16>, vector<128x64xf32> -> vector<128x64xf32>
    %c0_3 = arith.constant 0 : index
    %c0_4 = arith.constant 0 : index
    %3 = vector.load %arg3[%c0_3, %c0_4] : memref<1x64xf32, #tpu.memory_space<vmem>>, vector<1x64xf32>
    %c0_5 = arith.constant 0 : index
    %c0_6 = arith.constant 0 : index
    %4 = vector.load %arg4[%c0_5, %c0_6] : memref<1x64xf32, #tpu.memory_space<vmem>>, vector<1x64xf32>
    %cst_7 = arith.constant dense<0.000000e+00> : vector<64xf32>
    %5 = vector.multi_reduction <add>, %2, %cst_7 [0] : vector<128x64xf32> to vector<64xf32>
    %6 = vector.shape_cast %5 : vector<64xf32> to vector<1x64xf32>
    %cst_8 = arith.constant 1.280000e+02 : f32
    %7 = vector.broadcast %cst_8 : f32 to vector<1x64xf32>
    %8 = arith.divf %6, %7 : vector<1x64xf32>
    %9 = vector.broadcast %8 : vector<1x64xf32> to vector<128x64xf32>
    %10 = arith.subf %2, %9 : vector<128x64xf32>
    %11 = arith.mulf %10, %10 : vector<128x64xf32>
    %cst_9 = arith.constant dense<0.000000e+00> : vector<64xf32>
    %12 = vector.multi_reduction <add>, %11, %cst_9 [0] : vector<128x64xf32> to vector<64xf32>
    %13 = vector.shape_cast %12 : vector<64xf32> to vector<1x64xf32>
    %cst_10 = arith.constant 1.280000e+02 : f32
    %14 = vector.broadcast %cst_10 : f32 to vector<1x64xf32>
    %15 = arith.divf %13, %14 : vector<1x64xf32>
    %16 = vector.broadcast %8 : vector<1x64xf32> to vector<128x64xf32>
    %17 = arith.subf %2, %16 : vector<128x64xf32>
    %cst_11 = arith.constant 9.99999974E-6 : f32
    %18 = vector.broadcast %cst_11 : f32 to vector<1x64xf32>
    %19 = arith.addf %15, %18 : vector<1x64xf32>
    %20 = math.rsqrt %19 : vector<1x64xf32>
    %21 = vector.broadcast %20 : vector<1x64xf32> to vector<128x64xf32>
    %22 = arith.mulf %17, %21 : vector<128x64xf32>
    %23 = vector.broadcast %3 : vector<1x64xf32> to vector<128x64xf32>
    %24 = arith.mulf %22, %23 : vector<128x64xf32>
    %25 = vector.broadcast %4 : vector<1x64xf32> to vector<128x64xf32>
    %26 = arith.addf %24, %25 : vector<128x64xf32>
    %cst_12 = arith.constant 0.000000e+00 : f32
    %27 = vector.broadcast %cst_12 : f32 to vector<128x64xf32>
    %28 = arith.maximumf %26, %27 : vector<128x64xf32>
    %cst_13 = arith.constant 0.000000e+00 : bf16
    %29 = vector.broadcast %cst_13 : bf16 to vector<2x10x10x64xbf16>
    %c0_14 = arith.constant 0 : index
    %c0_15 = arith.constant 0 : index
    %c0_16 = arith.constant 0 : index
    %c0_17 = arith.constant 0 : index
    %30 = vector.load %arg15[%c0_14, %c0_15, %c0_16, %c0_17] : memref<2x10x10x64xbf16, #tpu.memory_space<vmem>>, vector<2x10x10x64xbf16>
    tpu.vector_store %arg15[%c0_14, %c0_15, %c0_16, %c0_17], %29 {strides = array<i32>} : memref<2x10x10x64xbf16, #tpu.memory_space<vmem>>, vector<2x10x10x64xbf16>,
    %31 = vector.shape_cast %28 : vector<128x64xf32> to vector<2x8x8x64xf32>
    %32 = arith.truncf %31 : vector<2x8x8x64xf32> to vector<2x8x8x64xbf16>
    %c0_18 = arith.constant 0 : index
    %c1 = arith.constant 1 : index
    %c1_19 = arith.constant 1 : index
    %c0_20 = arith.constant 0 : index
    %33 = vector.load %arg15[%c0_18, %c1, %c1_19, %c0_20] : memref<2x10x10x64xbf16, #tpu.memory_space<vmem>>, vector<2x8x8x64xbf16>
    tpu.vector_store %arg15[%c0_18, %c1, %c1_19, %c0_20], %32 {strides = array<i32>} : memref<2x10x10x64xbf16, #tpu.memory_space<vmem>>, vector<2x8x8x64xbf16>,
    %cst_21 = arith.constant 0.000000e+00 : f32
    %34 = vector.broadcast %cst_21 : f32 to vector<128x64xf32>
    %c0_22 = arith.constant 0 : index
    %c0_23 = arith.constant 0 : index
    %c0_24 = arith.constant 0 : index
    %c0_25 = arith.constant 0 : index
    %35 = vector.load %arg15[%c0_22, %c0_23, %c0_24, %c0_25] : memref<2x10x10x64xbf16, #tpu.memory_space<vmem>>, vector<2x8x8x64xbf16>
    %36 = vector.shape_cast %35 : vector<2x8x8x64xbf16> to vector<128x64xbf16>
    %c0_26 = arith.constant 0 : index
    %c0_27 = arith.constant 0 : index
    %c0_28 = arith.constant 0 : index
    %c0_29 = arith.constant 0 : index
    %37 = vector.load %arg5[%c0_26, %c0_27, %c0_28, %c0_29] : memref<3x3x64x64xbf16, #tpu.memory_space<vmem>>, vector<1x1x64x64xbf16>
    %38 = vector.shape_cast %37 : vector<1x1x64x64xbf16> to vector<64x64xbf16>
    %cst_30 = arith.constant dense<0.000000e+00> : vector<128x64xf32>
    %39 = tpu.matmul %36, %38, %cst_30 {dimension_numbers = #tpu.dot_dimension_numbers<[1], [0], [0], [1], [0, 0, 1, 1], [], []>} : vector<128x64xbf16>, vector<64x64xbf16>, vector<128x64xf32> -> vector<128x64xf32>
    %40 = arith.addf %34, %39 : vector<128x64xf32>
    %c0_31 = arith.constant 0 : index
    %c0_32 = arith.constant 0 : index
    %c1_33 = arith.constant 1 : index
    %c0_34 = arith.constant 0 : index
    %41 = vector.load %arg15[%c0_31, %c0_32, %c1_33, %c0_34] : memref<2x10x10x64xbf16, #tpu.memory_space<vmem>>, vector<2x8x8x64xbf16>
    %42 = vector.shape_cast %41 : vector<2x8x8x64xbf16> to vector<128x64xbf16>
    %c0_35 = arith.constant 0 : index
    %c1_36 = arith.constant 1 : index
    %c0_37 = arith.constant 0 : index
    %c0_38 = arith.constant 0 : index
    %43 = vector.load %arg5[%c0_35, %c1_36, %c0_37, %c0_38] : memref<3x3x64x64xbf16, #tpu.memory_space<vmem>>, vector<1x1x64x64xbf16>
    %44 = vector.shape_cast %43 : vector<1x1x64x64xbf16> to vector<64x64xbf16>
    %cst_39 = arith.constant dense<0.000000e+00> : vector<128x64xf32>
    %45 = tpu.matmul %42, %44, %cst_39 {dimension_numbers = #tpu.dot_dimension_numbers<[1], [0], [0], [1], [0, 0, 1, 1], [], []>} : vector<128x64xbf16>, vector<64x64xbf16>, vector<128x64xf32> -> vector<128x64xf32>
    %46 = arith.addf %40, %45 : vector<128x64xf32>
    %c0_40 = arith.constant 0 : index
    %c0_41 = arith.constant 0 : index
    %c2 = arith.constant 2 : index
    %c0_42 = arith.constant 0 : index
    %47 = vector.load %arg15[%c0_40, %c0_41, %c2, %c0_42] : memref<2x10x10x64xbf16, #tpu.memory_space<vmem>>, vector<2x8x8x64xbf16>
    %48 = vector.shape_cast %47 : vector<2x8x8x64xbf16> to vector<128x64xbf16>
    %c0_43 = arith.constant 0 : index
    %c2_44 = arith.constant 2 : index
    %c0_45 = arith.constant 0 : index
    %c0_46 = arith.constant 0 : index
    %49 = vector.load %arg5[%c0_43, %c2_44, %c0_45, %c0_46] : memref<3x3x64x64xbf16, #tpu.memory_space<vmem>>, vector<1x1x64x64xbf16>
    %50 = vector.shape_cast %49 : vector<1x1x64x64xbf16> to vector<64x64xbf16>
    %cst_47 = arith.constant dense<0.000000e+00> : vector<128x64xf32>
    %51 = tpu.matmul %48, %50, %cst_47 {dimension_numbers = #tpu.dot_dimension_numbers<[1], [0], [0], [1], [0, 0, 1, 1], [], []>} : vector<128x64xbf16>, vector<64x64xbf16>, vector<128x64xf32> -> vector<128x64xf32>
    %52 = arith.addf %46, %51 : vector<128x64xf32>
    %c0_48 = arith.constant 0 : index
    %c1_49 = arith.constant 1 : index
    %c0_50 = arith.constant 0 : index
    %c0_51 = arith.constant 0 : index
    %53 = vector.load %arg15[%c0_48, %c1_49, %c0_50, %c0_51] : memref<2x10x10x64xbf16, #tpu.memory_space<vmem>>, vector<2x8x8x64xbf16>
    %54 = vector.shape_cast %53 : vector<2x8x8x64xbf16> to vector<128x64xbf16>
    %c1_52 = arith.constant 1 : index
    %c0_53 = arith.constant 0 : index
    %c0_54 = arith.constant 0 : index
    %c0_55 = arith.constant 0 : index
    %55 = vector.load %arg5[%c1_52, %c0_53, %c0_54, %c0_55] : memref<3x3x64x64xbf16, #tpu.memory_space<vmem>>, vector<1x1x64x64xbf16>
    %56 = vector.shape_cast %55 : vector<1x1x64x64xbf16> to vector<64x64xbf16>
    %cst_56 = arith.constant dense<0.000000e+00> : vector<128x64xf32>
    %57 = tpu.matmul %54, %56, %cst_56 {dimension_numbers = #tpu.dot_dimension_numbers<[1], [0], [0], [1], [0, 0, 1, 1], [], []>} : vector<128x64xbf16>, vector<64x64xbf16>, vector<128x64xf32> -> vector<128x64xf32>
    %58 = arith.addf %52, %57 : vector<128x64xf32>
    %c0_57 = arith.constant 0 : index
    %c1_58 = arith.constant 1 : index
    %c1_59 = arith.constant 1 : index
    %c0_60 = arith.constant 0 : index
    %59 = vector.load %arg15[%c0_57, %c1_58, %c1_59, %c0_60] : memref<2x10x10x64xbf16, #tpu.memory_space<vmem>>, vector<2x8x8x64xbf16>
    %60 = vector.shape_cast %59 : vector<2x8x8x64xbf16> to vector<128x64xbf16>
    %c1_61 = arith.constant 1 : index
    %c1_62 = arith.constant 1 : index
    %c0_63 = arith.constant 0 : index
    %c0_64 = arith.constant 0 : index
    %61 = vector.load %arg5[%c1_61, %c1_62, %c0_63, %c0_64] : memref<3x3x64x64xbf16, #tpu.memory_space<vmem>>, vector<1x1x64x64xbf16>
    %62 = vector.shape_cast %61 : vector<1x1x64x64xbf16> to vector<64x64xbf16>
    %cst_65 = arith.constant dense<0.000000e+00> : vector<128x64xf32>
    %63 = tpu.matmul %60, %62, %cst_65 {dimension_numbers = #tpu.dot_dimension_numbers<[1], [0], [0], [1], [0, 0, 1, 1], [], []>} : vector<128x64xbf16>, vector<64x64xbf16>, vector<128x64xf32> -> vector<128x64xf32>
    %64 = arith.addf %58, %63 : vector<128x64xf32>
    %c0_66 = arith.constant 0 : index
    %c1_67 = arith.constant 1 : index
    %c2_68 = arith.constant 2 : index
    %c0_69 = arith.constant 0 : index
    %65 = vector.load %arg15[%c0_66, %c1_67, %c2_68, %c0_69] : memref<2x10x10x64xbf16, #tpu.memory_space<vmem>>, vector<2x8x8x64xbf16>
    %66 = vector.shape_cast %65 : vector<2x8x8x64xbf16> to vector<128x64xbf16>
    %c1_70 = arith.constant 1 : index
    %c2_71 = arith.constant 2 : index
    %c0_72 = arith.constant 0 : index
    %c0_73 = arith.constant 0 : index
    %67 = vector.load %arg5[%c1_70, %c2_71, %c0_72, %c0_73] : memref<3x3x64x64xbf16, #tpu.memory_space<vmem>>, vector<1x1x64x64xbf16>
    %68 = vector.shape_cast %67 : vector<1x1x64x64xbf16> to vector<64x64xbf16>
    %cst_74 = arith.constant dense<0.000000e+00> : vector<128x64xf32>
    %69 = tpu.matmul %66, %68, %cst_74 {dimension_numbers = #tpu.dot_dimension_numbers<[1], [0], [0], [1], [0, 0, 1, 1], [], []>} : vector<128x64xbf16>, vector<64x64xbf16>, vector<128x64xf32> -> vector<128x64xf32>
    %70 = arith.addf %64, %69 : vector<128x64xf32>
    %c0_75 = arith.constant 0 : index
    %c2_76 = arith.constant 2 : index
    %c0_77 = arith.constant 0 : index
    %c0_78 = arith.constant 0 : index
    %71 = vector.load %arg15[%c0_75, %c2_76, %c0_77, %c0_78] : memref<2x10x10x64xbf16, #tpu.memory_space<vmem>>, vector<2x8x8x64xbf16>
    %72 = vector.shape_cast %71 : vector<2x8x8x64xbf16> to vector<128x64xbf16>
    %c2_79 = arith.constant 2 : index
    %c0_80 = arith.constant 0 : index
    %c0_81 = arith.constant 0 : index
    %c0_82 = arith.constant 0 : index
    %73 = vector.load %arg5[%c2_79, %c0_80, %c0_81, %c0_82] : memref<3x3x64x64xbf16, #tpu.memory_space<vmem>>, vector<1x1x64x64xbf16>
    %74 = vector.shape_cast %73 : vector<1x1x64x64xbf16> to vector<64x64xbf16>
    %cst_83 = arith.constant dense<0.000000e+00> : vector<128x64xf32>
    %75 = tpu.matmul %72, %74, %cst_83 {dimension_numbers = #tpu.dot_dimension_numbers<[1], [0], [0], [1], [0, 0, 1, 1], [], []>} : vector<128x64xbf16>, vector<64x64xbf16>, vector<128x64xf32> -> vector<128x64xf32>
    %76 = arith.addf %70, %75 : vector<128x64xf32>
    %c0_84 = arith.constant 0 : index
    %c2_85 = arith.constant 2 : index
    %c1_86 = arith.constant 1 : index
    %c0_87 = arith.constant 0 : index
    %77 = vector.load %arg15[%c0_84, %c2_85, %c1_86, %c0_87] : memref<2x10x10x64xbf16, #tpu.memory_space<vmem>>, vector<2x8x8x64xbf16>
    %78 = vector.shape_cast %77 : vector<2x8x8x64xbf16> to vector<128x64xbf16>
    %c2_88 = arith.constant 2 : index
    %c1_89 = arith.constant 1 : index
    %c0_90 = arith.constant 0 : index
    %c0_91 = arith.constant 0 : index
    %79 = vector.load %arg5[%c2_88, %c1_89, %c0_90, %c0_91] : memref<3x3x64x64xbf16, #tpu.memory_space<vmem>>, vector<1x1x64x64xbf16>
    %80 = vector.shape_cast %79 : vector<1x1x64x64xbf16> to vector<64x64xbf16>
    %cst_92 = arith.constant dense<0.000000e+00> : vector<128x64xf32>
    %81 = tpu.matmul %78, %80, %cst_92 {dimension_numbers = #tpu.dot_dimension_numbers<[1], [0], [0], [1], [0, 0, 1, 1], [], []>} : vector<128x64xbf16>, vector<64x64xbf16>, vector<128x64xf32> -> vector<128x64xf32>
    %82 = arith.addf %76, %81 : vector<128x64xf32>
    %c0_93 = arith.constant 0 : index
    %c2_94 = arith.constant 2 : index
    %c2_95 = arith.constant 2 : index
    %c0_96 = arith.constant 0 : index
    %83 = vector.load %arg15[%c0_93, %c2_94, %c2_95, %c0_96] : memref<2x10x10x64xbf16, #tpu.memory_space<vmem>>, vector<2x8x8x64xbf16>
    %84 = vector.shape_cast %83 : vector<2x8x8x64xbf16> to vector<128x64xbf16>
    %c2_97 = arith.constant 2 : index
    %c2_98 = arith.constant 2 : index
    %c0_99 = arith.constant 0 : index
    %c0_100 = arith.constant 0 : index
    %85 = vector.load %arg5[%c2_97, %c2_98, %c0_99, %c0_100] : memref<3x3x64x64xbf16, #tpu.memory_space<vmem>>, vector<1x1x64x64xbf16>
    %86 = vector.shape_cast %85 : vector<1x1x64x64xbf16> to vector<64x64xbf16>
    %cst_101 = arith.constant dense<0.000000e+00> : vector<128x64xf32>
    %87 = tpu.matmul %84, %86, %cst_101 {dimension_numbers = #tpu.dot_dimension_numbers<[1], [0], [0], [1], [0, 0, 1, 1], [], []>} : vector<128x64xbf16>, vector<64x64xbf16>, vector<128x64xf32> -> vector<128x64xf32>
    %88 = arith.addf %82, %87 : vector<128x64xf32>
    %c0_102 = arith.constant 0 : index
    %c0_103 = arith.constant 0 : index
    %89 = vector.load %arg6[%c0_102, %c0_103] : memref<1x64xf32, #tpu.memory_space<vmem>>, vector<1x64xf32>
    %c0_104 = arith.constant 0 : index
    %c0_105 = arith.constant 0 : index
    %90 = vector.load %arg7[%c0_104, %c0_105] : memref<1x64xf32, #tpu.memory_space<vmem>>, vector<1x64xf32>
    %cst_106 = arith.constant dense<0.000000e+00> : vector<64xf32>
    %91 = vector.multi_reduction <add>, %88, %cst_106 [0] : vector<128x64xf32> to vector<64xf32>
    %92 = vector.shape_cast %91 : vector<64xf32> to vector<1x64xf32>
    %cst_107 = arith.constant 1.280000e+02 : f32
    %93 = vector.broadcast %cst_107 : f32 to vector<1x64xf32>
    %94 = arith.divf %92, %93 : vector<1x64xf32>
    %95 = vector.broadcast %94 : vector<1x64xf32> to vector<128x64xf32>
    %96 = arith.subf %88, %95 : vector<128x64xf32>
    %97 = arith.mulf %96, %96 : vector<128x64xf32>
    %cst_108 = arith.constant dense<0.000000e+00> : vector<64xf32>
    %98 = vector.multi_reduction <add>, %97, %cst_108 [0] : vector<128x64xf32> to vector<64xf32>
    %99 = vector.shape_cast %98 : vector<64xf32> to vector<1x64xf32>
    %cst_109 = arith.constant 1.280000e+02 : f32
    %100 = vector.broadcast %cst_109 : f32 to vector<1x64xf32>
    %101 = arith.divf %99, %100 : vector<1x64xf32>
    %102 = vector.broadcast %94 : vector<1x64xf32> to vector<128x64xf32>
    %103 = arith.subf %88, %102 : vector<128x64xf32>
    %cst_110 = arith.constant 9.99999974E-6 : f32
    %104 = vector.broadcast %cst_110 : f32 to vector<1x64xf32>
    %105 = arith.addf %101, %104 : vector<1x64xf32>
    %106 = math.rsqrt %105 : vector<1x64xf32>
    %107 = vector.broadcast %106 : vector<1x64xf32> to vector<128x64xf32>
    %108 = arith.mulf %103, %107 : vector<128x64xf32>
    %109 = vector.broadcast %89 : vector<1x64xf32> to vector<128x64xf32>
    %110 = arith.mulf %108, %109 : vector<128x64xf32>
    %111 = vector.broadcast %90 : vector<1x64xf32> to vector<128x64xf32>
    %112 = arith.addf %110, %111 : vector<128x64xf32>
    %cst_111 = arith.constant 0.000000e+00 : f32
    %113 = vector.broadcast %cst_111 : f32 to vector<128x64xf32>
    %114 = arith.maximumf %112, %113 : vector<128x64xf32>
    %115 = arith.truncf %114 : vector<128x64xf32> to vector<128x64xbf16>
    %c0_112 = arith.constant 0 : index
    %c0_113 = arith.constant 0 : index
    %116 = vector.load %arg8[%c0_112, %c0_113] : memref<64x128xbf16, #tpu.memory_space<vmem>>, vector<64x128xbf16>
    %cst_114 = arith.constant dense<0.000000e+00> : vector<128x128xf32>
    %117 = tpu.matmul %115, %116, %cst_114 {dimension_numbers = #tpu.dot_dimension_numbers<[1], [0], [0], [1], [0, 0, 1, 1], [], []>} : vector<128x64xbf16>, vector<64x128xbf16>, vector<128x128xf32> -> vector<128x128xf32>
    %c0_115 = arith.constant 0 : index
    %c0_116 = arith.constant 0 : index
    %118 = vector.load %arg9[%c0_115, %c0_116] : memref<1x128xf32, #tpu.memory_space<vmem>>, vector<1x128xf32>
    %c0_117 = arith.constant 0 : index
    %c0_118 = arith.constant 0 : index
    %119 = vector.load %arg10[%c0_117, %c0_118] : memref<1x128xf32, #tpu.memory_space<vmem>>, vector<1x128xf32>
    %cst_119 = arith.constant dense<0.000000e+00> : vector<128xf32>
    %120 = vector.multi_reduction <add>, %117, %cst_119 [0] : vector<128x128xf32> to vector<128xf32>
    %121 = vector.shape_cast %120 : vector<128xf32> to vector<1x128xf32>
    %cst_120 = arith.constant 1.280000e+02 : f32
    %122 = vector.broadcast %cst_120 : f32 to vector<1x128xf32>
    %123 = arith.divf %121, %122 : vector<1x128xf32>
    %124 = vector.broadcast %123 : vector<1x128xf32> to vector<128x128xf32>
    %125 = arith.subf %117, %124 : vector<128x128xf32>
    %126 = arith.mulf %125, %125 : vector<128x128xf32>
    %cst_121 = arith.constant dense<0.000000e+00> : vector<128xf32>
    %127 = vector.multi_reduction <add>, %126, %cst_121 [0] : vector<128x128xf32> to vector<128xf32>
    %128 = vector.shape_cast %127 : vector<128xf32> to vector<1x128xf32>
    %cst_122 = arith.constant 1.280000e+02 : f32
    %129 = vector.broadcast %cst_122 : f32 to vector<1x128xf32>
    %130 = arith.divf %128, %129 : vector<1x128xf32>
    %131 = vector.broadcast %123 : vector<1x128xf32> to vector<128x128xf32>
    %132 = arith.subf %117, %131 : vector<128x128xf32>
    %cst_123 = arith.constant 9.99999974E-6 : f32
    %133 = vector.broadcast %cst_123 : f32 to vector<1x128xf32>
    %134 = arith.addf %130, %133 : vector<1x128xf32>
    %135 = math.rsqrt %134 : vector<1x128xf32>
    %136 = vector.broadcast %135 : vector<1x128xf32> to vector<128x128xf32>
    %137 = arith.mulf %132, %136 : vector<128x128xf32>
    %138 = vector.broadcast %118 : vector<1x128xf32> to vector<128x128xf32>
    %139 = arith.mulf %137, %138 : vector<128x128xf32>
    %140 = vector.broadcast %119 : vector<1x128xf32> to vector<128x128xf32>
    %141 = arith.addf %139, %140 : vector<128x128xf32>
    %cst_124 = arith.constant 0.000000e+00 : f32
    %142 = vector.broadcast %cst_124 : f32 to vector<128x128xf32>
    %143 = arith.maximumf %141, %142 : vector<128x128xf32>
    %c0_125 = arith.constant 0 : index
    %c0_126 = arith.constant 0 : index
    %144 = vector.load %arg13[%c0_125, %c0_126] : memref<128x128xf32, #tpu.memory_space<vmem>>, vector<128x128xf32>
    tpu.vector_store %arg13[%c0_125, %c0_126], %143 {strides = array<i32>} : memref<128x128xf32, #tpu.memory_space<vmem>>, vector<128x128xf32>,
    %145 = vector.extract_strided_slice %143 {offsets = [0, 0], sizes = [64, 128], strides = [1, 1]} : vector<128x128xf32> to vector<64x128xf32>
    %cst_127 = arith.constant dense<0.000000e+00> : vector<128xf32>
    %146 = vector.multi_reduction <add>, %145, %cst_127 [0] : vector<64x128xf32> to vector<128xf32>
    %147 = vector.shape_cast %146 : vector<128xf32> to vector<1x128xf32>
    %cst_128 = arith.constant 6.400000e+01 : f32
    %148 = vector.broadcast %cst_128 : f32 to vector<1x128xf32>
    %149 = arith.divf %147, %148 : vector<1x128xf32>
    %150 = vector.extract_strided_slice %143 {offsets = [64, 0], sizes = [64, 128], strides = [1, 1]} : vector<128x128xf32> to vector<64x128xf32>
    %cst_129 = arith.constant dense<0.000000e+00> : vector<128xf32>
    %151 = vector.multi_reduction <add>, %150, %cst_129 [0] : vector<64x128xf32> to vector<128xf32>
    %152 = vector.shape_cast %151 : vector<128xf32> to vector<1x128xf32>
    %cst_130 = arith.constant 6.400000e+01 : f32
    %153 = vector.broadcast %cst_130 : f32 to vector<1x128xf32>
    %154 = arith.divf %152, %153 : vector<1x128xf32>
    %155 = tpu.concatenate %149, %154 in 0 : vector<1x128xf32>, vector<1x128xf32> -> vector<2x128xf32>
    %156 = arith.truncf %155 : vector<2x128xf32> to vector<2x128xbf16>
    %c0_131 = arith.constant 0 : index
    %c0_132 = arith.constant 0 : index
    %157 = vector.load %arg11[%c0_131, %c0_132] : memref<128x100xbf16, #tpu.memory_space<vmem>>, vector<128x100xbf16>
    %cst_133 = arith.constant dense<0.000000e+00> : vector<2x100xf32>
    %158 = tpu.matmul %156, %157, %cst_133 {dimension_numbers = #tpu.dot_dimension_numbers<[1], [0], [0], [1], [0, 0, 1, 1], [], []>} : vector<2x128xbf16>, vector<128x100xbf16>, vector<2x100xf32> -> vector<2x100xf32>
    %c0_134 = arith.constant 0 : index
    %c0_135 = arith.constant 0 : index
    %159 = vector.load %arg12[%c0_134, %c0_135] : memref<1x100xf32, #tpu.memory_space<vmem>>, vector<1x100xf32>
    %160 = vector.broadcast %159 : vector<1x100xf32> to vector<2x100xf32>
    %161 = arith.addf %158, %160 : vector<2x100xf32>
    %c0_136 = arith.constant 0 : index
    %c0_137 = arith.constant 0 : index
    %162 = vector.load %arg14[%c0_136, %c0_137] : memref<2x100xf32, #tpu.memory_space<vmem>>, vector<2x100xf32>
    tpu.vector_store %arg14[%c0_136, %c0_137], %161 {strides = array<i32>} : memref<2x100xf32, #tpu.memory_space<vmem>>, vector<2x100xf32>,
    return
  }
  func.func @transform_0(%arg0: i32) -> (i32, i32) {
    %c0_i32 = arith.constant 0 : i32
    %c0_i32_0 = arith.constant 0 : i32
    %c0_i32_1 = arith.constant 0 : i32
    return %c0_i32, %c0_i32_0 : i32, i32
  }
  func.func @transform_1(%arg0: i32) -> (i32, i32) {
    %c0_i32 = arith.constant 0 : i32
    %c0_i32_0 = arith.constant 0 : i32
    %c0_i32_1 = arith.constant 0 : i32
    return %c0_i32, %c0_i32_0 : i32, i32
  }
  func.func @transform_2(%arg0: i32) -> (i32, i32) {
    %c0_i32 = arith.constant 0 : i32
    %c0_i32_0 = arith.constant 0 : i32
    %c0_i32_1 = arith.constant 0 : i32
    return %c0_i32, %c0_i32_0 : i32, i32
  }
  func.func @transform_3(%arg0: i32) -> (i32, i32) {
    %c0_i32 = arith.constant 0 : i32
    %c0_i32_0 = arith.constant 0 : i32
    %c0_i32_1 = arith.constant 0 : i32
    return %c0_i32, %c0_i32_0 : i32, i32
  }
  func.func @transform_4(%arg0: i32) -> (i32, i32, i32, i32) {
    %c0_i32 = arith.constant 0 : i32
    %c0_i32_0 = arith.constant 0 : i32
    %c0_i32_1 = arith.constant 0 : i32
    %c0_i32_2 = arith.constant 0 : i32
    %c0_i32_3 = arith.constant 0 : i32
    return %c0_i32, %c0_i32_0, %c0_i32_1, %c0_i32_2 : i32, i32, i32, i32
  }
  func.func @transform_5(%arg0: i32) -> (i32, i32) {
    %c0_i32 = arith.constant 0 : i32
    %c0_i32_0 = arith.constant 0 : i32
    %c0_i32_1 = arith.constant 0 : i32
    return %c0_i32, %c0_i32_0 : i32, i32
  }
  func.func @transform_6(%arg0: i32) -> (i32, i32) {
    %c0_i32 = arith.constant 0 : i32
    %c0_i32_0 = arith.constant 0 : i32
    %c0_i32_1 = arith.constant 0 : i32
    return %c0_i32, %c0_i32_0 : i32, i32
  }
  func.func @transform_7(%arg0: i32) -> (i32, i32) {
    %c0_i32 = arith.constant 0 : i32
    %c0_i32_0 = arith.constant 0 : i32
    %c0_i32_1 = arith.constant 0 : i32
    return %c0_i32, %c0_i32_0 : i32, i32
  }
  func.func @transform_8(%arg0: i32) -> (i32, i32) {
    %c0_i32 = arith.constant 0 : i32
    %c0_i32_0 = arith.constant 0 : i32
    %c0_i32_1 = arith.constant 0 : i32
    return %c0_i32, %c0_i32_0 : i32, i32
  }
  func.func @transform_9(%arg0: i32) -> (i32, i32) {
    %c0_i32 = arith.constant 0 : i32
    %c0_i32_0 = arith.constant 0 : i32
    %c0_i32_1 = arith.constant 0 : i32
    return %c0_i32, %c0_i32_0 : i32, i32
  }
  func.func @transform_10(%arg0: i32) -> (i32, i32) {
    %c0_i32 = arith.constant 0 : i32
    %c0_i32_0 = arith.constant 0 : i32
    %c0_i32_1 = arith.constant 0 : i32
    return %c0_i32, %c0_i32_0 : i32, i32
  }
  func.func @transform_11(%arg0: i32) -> (i32, i32) {
    %c0_i32 = arith.constant 0 : i32
    %c0_i32_0 = arith.constant 0 : i32
    %c0_i32_1 = arith.constant 0 : i32
    return %c0_i32, %c0_i32_0 : i32, i32
  }
  func.func @transform_12(%arg0: i32) -> (i32, i32) {
    %c0_i32 = arith.constant 0 : i32
    %c0_i32_0 = arith.constant 0 : i32
    %c0_i32_1 = arith.constant 0 : i32
    return %c0_i32, %c0_i32_0 : i32, i32
  }
  func.func @transform_13(%arg0: i32) -> (i32, i32) {
    %c0_i32 = arith.constant 0 : i32
    %c0_i32_0 = arith.constant 0 : i32
    %c0_i32_1 = arith.constant 0 : i32
    return %c0_i32, %c0_i32_0 : i32, i32
  }
}

</mosaic_0001>

<llo_original>
// kernel: simkd_forward.1
$region0: #{simkd_forward.1}
  #allocation0 [shape = 'u32[]', space=smem, size = 0x4, offset = 0x4, fixed_abs, tag = 'smem constant byte address 0x4 - core index']
  #allocation1 [shape = 'u32[144,128]{1,0:T(1,128)}', space=vmem, size = 0x12000, scoped, tag = 'internal scratch']
  #allocation2 [shape = 'bf16[2,10,10,64]{3,2,1,0:T(8,128)(2,1)}', space=vmem, size = 0x14000, scoped, tag = 'scratch operand']
  %s0 = inlined_call_operand.vmem [shape: bf16[128,64], index: 0, kind: input, shape index: {}]
  %s1 = inlined_call_operand.vmem [shape: bf16[64,64], index: 1, kind: input, shape index: {}]
  %s2 = inlined_call_operand.vmem [shape: f32[1,64], index: 2, kind: input, shape index: {}]
  %s3 = inlined_call_operand.vmem [shape: f32[1,64], index: 3, kind: input, shape index: {}]
  %s4 = inlined_call_operand.vmem [shape: bf16[3,3,64,64], index: 4, kind: input, shape index: {}]
  %s5 = inlined_call_operand.vmem [shape: f32[1,64], index: 5, kind: input, shape index: {}]
  %s6 = inlined_call_operand.vmem [shape: f32[1,64], index: 6, kind: input, shape index: {}]
  %s7 = inlined_call_operand.vmem [shape: bf16[64,128], index: 7, kind: input, shape index: {}]
  %s8 = inlined_call_operand.vmem [shape: f32[1,128], index: 8, kind: input, shape index: {}]
  %s9 = inlined_call_operand.vmem [shape: f32[1,128], index: 9, kind: input, shape index: {}]
  %s10 = inlined_call_operand.vmem [shape: bf16[128,100], index: 10, kind: input, shape index: {}]
  %s11 = inlined_call_operand.vmem [shape: f32[1,100], index: 11, kind: input, shape index: {}]
  %s12 = inlined_call_operand.hbm [shape: f32[128,128], index: 12, kind: output, shape index: {0}]
  %s13 = inlined_call_operand.hbm [shape: f32[2,100], index: 13, kind: output, shape index: {1}]
  %14 = xla_tuple %s12, %s13
  %s15 = sld [smem:[#allocation0]]
  $region66: #{simkd_forward.1} parent=0
    _
  %s17 = ssub.s32 1, %s15
  %s18 = scalar_select 0, %s17, %s15
  $region1: #{simkd_forward.1} parent=0
    #allocation3 [shape = 'u8[65536]{0}', space=vmem, size = 0x10000, scoped, tag = 'output window, operand 0, single buffered']
    #allocation4 [shape = 's32[1]{0}', space=sflag, size = 0x4, scoped, tag = 'scoped memory for simkd_forward.1']
    #allocation5 [shape = 'u8[1024]{0}', space=vmem, size = 0x400, scoped, tag = 'output window, operand 1, single buffered']
    #allocation6 [shape = 's32[1]{0}', space=sflag, size = 0x4, scoped, tag = 'scoped memory for simkd_forward.1']
    %19 = vsyncpa [#allocation4], 0
    %20 = vsyncpa [#allocation6], 0
    // Predicated region
    $region2: #{simkd_forward.1} parent=1 // pred_check
      _
    $region3: #{simkd_forward.1} parent=1 // pred_check_branch
      %22 = sbr.rel (0) target = $region5
    $region4: #{simkd_forward.1} parent=1 // pred_region
      _
    $region5: #{simkd_forward.1} parent=1 // pred_fallthru
      _
    // Predicated region
    $region6: #{simkd_forward.1} parent=1 // pred_check
      _
    $region7: #{simkd_forward.1} parent=1 // pred_check_branch
      %24 = sbr.rel (0) target = $region9
    $region8: #{simkd_forward.1} parent=1 // pred_region
      _
    $region9: #{simkd_forward.1} parent=1 // pred_fallthru
      _
    // Predicated region
    $region10: #{simkd_forward.1} parent=1 // pred_check
      _
    $region11: #{simkd_forward.1} parent=1 // pred_check_branch
      %26 = sbr.rel (0) target = $region13
    $region12: #{simkd_forward.1} parent=1 // pred_region
      _
    $region13: #{simkd_forward.1} parent=1 // pred_fallthru
      _
    // Predicated region
    $region14: #{simkd_forward.1} parent=1 // pred_check
      _
    $region15: #{simkd_forward.1} parent=1 // pred_check_branch
      %28 = sbr.rel (0) target = $region17
    $region16: #{simkd_forward.1} parent=1 // pred_region
      _
    $region17: #{simkd_forward.1} parent=1 // pred_fallthru
      _
    // Predicated region
    $region18: #{simkd_forward.1} parent=1 // pred_check
      _
    $region19: #{simkd_forward.1} parent=1 // pred_check_branch
      %30 = sbr.rel (0) target = $region21
    $region20: #{simkd_forward.1} parent=1 // pred_region
      _
    $region21: #{simkd_forward.1} parent=1 // pred_fallthru
      _
    // Predicated region
    $region22: #{simkd_forward.1} parent=1 // pred_check
      _
    $region23: #{simkd_forward.1} parent=1 // pred_check_branch
      %32 = sbr.rel (0) target = $region25
    $region24: #{simkd_forward.1} parent=1 // pred_region
      _
    $region25: #{simkd_forward.1} parent=1 // pred_fallthru
      _
    // Predicated region
    $region26: #{simkd_forward.1} parent=1 // pred_check
      _
    $region27: #{simkd_forward.1} parent=1 // pred_check_branch
      %34 = sbr.rel (0) target = $region29
    $region28: #{simkd_forward.1} parent=1 // pred_region
      _
    $region29: #{simkd_forward.1} parent=1 // pred_fallthru
      _
    // Predicated region
    $region30: #{simkd_forward.1} parent=1 // pred_check
      _
    $region31: #{simkd_forward.1} parent=1 // pred_check_branch
      %36 = sbr.rel (0) target = $region33
    $region32: #{simkd_forward.1} parent=1 // pred_region
      _
    $region33: #{simkd_forward.1} parent=1 // pred_fallthru
      _
    // Predicated region
    $region34: #{simkd_forward.1} parent=1 // pred_check
      _
    $region35: #{simkd_forward.1} parent=1 // pred_check_branch
      %38 = sbr.rel (0) target = $region37
    $region36: #{simkd_forward.1} parent=1 // pred_region
      _
    $region37: #{simkd_forward.1} parent=1 // pred_fallthru
      _
    // Predicated region
    $region38: #{simkd_forward.1} parent=1 // pred_check
      _
    $region39: #{simkd_forward.1} parent=1 // pred_check_branch
      %40 = sbr.rel (0) target = $region41
    $region40: #{simkd_forward.1} parent=1 // pred_region
      _
    $region41: #{simkd_forward.1} parent=1 // pred_fallthru
      _
    // Predicated region
    $region42: #{simkd_forward.1} parent=1 // pred_check
      _
    $region43: #{simkd_forward.1} parent=1 // pred_check_branch
      %42 = sbr.rel (0) target = $region45
    $region44: #{simkd_forward.1} parent=1 // pred_region
      _
    $region45: #{simkd_forward.1} parent=1 // pred_fallthru
      _
    // Predicated region
    $region46: #{simkd_forward.1} parent=1 // pred_check
      _
    $region47: #{simkd_forward.1} parent=1 // pred_check_branch
      %44 = sbr.rel (0) target = $region49
    $region48: #{simkd_forward.1} parent=1 // pred_region
      _
    $region49: #{simkd_forward.1} parent=1 // pred_fallthru
      _
    %v46 = vld [vmem:[%s0] sm:$0xf]
    %v47 = vld [vmem:[%s0 + $0x4] sm:$0xf]
    %v48 = vld [vmem:[%s0 + $0x8] sm:$0xf]
    %v49 = vld [vmem:[%s0 + $0xc] sm:$0xf]
    %v50 = vld [vmem:[%s0 + $0x10] sm:$0xf]
    %v51 = vld [vmem:[%s0 + $0x14] sm:$0xf]
    %v52 = vld [vmem:[%s0 + $0x18] sm:$0xf]
    %v53 = vld [vmem:[%s0 + $0x1c] sm:$0xf]
    %v54 = vld [vmem:[%s0 + $0x20] sm:$0xf]
    %v55 = vld [vmem:[%s0 + $0x24] sm:$0xf]
    %v56 = vld [vmem:[%s0 + $0x28] sm:$0xf]
    %v57 = vld [vmem:[%s0 + $0x2c] sm:$0xf]
    %v58 = vld [vmem:[%s0 + $0x30] sm:$0xf]
    %v59 = vld [vmem:[%s0 + $0x34] sm:$0xf]
    %v60 = vld [vmem:[%s0 + $0x38] sm:$0xf]
    %v61 = vld [vmem:[%s0 + $0x3c] sm:$0xf]
    %v62 = vld [vmem:[%s1] sm:$0xf]
    %v63 = vld [vmem:[%s1 + $0x4] sm:$0xf]
    %v64 = vld [vmem:[%s1 + $0x8] sm:$0xf]
    %v65 = vld [vmem:[%s1 + $0xc] sm:$0xf]
    %v66 = vld [vmem:[%s1 + $0x10] sm:$0xf]
    %v67 = vld [vmem:[%s1 + $0x14] sm:$0xf]
    %v68 = vld [vmem:[%s1 + $0x18] sm:$0xf]
    %v69 = vld [vmem:[%s1 + $0x1c] sm:$0xf]
    %v86 = vunpack.c.l.b16 %v46
    %v87 = vunpack.c.l.b16 %v47
    %v88 = vunpack.c.l.b16 %v48
    %v89 = vunpack.c.l.b16 %v49
    %v90 = vunpack.c.l.b16 %v50
    %v91 = vunpack.c.l.b16 %v51
    %v92 = vunpack.c.l.b16 %v52
    %v93 = vunpack.c.l.b16 %v53
    %v94 = vunpack.c.l.b16 %v54
    %v95 = vunpack.c.l.b16 %v55
    %v96 = vunpack.c.l.b16 %v56
    %v97 = vunpack.c.l.b16 %v57
    %v98 = vunpack.c.l.b16 %v58
    %v99 = vunpack.c.l.b16 %v59
    %v100 = vunpack.c.l.b16 %v60
    %v101 = vunpack.c.l.b16 %v61
    %v102 = vpack.c.b16 %v87, %v86
    %v103 = vpack.c.b16 %v89, %v88
    %v104 = vpack.c.b16 %v91, %v90
    %v105 = vpack.c.b16 %v93, %v92
    %v106 = vpack.c.b16 %v95, %v94
    %v107 = vpack.c.b16 %v97, %v96
    %v108 = vpack.c.b16 %v99, %v98
    %v109 = vpack.c.b16 %v101, %v100
    %v118 = vunpack.c.l.b16 %v62
    %v119 = vunpack.c.l.b16 %v63
    %v120 = vunpack.c.l.b16 %v64
    %v121 = vunpack.c.l.b16 %v65
    %v122 = vunpack.c.l.b16 %v66
    %v123 = vunpack.c.l.b16 %v67
    %v124 = vunpack.c.l.b16 %v68
    %v125 = vunpack.c.l.b16 %v69
    %v126 = vpack.c.b16 %v119, %v118
    %v127 = vpack.c.b16 %v121, %v120
    %v128 = vpack.c.b16 %v123, %v122
    %v129 = vpack.c.b16 %v125, %v124
    %vm134 = vcmask 523264
    %v136 = vsel %vm134, %v102, 0
    %v139 = vsel %vm134, %v103, 0
    %v142 = vsel %vm134, %v104, 0
    %v145 = vsel %vm134, %v105, 0
    %v148 = vsel %vm134, %v106, 0
    %v151 = vsel %vm134, %v107, 0
    %v154 = vsel %vm134, %v108, 0
    %v157 = vsel %vm134, %v109, 0
    %159 = vmatprep.subr.bf16.mxu0 0
    %160 = vmatpush1.bf16.msra.mxu0 %v126
    %161 = vmatprep.subr.bf16.mxu0 0
    %162 = vmatpush1.bf16.msra.mxu0 %v127
    %163 = vmatprep.subr.bf16.mxu0 0
    %164 = vmatpush1.bf16.msra.mxu0 %v128
    %165 = vmatprep.subr.bf16.mxu0 0
    %166 = vmatpush1.bf16.msra.mxu0 %v129
    %167 = vmatprep.subr.bf16.mxu0 0
    %168 = vmatpush1.bf16.msra.mxu0 0
    %169 = vmatprep.subr.bf16.mxu0 0
    %170 = vmatpush1.bf16.msra.mxu0 0
    %171 = vmatprep.subr.bf16.mxu0 0
    %172 = vmatpush1.bf16.msra.mxu0 0
    %173 = vmatprep.subr.bf16.mxu0 0
    %174 = vmatpush1.bf16.msra.mxu0 0
    %175 = vmatprep.subr.bf16.mxu0 0
    %176 = vmatpush1.bf16.msra.mxu0 0
    %177 = vmatprep.subr.bf16.mxu0 0
    %178 = vmatpush1.bf16.msra.mxu0 0
    %179 = vmatprep.subr.bf16.mxu0 0
    %180 = vmatpush1.bf16.msra.mxu0 0
    %181 = vmatprep.subr.bf16.mxu0 0
    %182 = vmatpush1.bf16.msra.mxu0 0
    %183 = vmatprep.subr.bf16.mxu0 0
    %184 = vmatpush1.bf16.msra.mxu0 0
    %185 = vmatprep.subr.bf16.mxu0 0
    %186 = vmatpush1.bf16.msra.mxu0 0
    %187 = vmatprep.subr.bf16.mxu0 0
    %188 = vmatpush1.bf16.msra.mxu0 0
    %189 = vmatprep.subr.bf16.mxu0 0
    %190 = vmatpush1.bf16.msra.mxu0 0
    %191 = vmatprep.mubr.bf16.mxu0 0
    %192 = vmatmul.mubr.bf16.gmra.mrb[0].mxu0 %v136
    %v193 = vpop.f32.mrb[0].mxu0
    %v194 = vadd.f32 0.0, %v193
    %v195 = vpop.f32.mrb[0].mxu0
    %v196 = vpop.f32.mrb[0].mxu0
    %v197 = vadd.f32 0.0, %v196
    %v198 = vpop.f32.mrb[0].mxu0
    %199 = vmatprep.mubr.bf16.mxu0 0
    %200 = vmatmul.mubr.bf16.gmra.mrb[0].mxu0 %v139
    %v201 = vpop.f32.mrb[0].mxu0
    %v202 = vadd.f32 0.0, %v201
    %v203 = vpop.f32.mrb[0].mxu0
    %v204 = vpop.f32.mrb[0].mxu0
    %v205 = vadd.f32 0.0, %v204
    %v206 = vpop.f32.mrb[0].mxu0
    %207 = vmatprep.mubr.bf16.mxu0 0
    %208 = vmatmul.mubr.bf16.gmra.mrb[0].mxu0 %v142
    %v209 = vpop.f32.mrb[0].mxu0
    %v210 = vadd.f32 0.0, %v209
    %v211 = vpop.f32.mrb[0].mxu0
    %v212 = vpop.f32.mrb[0].mxu0
    %v213 = vadd.f32 0.0, %v212
    %v214 = vpop.f32.mrb[0].mxu0
    %215 = vmatprep.mubr.bf16.mxu0 0
    %216 = vmatmul.mubr.bf16.gmra.mrb[0].mxu0 %v145
    %v217 = vpop.f32.mrb[0].mxu0
    %v218 = vadd.f32 0.0, %v217
    %v219 = vpop.f32.mrb[0].mxu0
    %v220 = vpop.f32.mrb[0].mxu0
    %v221 = vadd.f32 0.0, %v220
    %v222 = vpop.f32.mrb[0].mxu0
    %223 = vmatprep.mubr.bf16.mxu0 0
    %224 = vmatmul.mubr.bf16.gmra.mrb[0].mxu0 %v148
    %v225 = vpop.f32.mrb[0].mxu0
    %v226 = vadd.f32 0.0, %v225
    %v227 = vpop.f32.mrb[0].mxu0
    %v228 = vpop.f32.mrb[0].mxu0
    %v229 = vadd.f32 0.0, %v228
    %v230 = vpop.f32.mrb[0].mxu0
    %231 = vmatprep.mubr.bf16.mxu0 0
    %232 = vmatmul.mubr.bf16.gmra.mrb[0].mxu0 %v151
    %v233 = vpop.f32.mrb[0].mxu0
    %v234 = vadd.f32 0.0, %v233
    %v235 = vpop.f32.mrb[0].mxu0
    %v236 = vpop.f32.mrb[0].mxu0
    %v237 = vadd.f32 0.0, %v236
    %v238 = vpop.f32.mrb[0].mxu0
    %239 = vmatprep.mubr.bf16.mxu0 0
    %240 = vmatmul.mubr.bf16.gmra.mrb[0].mxu0 %v154
    %v241 = vpop.f32.mrb[0].mxu0
    %v242 = vadd.f32 0.0, %v241
    %v243 = vpop.f32.mrb[0].mxu0
    %v244 = vpop.f32.mrb[0].mxu0
    %v245 = vadd.f32 0.0, %v244
    %v246 = vpop.f32.mrb[0].mxu0
    %247 = vmatprep.mubr.bf16.mxu0 0
    %248 = vmatmul.mubr.bf16.gmra.mrb[0].mxu0 %v157
    %v249 = vpop.f32.mrb[0].mxu0
    %v250 = vadd.f32 0.0, %v249
    %v251 = vpop.f32.mrb[0].mxu0
    %v252 = vpop.f32.mrb[0].mxu0
    %v253 = vadd.f32 0.0, %v252
    %v254 = vpop.f32.mrb[0].mxu0
    %255 = vdwg.mxu0
    %v256 = vld [vmem:[%s2] sm:$0x1]
    %v257 = vld [vmem:[%s3] sm:$0x1]
    %v258 = vsel %vm134, %v194, 0.0
    %v259 = vsel %vm134, %v197, 0.0
    %v260 = vadd.f32 %v258, %v259
    %v261 = vsel %vm134, %v202, 0.0
    %v262 = vadd.f32 %v260, %v261
    %v263 = vsel %vm134, %v205, 0.0
    %v264 = vadd.f32 %v262, %v263
    %v265 = vsel %vm134, %v210, 0.0
    %v266 = vadd.f32 %v264, %v265
    %v267 = vsel %vm134, %v213, 0.0
    %v268 = vadd.f32 %v266, %v267
    %v269 = vsel %vm134, %v218, 0.0
    %v270 = vadd.f32 %v268, %v269
    %v271 = vsel %vm134, %v221, 0.0
    %v272 = vadd.f32 %v270, %v271
    %v273 = vsel %vm134, %v226, 0.0
    %v274 = vadd.f32 %v272, %v273
    %v275 = vsel %vm134, %v229, 0.0
    %v276 = vadd.f32 %v274, %v275
    %v277 = vsel %vm134, %v234, 0.0
    %v278 = vadd.f32 %v276, %v277
    %v279 = vsel %vm134, %v237, 0.0
    %v280 = vadd.f32 %v278, %v279
    %v281 = vsel %vm134, %v242, 0.0
    %v282 = vadd.f32 %v280, %v281
    %v283 = vsel %vm134, %v245, 0.0
    %v284 = vadd.f32 %v282, %v283
    %v285 = vsel %vm134, %v250, 0.0
    %v286 = vadd.f32 %v284, %v285
    %v287 = vsel %vm134, %v253, 0.0
    %v288 = vadd.f32 %v286, %v287
    %v289 = vrot.slane %v288, 4
    %v290 = vadd.f32 %v288, %v289
    %v291 = vrot.slane %v290, 2
    %v292 = vadd.f32 %v290, %v291
    %v293 = vrot.slane %v292, 1
    %v294 = vadd.f32 %v292, %v293
    %v295 = vrcp.pop 128.0
    %v296 = vmul.f32 %v294, %v295
    %v297 = vsub.f32 %v194, %v296
    %v298 = vsub.f32 %v197, %v296
    %v299 = vsub.f32 %v202, %v296
    %v300 = vsub.f32 %v205, %v296
    %v301 = vsub.f32 %v210, %v296
    %v302 = vsub.f32 %v213, %v296
    %v303 = vsub.f32 %v218, %v296
    %v304 = vsub.f32 %v221, %v296
    %v305 = vsub.f32 %v226, %v296
    %v306 = vsub.f32 %v229, %v296
    %v307 = vsub.f32 %v234, %v296
    %v308 = vsub.f32 %v237, %v296
    %v309 = vsub.f32 %v242, %v296
    %v310 = vsub.f32 %v245, %v296
    %v311 = vsub.f32 %v250, %v296
    %v312 = vsub.f32 %v253, %v296
    %v313 = vmul.f32 %v297, %v297
    %v314 = vmul.f32 %v298, %v298
    %v315 = vmul.f32 %v299, %v299
    %v316 = vmul.f32 %v300, %v300
    %v317 = vmul.f32 %v301, %v301
    %v318 = vmul.f32 %v302, %v302
    %v319 = vmul.f32 %v303, %v303
    %v320 = vmul.f32 %v304, %v304
    %v321 = vmul.f32 %v305, %v305
    %v322 = vmul.f32 %v306, %v306
    %v323 = vmul.f32 %v307, %v307
    %v324 = vmul.f32 %v308, %v308
    %v325 = vmul.f32 %v309, %v309
    %v326 = vmul.f32 %v310, %v310
    %v327 = vmul.f32 %v311, %v311
    %v328 = vmul.f32 %v312, %v312
    %v329 = vsel %vm134, %v313, 0.0
    %v330 = vsel %vm134, %v314, 0.0
    %v331 = vadd.f32 %v329, %v330
    %v332 = vsel %vm134, %v315, 0.0
    %v333 = vadd.f32 %v331, %v332
    %v334 = vsel %vm134, %v316, 0.0
    %v335 = vadd.f32 %v333, %v334
    %v336 = vsel %vm134, %v317, 0.0
    %v337 = vadd.f32 %v335, %v336
    %v338 = vsel %vm134, %v318, 0.0
    %v339 = vadd.f32 %v337, %v338
    %v340 = vsel %vm134, %v319, 0.0
    %v341 = vadd.f32 %v339, %v340
    %v342 = vsel %vm134, %v320, 0.0
    %v343 = vadd.f32 %v341, %v342
    %v344 = vsel %vm134, %v321, 0.0
    %v345 = vadd.f32 %v343, %v344
    %v346 = vsel %vm134, %v322, 0.0
    %v347 = vadd.f32 %v345, %v346
    %v348 = vsel %vm134, %v323, 0.0
    %v349 = vadd.f32 %v347, %v348
    %v350 = vsel %vm134, %v324, 0.0
    %v351 = vadd.f32 %v349, %v350
    %v352 = vsel %vm134, %v325, 0.0
    %v353 = vadd.f32 %v351, %v352
    %v354 = vsel %vm134, %v326, 0.0
    %v355 = vadd.f32 %v353, %v354
    %v356 = vsel %vm134, %v327, 0.0
    %v357 = vadd.f32 %v355, %v356
    %v358 = vsel %vm134, %v328, 0.0
    %v359 = vadd.f32 %v357, %v358
    %v360 = vrot.slane %v359, 4
    %v361 = vadd.f32 %v359, %v360
    %v362 = vrot.slane %v361, 2
    %v363 = vadd.f32 %v361, %v362
    %v364 = vrot.slane %v363, 1
    %v365 = vadd.f32 %v363, %v364
    %v366 = vmul.f32 %v365, %v295
    %v367 = vadd.f32 %v366, 1e-05
    %v368 = vrsqrt.pop %v367
    %v369 = vmul.f32 %v297, %v368
    %v370 = vmul.f32 %v298, %v368
    %v371 = vmul.f32 %v299, %v368
    %v372 = vmul.f32 %v300, %v368
    %v373 = vmul.f32 %v301, %v368
    %v374 = vmul.f32 %v302, %v368
    %v375 = vmul.f32 %v303, %v368
    %v376 = vmul.f32 %v304, %v368
    %v377 = vmul.f32 %v305, %v368
    %v378 = vmul.f32 %v306, %v368
    %v379 = vmul.f32 %v307, %v368
    %v380 = vmul.f32 %v308, %v368
    %v381 = vmul.f32 %v309, %v368
    %v382 = vmul.f32 %v310, %v368
    %v383 = vmul.f32 %v311, %v368
    %v384 = vmul.f32 %v312, %v368
    %v386 = vlaneseq
    %v387 = vshrl.u32 %v386, 7
    %v388 = vsub.s32 0, %v387
    %v389 = vrot.slane %v256, %v388
    %v391 = vmul.f32 %v369, %v389
    %v392 = vmul.f32 %v370, %v389
    %v393 = vmul.f32 %v371, %v389
    %v394 = vmul.f32 %v372, %v389
    %v395 = vmul.f32 %v373, %v389
    %v396 = vmul.f32 %v374, %v389
    %v397 = vmul.f32 %v375, %v389
    %v398 = vmul.f32 %v376, %v389
    %v399 = vmul.f32 %v377, %v389
    %v400 = vmul.f32 %v378, %v389
    %v401 = vmul.f32 %v379, %v389
    %v402 = vmul.f32 %v380, %v389
    %v403 = vmul.f32 %v381, %v389
    %v404 = vmul.f32 %v382, %v389
    %v405 = vmul.f32 %v383, %v389
    %v406 = vmul.f32 %v384, %v389
    %v408 = vlaneseq
    %v409 = vshrl.u32 %v408, 7
    %v410 = vsub.s32 0, %v409
    %v411 = vrot.slane %v257, %v410
    %v413 = vadd.f32 %v391, %v411
    %v414 = vadd.f32 %v392, %v411
    %v415 = vadd.f32 %v393, %v411
    %v416 = vadd.f32 %v394, %v411
    %v417 = vadd.f32 %v395, %v411
    %v418 = vadd.f32 %v396, %v411
    %v419 = vadd.f32 %v397, %v411
    %v420 = vadd.f32 %v398, %v411
    %v421 = vadd.f32 %v399, %v411
    %v422 = vadd.f32 %v400, %v411
    %v423 = vadd.f32 %v401, %v411
    %v424 = vadd.f32 %v402, %v411
    %v425 = vadd.f32 %v403, %v411
    %v426 = vadd.f32 %v404, %v411
    %v427 = vadd.f32 %v405, %v411
    %v428 = vadd.f32 %v406, %v411
    %v429 = vmax.f32 %v413, 0.0
    %v430 = vmax.f32 %v414, 0.0
    %v431 = vmax.f32 %v415, 0.0
    %v432 = vmax.f32 %v416, 0.0
    %v433 = vmax.f32 %v417, 0.0
    %v434 = vmax.f32 %v418, 0.0
    %v435 = vmax.f32 %v419, 0.0
    %v436 = vmax.f32 %v420, 0.0
    %v437 = vmax.f32 %v421, 0.0
    %v438 = vmax.f32 %v422, 0.0
    %v439 = vmax.f32 %v423, 0.0
    %v440 = vmax.f32 %v424, 0.0
    %v441 = vmax.f32 %v425, 0.0
    %v442 = vmax.f32 %v426, 0.0
    %v443 = vmax.f32 %v427, 0.0
    %v444 = vmax.f32 %v428, 0.0
    %vm445 = vcmask 519168
    %446 = vst.msk [vmem:[#allocation2] sm:$0xf] %vm445, 0
    %vm447 = vcmask 516096
    %448 = vst.msk [vmem:[#allocation2 + $0x4] sm:$0x1] %vm447, 0
    %449 = vst.msk [vmem:[#allocation2 + $0x8] sm:$0xf] %vm445, 0
    %450 = vst.msk [vmem:[#allocation2 + $0xc] sm:$0x1] %vm447, 0
    %451 = vst.msk [vmem:[#allocation2 + $0x10] sm:$0xf] %vm445, 0
    %452 = vst.msk [vmem:[#allocation2 + $0x14] sm:$0x1] %vm447, 0
    %453 = vst.msk [vmem:[#allocation2 + $0x18] sm:$0xf] %vm445, 0
    %454 = vst.msk [vmem:[#allocation2 + $0x1c] sm:$0x1] %vm447, 0
    %455 = vst.msk [vmem:[#allocation2 + $0x20] sm:$0xf] %vm445, 0
    %456 = vst.msk [vmem:[#allocation2 + $0x24] sm:$0x1] %vm447, 0
    %457 = vst.msk [vmem:[#allocation2 + $0x28] sm:$0xf] %vm445, 0
    %458 = vst.msk [vmem:[#allocation2 + $0x2c] sm:$0x1] %vm447, 0
    %459 = vst.msk [vmem:[#allocation2 + $0x30] sm:$0xf] %vm445, 0
    %460 = vst.msk [vmem:[#allocation2 + $0x34] sm:$0x1] %vm447, 0
    %461 = vst.msk [vmem:[#allocation2 + $0x38] sm:$0xf] %vm445, 0
    %462 = vst.msk [vmem:[#allocation2 + $0x3c] sm:$0x1] %vm447, 0
    %463 = vst.msk [vmem:[#allocation2 + $0x40] sm:$0xf] %vm445, 0
    %464 = vst.msk [vmem:[#allocation2 + $0x44] sm:$0x1] %vm447, 0
    %465 = vst.msk [vmem:[#allocation2 + $0x48] sm:$0xf] %vm445, 0
    %466 = vst.msk [vmem:[#allocation2 + $0x4c] sm:$0x1] %vm447, 0
    %467 = vst.msk [vmem:[#allocation2 + $0x50] sm:$0xf] %vm445, 0
    %468 = vst.msk [vmem:[#allocation2 + $0x54] sm:$0x1] %vm447, 0
    %469 = vst.msk [vmem:[#allocation2 + $0x58] sm:$0xf] %vm445, 0
    %470 = vst.msk [vmem:[#allocation2 + $0x5c] sm:$0x1] %vm447, 0
    %471 = vst.msk [vmem:[#allocation2 + $0x60] sm:$0xf] %vm445, 0
    %472 = vst.msk [vmem:[#allocation2 + $0x64] sm:$0x1] %vm447, 0
    %473 = vst.msk [vmem:[#allocation2 + $0x68] sm:$0xf] %vm445, 0
    %474 = vst.msk [vmem:[#allocation2 + $0x6c] sm:$0x1] %vm447, 0
    %475 = vst.msk [vmem:[#allocation2 + $0x70] sm:$0xf] %vm445, 0
    %476 = vst.msk [vmem:[#allocation2 + $0x74] sm:$0x1] %vm447, 0
    %477 = vst.msk [vmem:[#allocation2 + $0x78] sm:$0xf] %vm445, 0
    %478 = vst.msk [vmem:[#allocation2 + $0x7c] sm:$0x1] %vm447, 0
    %479 = vst.msk [vmem:[#allocation2 + $0x80] sm:$0xf] %vm445, 0
    %480 = vst.msk [vmem:[#allocation2 + $0x84] sm:$0x1] %vm447, 0
    %481 = vst.msk [vmem:[#allocation2 + $0x88] sm:$0xf] %vm445, 0
    %482 = vst.msk [vmem:[#allocation2 + $0x8c] sm:$0x1] %vm447, 0
    %483 = vst.msk [vmem:[#allocation2 + $0x90] sm:$0xf] %vm445, 0
    %484 = vst.msk [vmem:[#allocation2 + $0x94] sm:$0x1] %vm447, 0
    %485 = vst.msk [vmem:[#allocation2 + $0x98] sm:$0xf] %vm445, 0
    %486 = vst.msk [vmem:[#allocation2 + $0x9c] sm:$0x1] %vm447, 0
    %v487 = vpack.c.bf16 %v429, %v429
    %v488 = vpack.c.bf16 %v430, %v430
    %v489 = vpack.c.bf16 %v431, %v431
    %v490 = vpack.c.bf16 %v432, %v432
    %v491 = vpack.c.bf16 %v433, %v433
    %v492 = vpack.c.bf16 %v434, %v434
    %v493 = vpack.c.bf16 %v435, %v435
    %v494 = vpack.c.bf16 %v436, %v436
    %v495 = vpack.c.bf16 %v437, %v437
    %v496 = vpack.c.bf16 %v438, %v438
    %v497 = vpack.c.bf16 %v439, %v439
    %v498 = vpack.c.bf16 %v440, %v440
    %v499 = vpack.c.bf16 %v441, %v441
    %v500 = vpack.c.bf16 %v442, %v442
    %v501 = vpack.c.bf16 %v443, %v443
    %v502 = vpack.c.bf16 %v444, %v444
    %v519 = vunpack.c.l.b16 %v487
    %v520 = vunpack.c.l.b16 %v488
    %v521 = vunpack.c.l.b16 %v489
    %v522 = vunpack.c.l.b16 %v490
    %v523 = vunpack.c.l.b16 %v491
    %v524 = vunpack.c.l.b16 %v492
    %v525 = vunpack.c.l.b16 %v493
    %v526 = vunpack.c.l.b16 %v494
    %v527 = vunpack.c.l.b16 %v495
    %v528 = vunpack.c.l.b16 %v496
    %v529 = vunpack.c.l.b16 %v497
    %v530 = vunpack.c.l.b16 %v498
    %v531 = vunpack.c.l.b16 %v499
    %v532 = vunpack.c.l.b16 %v500
    %v533 = vunpack.c.l.b16 %v501
    %v534 = vunpack.c.l.b16 %v502
    %v535 = vpack.c.b16 %v519, %v519
    %v536 = vpack.c.b16 %v520, %v520
    %v537 = vpack.c.b16 %v521, %v521
    %v538 = vpack.c.b16 %v522, %v522
    %v539 = vpack.c.b16 %v523, %v523
    %v540 = vpack.c.b16 %v524, %v524
    %v541 = vpack.c.b16 %v525, %v525
    %v542 = vpack.c.b16 %v526, %v526
    %v543 = vpack.c.b16 %v527, %v527
    %v544 = vpack.c.b16 %v528, %v528
    %v545 = vpack.c.b16 %v529, %v529
    %v546 = vpack.c.b16 %v530, %v530
    %v547 = vpack.c.b16 %v531, %v531
    %v548 = vpack.c.b16 %v532, %v532
    %v549 = vpack.c.b16 %v533, %v533
    %v550 = vpack.c.b16 %v534, %v534
    %v552 = vshrl.u32 %v535, 16
    %v554 = vrot.slane %v552, 7
    %v555 = vshll.u32 %v535, 16
    %v557 = vor.u32 %v554, %v555
    %v558 = vrot.slane %v554, 4
    %v560 = vshrl.u32 %v536, 16
    %v562 = vrot.slane %v560, 7
    %v563 = vshll.u32 %v536, 16
    %v565 = vor.u32 %v562, %v563
    %v566 = vrot.slane %v562, 4
    %v568 = vshrl.u32 %v537, 16
    %v570 = vrot.slane %v568, 7
    %v571 = vshll.u32 %v537, 16
    %v573 = vor.u32 %v570, %v571
    %v574 = vrot.slane %v570, 4
    %v576 = vshrl.u32 %v538, 16
    %v578 = vrot.slane %v576, 7
    %v579 = vshll.u32 %v538, 16
    %v581 = vor.u32 %v578, %v579
    %v582 = vrot.slane %v578, 4
    %v584 = vshrl.u32 %v539, 16
    %v586 = vrot.slane %v584, 7
    %v587 = vshll.u32 %v539, 16
    %v589 = vor.u32 %v586, %v587
    %v590 = vrot.slane %v586, 4
    %v592 = vshrl.u32 %v540, 16
    %v594 = vrot.slane %v592, 7
    %v595 = vshll.u32 %v540, 16
    %v597 = vor.u32 %v594, %v595
    %v598 = vrot.slane %v594, 4
    %v600 = vshrl.u32 %v541, 16
    %v602 = vrot.slane %v600, 7
    %v603 = vshll.u32 %v541, 16
    %v605 = vor.u32 %v602, %v603
    %v606 = vrot.slane %v602, 4
    %v608 = vshrl.u32 %v542, 16
    %v610 = vrot.slane %v608, 7
    %v611 = vshll.u32 %v542, 16
    %v613 = vor.u32 %v610, %v611
    %v614 = vrot.slane %v610, 4
    %v616 = vshrl.u32 %v543, 16
    %v618 = vrot.slane %v616, 7
    %v619 = vshll.u32 %v543, 16
    %v621 = vor.u32 %v618, %v619
    %v622 = vrot.slane %v618, 4
    %v624 = vshrl.u32 %v544, 16
    %v626 = vrot.slane %v624, 7
    %v627 = vshll.u32 %v544, 16
    %v629 = vor.u32 %v626, %v627
    %v630 = vrot.slane %v626, 4
    %v632 = vshrl.u32 %v545, 16
    %v634 = vrot.slane %v632, 7
    %v635 = vshll.u32 %v545, 16
    %v637 = vor.u32 %v634, %v635
    %v638 = vrot.slane %v634, 4
    %v640 = vshrl.u32 %v546, 16
    %v642 = vrot.slane %v640, 7
    %v643 = vshll.u32 %v546, 16
    %v645 = vor.u32 %v642, %v643
    %v646 = vrot.slane %v642, 4
    %v648 = vshrl.u32 %v547, 16
    %v650 = vrot.slane %v648, 7
    %v651 = vshll.u32 %v547, 16
    %v653 = vor.u32 %v650, %v651
    %v654 = vrot.slane %v650, 4
    %v656 = vshrl.u32 %v548, 16
    %v658 = vrot.slane %v656, 7
    %v659 = vshll.u32 %v548, 16
    %v661 = vor.u32 %v658, %v659
    %v662 = vrot.slane %v658, 4
    %v664 = vshrl.u32 %v549, 16
    %v666 = vrot.slane %v664, 7
    %v667 = vshll.u32 %v549, 16
    %v669 = vor.u32 %v666, %v667
    %v670 = vrot.slane %v666, 4
    %v672 = vshrl.u32 %v550, 16
    %v674 = vrot.slane %v672, 7
    %v675 = vshll.u32 %v550, 16
    %v677 = vor.u32 %v674, %v675
    %v678 = vrot.slane %v674, 4
    %s711 = scalar_lea.vmem [#allocation2], 8
    %vm712 = vcmask 519168
    %vm713 = vsmask.f32 7938
    %vm714 = vmand %vm712, %vm713
    %v715 = vld [vmem:[%s711] sm:$0xf]
    %v716 = vsel %vm714, %v557, %v715
    %717 = vst [vmem:[%s711] sm:$0xf] %v716
    %vm718 = vcmask 516096
    %vm719 = vsmask.f32 256
    %vm720 = vmand %vm718, %vm719
    %v721 = vld [vmem:[%s711 + $0x4] sm:$0x1]
    %v722 = vsel %vm720, %v558, %v721
    %723 = vst [vmem:[%s711 + $0x4] sm:$0x1] %v722
    %v724 = vld [vmem:[%s711 + $0x8] sm:$0xf]
    %v725 = vsel %vm714, %v565, %v724
    %726 = vst [vmem:[%s711 + $0x8] sm:$0xf] %v725
    %v727 = vld [vmem:[%s711 + $0xc] sm:$0x1]
    %v728 = vsel %vm720, %v566, %v727
    %729 = vst [vmem:[%s711 + $0xc] sm:$0x1] %v728
    %v730 = vld [vmem:[%s711 + $0x10] sm:$0xf]
    %v731 = vsel %vm714, %v573, %v730
    %732 = vst [vmem:[%s711 + $0x10] sm:$0xf] %v731
    %v733 = vld [vmem:[%s711 + $0x14] sm:$0x1]
    %v734 = vsel %vm720, %v574, %v733
    %735 = vst [vmem:[%s711 + $0x14] sm:$0x1] %v734
    %v736 = vld [vmem:[%s711 + $0x18] sm:$0xf]
    %v737 = vsel %vm714, %v581, %v736
    %738 = vst [vmem:[%s711 + $0x18] sm:$0xf] %v737
    %v739 = vld [vmem:[%s711 + $0x1c] sm:$0x1]
    %v740 = vsel %vm720, %v582, %v739
    %741 = vst [vmem:[%s711 + $0x1c] sm:$0x1] %v740
    %v742 = vld [vmem:[%s711 + $0x20] sm:$0xf]
    %v743 = vsel %vm714, %v589, %v742
    %744 = vst [vmem:[%s711 + $0x20] sm:$0xf] %v743
    %v745 = vld [vmem:[%s711 + $0x24] sm:$0x1]
    %v746 = vsel %vm720, %v590, %v745
    %747 = vst [vmem:[%s711 + $0x24] sm:$0x1] %v746
    %v748 = vld [vmem:[%s711 + $0x28] sm:$0xf]
    %v749 = vsel %vm714, %v597, %v748
    %750 = vst [vmem:[%s711 + $0x28] sm:$0xf] %v749
    %v751 = vld [vmem:[%s711 + $0x2c] sm:$0x1]
    %v752 = vsel %vm720, %v598, %v751
    %753 = vst [vmem:[%s711 + $0x2c] sm:$0x1] %v752
    %v754 = vld [vmem:[%s711 + $0x30] sm:$0xf]
    %v755 = vsel %vm714, %v605, %v754
    %756 = vst [vmem:[%s711 + $0x30] sm:$0xf] %v755
    %v757 = vld [vmem:[%s711 + $0x34] sm:$0x1]
    %v758 = vsel %vm720, %v606, %v757
    %759 = vst [vmem:[%s711 + $0x34] sm:$0x1] %v758
    %v760 = vld [vmem:[%s711 + $0x38] sm:$0xf]
    %v761 = vsel %vm714, %v613, %v760
    %762 = vst [vmem:[%s711 + $0x38] sm:$0xf] %v761
    %v763 = vld [vmem:[%s711 + $0x3c] sm:$0x1]
    %v764 = vsel %vm720, %v614, %v763
    %765 = vst [vmem:[%s711 + $0x3c] sm:$0x1] %v764
    %v766 = vld [vmem:[%s711 + $0x50] sm:$0xf]
    %v767 = vsel %vm714, %v621, %v766
    %768 = vst [vmem:[%s711 + $0x50] sm:$0xf] %v767
    %v769 = vld [vmem:[%s711 + $0x54] sm:$0x1]
    %v770 = vsel %vm720, %v622, %v769
    %771 = vst [vmem:[%s711 + $0x54] sm:$0x1] %v770
    %v772 = vld [vmem:[%s711 + $0x58] sm:$0xf]
    %v773 = vsel %vm714, %v629, %v772
    %774 = vst [vmem:[%s711 + $0x58] sm:$0xf] %v773
    %v775 = vld [vmem:[%s711 + $0x5c] sm:$0x1]
    %v776 = vsel %vm720, %v630, %v775
    %777 = vst [vmem:[%s711 + $0x5c] sm:$0x1] %v776
    %v778 = vld [vmem:[%s711 + $0x60] sm:$0xf]
    %v779 = vsel %vm714, %v637, %v778
    %780 = vst [vmem:[%s711 + $0x60] sm:$0xf] %v779
    %v781 = vld [vmem:[%s711 + $0x64] sm:$0x1]
    %v782 = vsel %vm720, %v638, %v781
    %783 = vst [vmem:[%s711 + $0x64] sm:$0x1] %v782
    %v784 = vld [vmem:[%s711 + $0x68] sm:$0xf]
    %v785 = vsel %vm714, %v645, %v784
    %786 = vst [vmem:[%s711 + $0x68] sm:$0xf] %v785
    %v787 = vld [vmem:[%s711 + $0x6c] sm:$0x1]
    %v788 = vsel %vm720, %v646, %v787
    %789 = vst [vmem:[%s711 + $0x6c] sm:$0x1] %v788
    %v790 = vld [vmem:[%s711 + $0x70] sm:$0xf]
    %v791 = vsel %vm714, %v653, %v790
    %792 = vst [vmem:[%s711 + $0x70] sm:$0xf] %v791
    %v793 = vld [vmem:[%s711 + $0x74] sm:$0x1]
    %v794 = vsel %vm720, %v654, %v793
    %795 = vst [vmem:[%s711 + $0x74] sm:$0x1] %v794
    %v796 = vld [vmem:[%s711 + $0x78] sm:$0xf]
    %v797 = vsel %vm714, %v661, %v796
    %798 = vst [vmem:[%s711 + $0x78] sm:$0xf] %v797
    %v799 = vld [vmem:[%s711 + $0x7c] sm:$0x1]
    %v800 = vsel %vm720, %v662, %v799
    %801 = vst [vmem:[%s711 + $0x7c] sm:$0x1] %v800
    %v802 = vld [vmem:[%s711 + $0x80] sm:$0xf]
    %v803 = vsel %vm714, %v669, %v802
    %804 = vst [vmem:[%s711 + $0x80] sm:$0xf] %v803
    %v805 = vld [vmem:[%s711 + $0x84] sm:$0x1]
    %v806 = vsel %vm720, %v670, %v805
    %807 = vst [vmem:[%s711 + $0x84] sm:$0x1] %v806
    %v808 = vld [vmem:[%s711 + $0x88] sm:$0xf]
    %v809 = vsel %vm714, %v677, %v808
    %810 = vst [vmem:[%s711 + $0x88] sm:$0xf] %v809
    %v811 = vld [vmem:[%s711 + $0x8c] sm:$0x1]
    %v812 = vsel %vm720, %v678, %v811
    %813 = vst [vmem:[%s711 + $0x8c] sm:$0x1] %v812
    %v814 = vld [vmem:[#allocation2] sm:$0xf]
    %v815 = vld [vmem:[#allocation2 + $0x8] sm:$0xf]
    %v816 = vld [vmem:[#allocation2 + $0x10] sm:$0xf]
    %v817 = vld [vmem:[#allocation2 + $0x18] sm:$0xf]
    %v818 = vld [vmem:[#allocation2 + $0x20] sm:$0xf]
    %v819 = vld [vmem:[#allocation2 + $0x28] sm:$0xf]
    %v820 = vld [vmem:[#allocation2 + $0x30] sm:$0xf]
    %v821 = vld [vmem:[#allocation2 + $0x38] sm:$0xf]
    %v822 = vld [vmem:[#allocation2 + $0x50] sm:$0xf]
    %v823 = vld [vmem:[#allocation2 + $0x58] sm:$0xf]
    %v824 = vld [vmem:[#allocation2 + $0x60] sm:$0xf]
    %v825 = vld [vmem:[#allocation2 + $0x68] sm:$0xf]
    %v826 = vld [vmem:[#allocation2 + $0x70] sm:$0xf]
    %v827 = vld [vmem:[#allocation2 + $0x78] sm:$0xf]
    %v828 = vld [vmem:[#allocation2 + $0x80] sm:$0xf]
    %v829 = vld [vmem:[#allocation2 + $0x88] sm:$0xf]
    %v830 = vld [vmem:[%s4] sm:$0xf]
    %v831 = vld [vmem:[%s4 + $0x4] sm:$0xf]
    %v832 = vld [vmem:[%s4 + $0x8] sm:$0xf]
    %v833 = vld [vmem:[%s4 + $0xc] sm:$0xf]
    %v834 = vld [vmem:[%s4 + $0x10] sm:$0xf]
    %v835 = vld [vmem:[%s4 + $0x14] sm:$0xf]
    %v836 = vld [vmem:[%s4 + $0x18] sm:$0xf]
    %v837 = vld [vmem:[%s4 + $0x1c] sm:$0xf]
    %v838 = vld [vmem:[#allocation2 + $0x4] sm:$0x1]
    %v839 = vld [vmem:[#allocation2 + $0xc] sm:$0x1]
    %v840 = vld [vmem:[#allocation2 + $0x14] sm:$0x1]
    %v841 = vld [vmem:[#allocation2 + $0x1c] sm:$0x1]
    %v842 = vld [vmem:[#allocation2 + $0x24] sm:$0x1]
    %v843 = vld [vmem:[#allocation2 + $0x2c] sm:$0x1]
    %v844 = vld [vmem:[#allocation2 + $0x34] sm:$0x1]
    %v845 = vld [vmem:[#allocation2 + $0x3c] sm:$0x1]
    %v846 = vld [vmem:[#allocation2 + $0x54] sm:$0x1]
    %v847 = vld [vmem:[#allocation2 + $0x5c] sm:$0x1]
    %v848 = vld [vmem:[#allocation2 + $0x64] sm:$0x1]
    %v849 = vld [vmem:[#allocation2 + $0x6c] sm:$0x1]
    %v850 = vld [vmem:[#allocation2 + $0x74] sm:$0x1]
    %v851 = vld [vmem:[#allocation2 + $0x7c] sm:$0x1]
    %v852 = vld [vmem:[#allocation2 + $0x84] sm:$0x1]
    %v853 = vld [vmem:[#allocation2 + $0x8c] sm:$0x1]
    %vm854 = vsmask.f32 3328
    %vm855 = vsmask.f32 7440
    %vm856 = vmor %vm854, %vm855
    %v858 = vshrl.u32 %v814, 16
    %v860 = vrot.slane %v858, 4
    %v861 = vshll.u32 %v814, 16
    %v863 = vrot.slane %v861, 5
    %v864 = vor.u32 %v860, %v863
    %v865 = vrot.slane %v864, 4
    %v867 = vshll.u32 %v838, 16
    %v869 = vrot.slane %v867, 5
    %v870 = vsel %vm856, %v865, %v869
    %v872 = vshrl.u32 %v815, 16
    %v874 = vrot.slane %v872, 4
    %v875 = vshll.u32 %v815, 16
    %v877 = vrot.slane %v875, 5
    %v878 = vor.u32 %v874, %v877
    %v879 = vrot.slane %v878, 4
    %v881 = vshll.u32 %v839, 16
    %v883 = vrot.slane %v881, 5
    %v884 = vsel %vm856, %v879, %v883
    %v886 = vshrl.u32 %v816, 16
    %v888 = vrot.slane %v886, 4
    %v889 = vshll.u32 %v816, 16
    %v891 = vrot.slane %v889, 5
    %v892 = vor.u32 %v888, %v891
    %v893 = vrot.slane %v892, 4
    %v895 = vshll.u32 %v840, 16
    %v897 = vrot.slane %v895, 5
    %v898 = vsel %vm856, %v893, %v897
    %v900 = vshrl.u32 %v817, 16
    %v902 = vrot.slane %v900, 4
    %v903 = vshll.u32 %v817, 16
    %v905 = vrot.slane %v903, 5
    %v906 = vor.u32 %v902, %v905
    %v907 = vrot.slane %v906, 4
    %v909 = vshll.u32 %v841, 16
    %v911 = vrot.slane %v909, 5
    %v912 = vsel %vm856, %v907, %v911
    %v914 = vshrl.u32 %v818, 16
    %v916 = vrot.slane %v914, 4
    %v917 = vshll.u32 %v818, 16
    %v919 = vrot.slane %v917, 5
    %v920 = vor.u32 %v916, %v919
    %v921 = vrot.slane %v920, 4
    %v923 = vshll.u32 %v842, 16
    %v925 = vrot.slane %v923, 5
    %v926 = vsel %vm856, %v921, %v925
    %v928 = vshrl.u32 %v819, 16
    %v930 = vrot.slane %v928, 4
    %v931 = vshll.u32 %v819, 16
    %v933 = vrot.slane %v931, 5
    %v934 = vor.u32 %v930, %v933
    %v935 = vrot.slane %v934, 4
    %v937 = vshll.u32 %v843, 16
    %v939 = vrot.slane %v937, 5
    %v940 = vsel %vm856, %v935, %v939
    %v942 = vshrl.u32 %v820, 16
    %v944 = vrot.slane %v942, 4
    %v945 = vshll.u32 %v820, 16
    %v947 = vrot.slane %v945, 5
    %v948 = vor.u32 %v944, %v947
    %v949 = vrot.slane %v948, 4
    %v951 = vshll.u32 %v844, 16
    %v953 = vrot.slane %v951, 5
    %v954 = vsel %vm856, %v949, %v953
    %v956 = vshrl.u32 %v821, 16
    %v958 = vrot.slane %v956, 4
    %v959 = vshll.u32 %v821, 16
    %v961 = vrot.slane %v959, 5
    %v962 = vor.u32 %v958, %v961
    %v963 = vrot.slane %v962, 4
    %v965 = vshll.u32 %v845, 16
    %v967 = vrot.slane %v965, 5
    %v968 = vsel %vm856, %v963, %v967
    %v970 = vshrl.u32 %v822, 16
    %v972 = vrot.slane %v970, 4
    %v973 = vshll.u32 %v822, 16
    %v975 = vrot.slane %v973, 5
    %v976 = vor.u32 %v972, %v975
    %v977 = vrot.slane %v976, 4
    %v979 = vshll.u32 %v846, 16
    %v981 = vrot.slane %v979, 5
    %v982 = vsel %vm856, %v977, %v981
    %v984 = vshrl.u32 %v823, 16
    %v986 = vrot.slane %v984, 4
    %v987 = vshll.u32 %v823, 16
    %v989 = vrot.slane %v987, 5
    %v990 = vor.u32 %v986, %v989
    %v991 = vrot.slane %v990, 4
    %v993 = vshll.u32 %v847, 16
    %v995 = vrot.slane %v993, 5
    %v996 = vsel %vm856, %v991, %v995
    %v998 = vshrl.u32 %v824, 16
    %v1000 = vrot.slane %v998, 4
    %v1001 = vshll.u32 %v824, 16
    %v1003 = vrot.slane %v1001, 5
    %v1004 = vor.u32 %v1000, %v1003
    %v1005 = vrot.slane %v1004, 4
    %v1007 = vshll.u32 %v848, 16
    %v1009 = vrot.slane %v1007, 5
    %v1010 = vsel %vm856, %v1005, %v1009
    %v1012 = vshrl.u32 %v825, 16
    %v1014 = vrot.slane %v1012, 4
    %v1015 = vshll.u32 %v825, 16
    %v1017 = vrot.slane %v1015, 5
    %v1018 = vor.u32 %v1014, %v1017
    %v1019 = vrot.slane %v1018, 4
    %v1021 = vshll.u32 %v849, 16
    %v1023 = vrot.slane %v1021, 5
    %v1024 = vsel %vm856, %v1019, %v1023
    %v1026 = vshrl.u32 %v826, 16
    %v1028 = vrot.slane %v1026, 4
    %v1029 = vshll.u32 %v826, 16
    %v1031 = vrot.slane %v1029, 5
    %v1032 = vor.u32 %v1028, %v1031
    %v1033 = vrot.slane %v1032, 4
    %v1035 = vshll.u32 %v850, 16
    %v1037 = vrot.slane %v1035, 5
    %v1038 = vsel %vm856, %v1033, %v1037
    %v1040 = vshrl.u32 %v827, 16
    %v1042 = vrot.slane %v1040, 4
    %v1043 = vshll.u32 %v827, 16
    %v1045 = vrot.slane %v1043, 5
    %v1046 = vor.u32 %v1042, %v1045
    %v1047 = vrot.slane %v1046, 4
    %v1049 = vshll.u32 %v851, 16
    %v1051 = vrot.slane %v1049, 5
    %v1052 = vsel %vm856, %v1047, %v1051
    %v1054 = vshrl.u32 %v828, 16
    %v1056 = vrot.slane %v1054, 4
    %v1057 = vshll.u32 %v828, 16
    %v1059 = vrot.slane %v1057, 5
    %v1060 = vor.u32 %v1056, %v1059
    %v1061 = vrot.slane %v1060, 4
    %v1063 = vshll.u32 %v852, 16
    %v1065 = vrot.slane %v1063, 5
    %v1066 = vsel %vm856, %v1061, %v1065
    %v1068 = vshrl.u32 %v829, 16
    %v1070 = vrot.slane %v1068, 4
    %v1071 = vshll.u32 %v829, 16
    %v1073 = vrot.slane %v1071, 5
    %v1074 = vor.u32 %v1070, %v1073
    %v1075 = vrot.slane %v1074, 4
    %v1077 = vshll.u32 %v853, 16
    %v1079 = vrot.slane %v1077, 5
    %v1080 = vsel %vm856, %v1075, %v1079
    %s1081 = scalar_lea.vmem %s4, 32
    %v1082 = vld [vmem:[%s1081] sm:$0xf]
    %v1083 = vld [vmem:[%s1081 + $0x4] sm:$0xf]
    %v1084 = vld [vmem:[%s1081 + $0x8] sm:$0xf]
    %v1085 = vld [vmem:[%s1081 + $0xc] sm:$0xf]
    %v1086 = vld [vmem:[%s1081 + $0x10] sm:$0xf]
    %v1087 = vld [vmem:[%s1081 + $0x14] sm:$0xf]
    %v1088 = vld [vmem:[%s1081 + $0x18] sm:$0xf]
    %v1089 = vld [vmem:[%s1081 + $0x1c] sm:$0xf]
    %v1090 = vunpack.c.l.b16 %v870
    %v1091 = vunpack.c.l.b16 %v884
    %v1092 = vunpack.c.l.b16 %v898
    %v1093 = vunpack.c.l.b16 %v912
    %v1094 = vunpack.c.l.b16 %v926
    %v1095 = vunpack.c.l.b16 %v940
    %v1096 = vunpack.c.l.b16 %v954
    %v1097 = vunpack.c.l.b16 %v968
    %v1098 = vunpack.c.l.b16 %v982
    %v1099 = vunpack.c.l.b16 %v996
    %v1100 = vunpack.c.l.b16 %v1010
    %v1101 = vunpack.c.l.b16 %v1024
    %v1102 = vunpack.c.l.b16 %v1038
    %v1103 = vunpack.c.l.b16 %v1052
    %v1104 = vunpack.c.l.b16 %v1066
    %v1105 = vunpack.c.l.b16 %v1080
    %v1106 = vpack.c.b16 %v1091, %v1090
    %v1107 = vpack.c.b16 %v1093, %v1092
    %v1108 = vpack.c.b16 %v1095, %v1094
    %v1109 = vpack.c.b16 %v1097, %v1096
    %v1110 = vpack.c.b16 %v1099, %v1098
    %v1111 = vpack.c.b16 %v1101, %v1100
    %v1112 = vpack.c.b16 %v1103, %v1102
    %v1113 = vpack.c.b16 %v1105, %v1104
    %v1122 = vunpack.c.l.b16 %v1082
    %v1123 = vunpack.c.l.b16 %v1083
    %v1124 = vunpack.c.l.b16 %v1084
    %v1125 = vunpack.c.l.b16 %v1085
    %v1126 = vunpack.c.l.b16 %v1086
    %v1127 = vunpack.c.l.b16 %v1087
    %v1128 = vunpack.c.l.b16 %v1088
    %v1129 = vunpack.c.l.b16 %v1089
    %v1130 = vpack.c.b16 %v1123, %v1122
    %v1131 = vpack.c.b16 %v1125, %v1124
    %v1132 = vpack.c.b16 %v1127, %v1126
    %v1133 = vpack.c.b16 %v1129, %v1128
    %v1139 = vsel %vm134, %v1106, 0
    %v1142 = vsel %vm134, %v1107, 0
    %v1145 = vsel %vm134, %v1108, 0
    %v1148 = vsel %vm134, %v1109, 0
    %v1151 = vsel %vm134, %v1110, 0
    %v1154 = vsel %vm134, %v1111, 0
    %v1157 = vsel %vm134, %v1112, 0
    %v1160 = vsel %vm134, %v1113, 0
    %1162 = vmatprep.subr.bf16.mxu0 0
    %1163 = vmatpush1.bf16.msra.mxu0 %v1130
    %1164 = vmatprep.subr.bf16.mxu0 0
    %1165 = vmatpush1.bf16.msra.mxu0 %v1131
    %1166 = vmatprep.subr.bf16.mxu0 0
    %1167 = vmatpush1.bf16.msra.mxu0 %v1132
    %1168 = vmatprep.subr.bf16.mxu0 0
    %1169 = vmatpush1.bf16.msra.mxu0 %v1133
    %1170 = vmatprep.subr.bf16.mxu0 0
    %1171 = vmatpush1.bf16.msra.mxu0 0
    %1172 = vmatprep.subr.bf16.mxu0 0
    %1173 = vmatpush1.bf16.msra.mxu0 0
    %1174 = vmatprep.subr.bf16.mxu0 0
    %1175 = vmatpush1.bf16.msra.mxu0 0
    %1176 = vmatprep.subr.bf16.mxu0 0
    %1177 = vmatpush1.bf16.msra.mxu0 0
    %1178 = vmatprep.subr.bf16.mxu0 0
    %1179 = vmatpush1.bf16.msra.mxu0 0
    %1180 = vmatprep.subr.bf16.mxu0 0
    %1181 = vmatpush1.bf16.msra.mxu0 0
    %1182 = vmatprep.subr.bf16.mxu0 0
    %1183 = vmatpush1.bf16.msra.mxu0 0
    %1184 = vmatprep.subr.bf16.mxu0 0
    %1185 = vmatpush1.bf16.msra.mxu0 0
    %1186 = vmatprep.subr.bf16.mxu0 0
    %1187 = vmatpush1.bf16.msra.mxu0 0
    %1188 = vmatprep.subr.bf16.mxu0 0
    %1189 = vmatpush1.bf16.msra.mxu0 0
    %1190 = vmatprep.subr.bf16.mxu0 0
    %1191 = vmatpush1.bf16.msra.mxu0 0
    %1192 = vmatprep.subr.bf16.mxu0 0
    %1193 = vmatpush1.bf16.msra.mxu0 0
    %1194 = vmatprep.mubr.bf16.mxu0 0
    %1195 = vmatmul.mubr.bf16.gmra.mrb[0].mxu0 %v1139
    %v1196 = vpop.f32.mrb[0].mxu0
    %v1197 = vadd.f32 0.0, %v1196
    %v1198 = vpop.f32.mrb[0].mxu0
    %v1199 = vpop.f32.mrb[0].mxu0
    %v1200 = vadd.f32 0.0, %v1199
    %v1201 = vpop.f32.mrb[0].mxu0
    %1202 = vmatprep.mubr.bf16.mxu0 0
    %1203 = vmatmul.mubr.bf16.gmra.mrb[0].mxu0 %v1142
    %v1204 = vpop.f32.mrb[0].mxu0
    %v1205 = vadd.f32 0.0, %v1204
    %v1206 = vpop.f32.mrb[0].mxu0
    %v1207 = vpop.f32.mrb[0].mxu0
    %v1208 = vadd.f32 0.0, %v1207
    %v1209 = vpop.f32.mrb[0].mxu0
    %1210 = vmatprep.mubr.bf16.mxu0 0
    %1211 = vmatmul.mubr.bf16.gmra.mrb[0].mxu0 %v1145
    %v1212 = vpop.f32.mrb[0].mxu0
    %v1213 = vadd.f32 0.0, %v1212
    %v1214 = vpop.f32.mrb[0].mxu0
    %v1215 = vpop.f32.mrb[0].mxu0
    %v1216 = vadd.f32 0.0, %v1215
    %v1217 = vpop.f32.mrb[0].mxu0
    %1218 = vmatprep.mubr.bf16.mxu0 0
    %1219 = vmatmul.mubr.bf16.gmra.mrb[0].mxu0 %v1148
    %v1220 = vpop.f32.mrb[0].mxu0
    %v1221 = vadd.f32 0.0, %v1220
    %v1222 = vpop.f32.mrb[0].mxu0
    %v1223 = vpop.f32.mrb[0].mxu0
    %v1224 = vadd.f32 0.0, %v1223
    %v1225 = vpop.f32.mrb[0].mxu0
    %1226 = vmatprep.mubr.bf16.mxu0 0
    %1227 = vmatmul.mubr.bf16.gmra.mrb[0].mxu0 %v1151
    %v1228 = vpop.f32.mrb[0].mxu0
    %v1229 = vadd.f32 0.0, %v1228
    %v1230 = vpop.f32.mrb[0].mxu0
    %v1231 = vpop.f32.mrb[0].mxu0
    %v1232 = vadd.f32 0.0, %v1231
    %v1233 = vpop.f32.mrb[0].mxu0
    %1234 = vmatprep.mubr.bf16.mxu0 0
    %1235 = vmatmul.mubr.bf16.gmra.mrb[0].mxu0 %v1154
    %v1236 = vpop.f32.mrb[0].mxu0
    %v1237 = vadd.f32 0.0, %v1236
    %v1238 = vpop.f32.mrb[0].mxu0
    %v1239 = vpop.f32.mrb[0].mxu0
    %v1240 = vadd.f32 0.0, %v1239
    %v1241 = vpop.f32.mrb[0].mxu0
    %1242 = vmatprep.mubr.bf16.mxu0 0
    %1243 = vmatmul.mubr.bf16.gmra.mrb[0].mxu0 %v1157
    %v1244 = vpop.f32.mrb[0].mxu0
    %v1245 = vadd.f32 0.0, %v1244
    %v1246 = vpop.f32.mrb[0].mxu0
    %v1247 = vpop.f32.mrb[0].mxu0
    %v1248 = vadd.f32 0.0, %v1247
    %v1249 = vpop.f32.mrb[0].mxu0
    %1250 = vmatprep.mubr.bf16.mxu0 0
    %1251 = vmatmul.mubr.bf16.gmra.mrb[0].mxu0 %v1160
    %v1252 = vpop.f32.mrb[0].mxu0
    %v1253 = vadd.f32 0.0, %v1252
    %v1254 = vpop.f32.mrb[0].mxu0
    %v1255 = vpop.f32.mrb[0].mxu0
    %v1256 = vadd.f32 0.0, %v1255
    %v1257 = vpop.f32.mrb[0].mxu0
    %1258 = vdwg.mxu0
    %v1275 = vunpack.c.l.b16 %v814
    %v1276 = vunpack.c.l.b16 %v815
    %v1277 = vunpack.c.l.b16 %v816
    %v1278 = vunpack.c.l.b16 %v817
    %v1279 = vunpack.c.l.b16 %v818
    %v1280 = vunpack.c.l.b16 %v819
    %v1281 = vunpack.c.l.b16 %v820
    %v1282 = vunpack.c.l.b16 %v821
    %v1283 = vunpack.c.l.b16 %v822
    %v1284 = vunpack.c.l.b16 %v823
    %v1285 = vunpack.c.l.b16 %v824
    %v1286 = vunpack.c.l.b16 %v825
    %v1287 = vunpack.c.l.b16 %v826
    %v1288 = vunpack.c.l.b16 %v827
    %v1289 = vunpack.c.l.b16 %v828
    %v1290 = vunpack.c.l.b16 %v829
    %v1291 = vpack.c.b16 %v1276, %v1275
    %v1292 = vpack.c.b16 %v1278, %v1277
    %v1293 = vpack.c.b16 %v1280, %v1279
    %v1294 = vpack.c.b16 %v1282, %v1281
    %v1295 = vpack.c.b16 %v1284, %v1283
    %v1296 = vpack.c.b16 %v1286, %v1285
    %v1297 = vpack.c.b16 %v1288, %v1287
    %v1298 = vpack.c.b16 %v1290, %v1289
    %v1307 = vunpack.c.l.b16 %v830
    %v1308 = vunpack.c.l.b16 %v831
    %v1309 = vunpack.c.l.b16 %v832
    %v1310 = vunpack.c.l.b16 %v833
    %v1311 = vunpack.c.l.b16 %v834
    %v1312 = vunpack.c.l.b16 %v835
    %v1313 = vunpack.c.l.b16 %v836
    %v1314 = vunpack.c.l.b16 %v837
    %v1315 = vpack.c.b16 %v1308, %v1307
    %v1316 = vpack.c.b16 %v1310, %v1309
    %v1317 = vpack.c.b16 %v1312, %v1311
    %v1318 = vpack.c.b16 %v1314, %v1313
    %v1324 = vsel %vm134, %v1291, 0
    %v1327 = vsel %vm134, %v1292, 0
    %v1330 = vsel %vm134, %v1293, 0
    %v1333 = vsel %vm134, %v1294, 0
    %v1336 = vsel %vm134, %v1295, 0
    %v1339 = vsel %vm134, %v1296, 0
    %v1342 = vsel %vm134, %v1297, 0
    %v1345 = vsel %vm134, %v1298, 0
    %1347 = vmatprep.subr.bf16.mxu0 0
    %1348 = vmatpush1.bf16.msra.mxu0 %v1315
    %1349 = vmatprep.subr.bf16.mxu0 0
    %1350 = vmatpush1.bf16.msra.mxu0 %v1316
    %1351 = vmatprep.subr.bf16.mxu0 0
    %1352 = vmatpush1.bf16.msra.mxu0 %v1317
    %1353 = vmatprep.subr.bf16.mxu0 0
    %1354 = vmatpush1.bf16.msra.mxu0 %v1318
    %1355 = vmatprep.subr.bf16.mxu0 0
    %1356 = vmatpush1.bf16.msra.mxu0 0
    %1357 = vmatprep.subr.bf16.mxu0 0
    %1358 = vmatpush1.bf16.msra.mxu0 0
    %1359 = vmatprep.subr.bf16.mxu0 0
    %1360 = vmatpush1.bf16.msra.mxu0 0
    %1361 = vmatprep.subr.bf16.mxu0 0
    %1362 = vmatpush1.bf16.msra.mxu0 0
    %1363 = vmatprep.subr.bf16.mxu0 0
    %1364 = vmatpush1.bf16.msra.mxu0 0
    %1365 = vmatprep.subr.bf16.mxu0 0
    %1366 = vmatpush1.bf16.msra.mxu0 0
    %1367 = vmatprep.subr.bf16.mxu0 0
    %1368 = vmatpush1.bf16.msra.mxu0 0
    %1369 = vmatprep.subr.bf16.mxu0 0
    %1370 = vmatpush1.bf16.msra.mxu0 0
    %1371 = vmatprep.subr.bf16.mxu0 0
    %1372 = vmatpush1.bf16.msra.mxu0 0
    %1373 = vmatprep.subr.bf16.mxu0 0
    %1374 = vmatpush1.bf16.msra.mxu0 0
    %1375 = vmatprep.subr.bf16.mxu0 0
    %1376 = vmatpush1.bf16.msra.mxu0 0
    %1377 = vmatprep.subr.bf16.mxu0 0
    %1378 = vmatpush1.bf16.msra.mxu0 0
    %1379 = vmatprep.mubr.bf16.mxu0 0
    %1380 = vmatmul.mubr.bf16.gmra.mrb[0].mxu0 %v1324
    %v1381 = vpop.f32.mrb[0].mxu0
    %v1382 = vadd.f32 %v1197, %v1381
    %v1383 = vpop.f32.mrb[0].mxu0
    %v1384 = vpop.f32.mrb[0].mxu0
    %v1385 = vadd.f32 %v1200, %v1384
    %v1386 = vpop.f32.mrb[0].mxu0
    %1387 = vmatprep.mubr.bf16.mxu0 0
    %1388 = vmatmul.mubr.bf16.gmra.mrb[0].mxu0 %v1327
    %v1389 = vpop.f32.mrb[0].mxu0
    %v1390 = vadd.f32 %v1205, %v1389
    %v1391 = vpop.f32.mrb[0].mxu0
    %v1392 = vpop.f32.mrb[0].mxu0
    %v1393 = vadd.f32 %v1208, %v1392
    %v1394 = vpop.f32.mrb[0].mxu0
    %1395 = vmatprep.mubr.bf16.mxu0 0
    %1396 = vmatmul.mubr.bf16.gmra.mrb[0].mxu0 %v1330
    %v1397 = vpop.f32.mrb[0].mxu0
    %v1398 = vadd.f32 %v1213, %v1397
    %v1399 = vpop.f32.mrb[0].mxu0
    %v1400 = vpop.f32.mrb[0].mxu0
    %v1401 = vadd.f32 %v1216, %v1400
    %v1402 = vpop.f32.mrb[0].mxu0
    %1403 = vmatprep.mubr.bf16.mxu0 0
    %1404 = vmatmul.mubr.bf16.gmra.mrb[0].mxu0 %v1333
    %v1405 = vpop.f32.mrb[0].mxu0
    %v1406 = vadd.f32 %v1221, %v1405
    %v1407 = vpop.f32.mrb[0].mxu0
    %v1408 = vpop.f32.mrb[0].mxu0
    %v1409 = vadd.f32 %v1224, %v1408
    %v1410 = vpop.f32.mrb[0].mxu0
    %1411 = vmatprep.mubr.bf16.mxu0 0
    %1412 = vmatmul.mubr.bf16.gmra.mrb[0].mxu0 %v1336
    %v1413 = vpop.f32.mrb[0].mxu0
    %v1414 = vadd.f32 %v1229, %v1413
    %v1415 = vpop.f32.mrb[0].mxu0
    %v1416 = vpop.f32.mrb[0].mxu0
    %v1417 = vadd.f32 %v1232, %v1416
    %v1418 = vpop.f32.mrb[0].mxu0
    %1419 = vmatprep.mubr.bf16.mxu0 0
    %1420 = vmatmul.mubr.bf16.gmra.mrb[0].mxu0 %v1339
    %v1421 = vpop.f32.mrb[0].mxu0
    %v1422 = vadd.f32 %v1237, %v1421
    %v1423 = vpop.f32.mrb[0].mxu0
    %v1424 = vpop.f32.mrb[0].mxu0
    %v1425 = vadd.f32 %v1240, %v1424
    %v1426 = vpop.f32.mrb[0].mxu0
    %1427 = vmatprep.mubr.bf16.mxu0 0
    %1428 = vmatmul.mubr.bf16.gmra.mrb[0].mxu0 %v1342
    %v1429 = vpop.f32.mrb[0].mxu0
    %v1430 = vadd.f32 %v1245, %v1429
    %v1431 = vpop.f32.mrb[0].mxu0
    %v1432 = vpop.f32.mrb[0].mxu0
    %v1433 = vadd.f32 %v1248, %v1432
    %v1434 = vpop.f32.mrb[0].mxu0
    %1435 = vmatprep.mubr.bf16.mxu0 0
    %1436 = vmatmul.mubr.bf16.gmra.mrb[0].mxu0 %v1345
    %v1437 = vpop.f32.mrb[0].mxu0
    %v1438 = vadd.f32 %v1253, %v1437
    %v1439 = vpop.f32.mrb[0].mxu0
    %v1440 = vpop.f32.mrb[0].mxu0
    %v1441 = vadd.f32 %v1256, %v1440
    %v1442 = vpop.f32.mrb[0].mxu0
    %1443 = vdwg.mxu0
    %v1444 = vld [vmem:[#allocation2] sm:$0xe]
    %v1445 = vld [vmem:[#allocation2 + $0x8] sm:$0xe]
    %v1446 = vld [vmem:[#allocation2 + $0x10] sm:$0xe]
    %v1447 = vld [vmem:[#allocation2 + $0x18] sm:$0xe]
    %v1448 = vld [vmem:[#allocation2 + $0x20] sm:$0xe]
    %v1449 = vld [vmem:[#allocation2 + $0x28] sm:$0xe]
    %v1450 = vld [vmem:[#allocation2 + $0x30] sm:$0xe]
    %v1451 = vld [vmem:[#allocation2 + $0x38] sm:$0xe]
    %v1452 = vld [vmem:[#allocation2 + $0x50] sm:$0xe]
    %v1453 = vld [vmem:[#allocation2 + $0x58] sm:$0xe]
    %v1454 = vld [vmem:[#allocation2 + $0x60] sm:$0xe]
    %v1455 = vld [vmem:[#allocation2 + $0x68] sm:$0xe]
    %v1456 = vld [vmem:[#allocation2 + $0x70] sm:$0xe]
    %v1457 = vld [vmem:[#allocation2 + $0x78] sm:$0xe]
    %v1458 = vld [vmem:[#allocation2 + $0x80] sm:$0xe]
    %v1459 = vld [vmem:[#allocation2 + $0x88] sm:$0xe]
    %vm1492 = vcmask 1042432
    %vm1493 = vcmask 1046532
    %vm1494 = vmor %vm1492, %vm1493
    %v1495 = vrot.slane %v1444, 5
    %v1496 = vrot.slane %v1495, 4
    %v1497 = vrot.slane %v838, 5
    %v1498 = vsel %vm1494, %v1496, %v1497
    %v1499 = vrot.slane %v1445, 5
    %v1500 = vrot.slane %v1499, 4
    %v1501 = vrot.slane %v839, 5
    %v1502 = vsel %vm1494, %v1500, %v1501
    %v1503 = vrot.slane %v1446, 5
    %v1504 = vrot.slane %v1503, 4
    %v1505 = vrot.slane %v840, 5
    %v1506 = vsel %vm1494, %v1504, %v1505
    %v1507 = vrot.slane %v1447, 5
    %v1508 = vrot.slane %v1507, 4
    %v1509 = vrot.slane %v841, 5
    %v1510 = vsel %vm1494, %v1508, %v1509
    %v1511 = vrot.slane %v1448, 5
    %v1512 = vrot.slane %v1511, 4
    %v1513 = vrot.slane %v842, 5
    %v1514 = vsel %vm1494, %v1512, %v1513
    %v1515 = vrot.slane %v1449, 5
    %v1516 = vrot.slane %v1515, 4
    %v1517 = vrot.slane %v843, 5
    %v1518 = vsel %vm1494, %v1516, %v1517
    %v1519 = vrot.slane %v1450, 5
    %v1520 = vrot.slane %v1519, 4
    %v1521 = vrot.slane %v844, 5
    %v1522 = vsel %vm1494, %v1520, %v1521
    %v1523 = vrot.slane %v1451, 5
    %v1524 = vrot.slane %v1523, 4
    %v1525 = vrot.slane %v845, 5
    %v1526 = vsel %vm1494, %v1524, %v1525
    %v1527 = vrot.slane %v1452, 5
    %v1528 = vrot.slane %v1527, 4
    %v1529 = vrot.slane %v846, 5
    %v1530 = vsel %vm1494, %v1528, %v1529
    %v1531 = vrot.slane %v1453, 5
    %v1532 = vrot.slane %v1531, 4
    %v1533 = vrot.slane %v847, 5
    %v1534 = vsel %vm1494, %v1532, %v1533
    %v1535 = vrot.slane %v1454, 5
    %v1536 = vrot.slane %v1535, 4
    %v1537 = vrot.slane %v848, 5
    %v1538 = vsel %vm1494, %v1536, %v1537
    %v1539 = vrot.slane %v1455, 5
    %v1540 = vrot.slane %v1539, 4
    %v1541 = vrot.slane %v849, 5
    %v1542 = vsel %vm1494, %v1540, %v1541
    %v1543 = vrot.slane %v1456, 5
    %v1544 = vrot.slane %v1543, 4
    %v1545 = vrot.slane %v850, 5
    %v1546 = vsel %vm1494, %v1544, %v1545
    %v1547 = vrot.slane %v1457, 5
    %v1548 = vrot.slane %v1547, 4
    %v1549 = vrot.slane %v851, 5
    %v1550 = vsel %vm1494, %v1548, %v1549
    %v1551 = vrot.slane %v1458, 5
    %v1552 = vrot.slane %v1551, 4
    %v1553 = vrot.slane %v852, 5
    %v1554 = vsel %vm1494, %v1552, %v1553
    %v1555 = vrot.slane %v1459, 5
    %v1556 = vrot.slane %v1555, 4
    %v1557 = vrot.slane %v853, 5
    %v1558 = vsel %vm1494, %v1556, %v1557
    %s1559 = scalar_lea.vmem %s4, 64
    %v1560 = vld [vmem:[%s1559] sm:$0xf]
    %v1561 = vld [vmem:[%s1559 + $0x4] sm:$0xf]
    %v1562 = vld [vmem:[%s1559 + $0x8] sm:$0xf]
    %v1563 = vld [vmem:[%s1559 + $0xc] sm:$0xf]
    %v1564 = vld [vmem:[%s1559 + $0x10] sm:$0xf]
    %v1565 = vld [vmem:[%s1559 + $0x14] sm:$0xf]
    %v1566 = vld [vmem:[%s1559 + $0x18] sm:$0xf]
    %v1567 = vld [vmem:[%s1559 + $0x1c] sm:$0xf]
    %v1568 = vunpack.c.l.b16 %v1498
    %v1569 = vunpack.c.l.b16 %v1502
    %v1570 = vunpack.c.l.b16 %v1506
    %v1571 = vunpack.c.l.b16 %v1510
    %v1572 = vunpack.c.l.b16 %v1514
    %v1573 = vunpack.c.l.b16 %v1518
    %v1574 = vunpack.c.l.b16 %v1522
    %v1575 = vunpack.c.l.b16 %v1526
    %v1576 = vunpack.c.l.b16 %v1530
    %v1577 = vunpack.c.l.b16 %v1534
    %v1578 = vunpack.c.l.b16 %v1538
    %v1579 = vunpack.c.l.b16 %v1542
    %v1580 = vunpack.c.l.b16 %v1546
    %v1581 = vunpack.c.l.b16 %v1550
    %v1582 = vunpack.c.l.b16 %v1554
    %v1583 = vunpack.c.l.b16 %v1558
    %v1584 = vpack.c.b16 %v1569, %v1568
    %v1585 = vpack.c.b16 %v1571, %v1570
    %v1586 = vpack.c.b16 %v1573, %v1572
    %v1587 = vpack.c.b16 %v1575, %v1574
    %v1588 = vpack.c.b16 %v1577, %v1576
    %v1589 = vpack.c.b16 %v1579, %v1578
    %v1590 = vpack.c.b16 %v1581, %v1580
    %v1591 = vpack.c.b16 %v1583, %v1582
    %v1600 = vunpack.c.l.b16 %v1560
    %v1601 = vunpack.c.l.b16 %v1561
    %v1602 = vunpack.c.l.b16 %v1562
    %v1603 = vunpack.c.l.b16 %v1563
    %v1604 = vunpack.c.l.b16 %v1564
    %v1605 = vunpack.c.l.b16 %v1565
    %v1606 = vunpack.c.l.b16 %v1566
    %v1607 = vunpack.c.l.b16 %v1567
    %v1608 = vpack.c.b16 %v1601, %v1600
    %v1609 = vpack.c.b16 %v1603, %v1602
    %v1610 = vpack.c.b16 %v1605, %v1604
    %v1611 = vpack.c.b16 %v1607, %v1606
    %v1617 = vsel %vm134, %v1584, 0
    %v1620 = vsel %vm134, %v1585, 0
    %v1623 = vsel %vm134, %v1586, 0
    %v1626 = vsel %vm134, %v1587, 0
    %v1629 = vsel %vm134, %v1588, 0
    %v1632 = vsel %vm134, %v1589, 0
    %v1635 = vsel %vm134, %v1590, 0
    %v1638 = vsel %vm134, %v1591, 0
    %1640 = vmatprep.subr.bf16.mxu0 0
    %1641 = vmatpush1.bf16.msra.mxu0 %v1608
    %1642 = vmatprep.subr.bf16.mxu0 0
    %1643 = vmatpush1.bf16.msra.mxu0 %v1609
    %1644 = vmatprep.subr.bf16.mxu0 0
    %1645 = vmatpush1.bf16.msra.mxu0 %v1610
    %1646 = vmatprep.subr.bf16.mxu0 0
    %1647 = vmatpush1.bf16.msra.mxu0 %v1611
    %1648 = vmatprep.subr.bf16.mxu0 0
    %1649 = vmatpush1.bf16.msra.mxu0 0
    %1650 = vmatprep.subr.bf16.mxu0 0
    %1651 = vmatpush1.bf16.msra.mxu0 0
    %1652 = vmatprep.subr.bf16.mxu0 0
    %1653 = vmatpush1.bf16.msra.mxu0 0
    %1654 = vmatprep.subr.bf16.mxu0 0
    %1655 = vmatpush1.bf16.msra.mxu0 0
    %1656 = vmatprep.subr.bf16.mxu0 0
    %1657 = vmatpush1.bf16.msra.mxu0 0
    %1658 = vmatprep.subr.bf16.mxu0 0
    %1659 = vmatpush1.bf16.msra.mxu0 0
    %1660 = vmatprep.subr.bf16.mxu0 0
    %1661 = vmatpush1.bf16.msra.mxu0 0
    %1662 = vmatprep.subr.bf16.mxu0 0
    %1663 = vmatpush1.bf16.msra.mxu0 0
    %1664 = vmatprep.subr.bf16.mxu0 0
    %1665 = vmatpush1.bf16.msra.mxu0 0
    %1666 = vmatprep.subr.bf16.mxu0 0
    %1667 = vmatpush1.bf16.msra.mxu0 0
    %1668 = vmatprep.subr.bf16.mxu0 0
    %1669 = vmatpush1.bf16.msra.mxu0 0
    %1670 = vmatprep.subr.bf16.mxu0 0
    %1671 = vmatpush1.bf16.msra.mxu0 0
    %1672 = vmatprep.mubr.bf16.mxu0 0
    %1673 = vmatmul.mubr.bf16.gmra.mrb[0].mxu0 %v1617
    %v1674 = vpop.f32.mrb[0].mxu0
    %v1675 = vadd.f32 0.0, %v1674
    %v1676 = vpop.f32.mrb[0].mxu0
    %v1677 = vpop.f32.mrb[0].mxu0
    %v1678 = vadd.f32 0.0, %v1677
    %v1679 = vpop.f32.mrb[0].mxu0
    %1680 = vmatprep.mubr.bf16.mxu0 0
    %1681 = vmatmul.mubr.bf16.gmra.mrb[0].mxu0 %v1620
    %v1682 = vpop.f32.mrb[0].mxu0
    %v1683 = vadd.f32 0.0, %v1682
    %v1684 = vpop.f32.mrb[0].mxu0
    %v1685 = vpop.f32.mrb[0].mxu0
    %v1686 = vadd.f32 0.0, %v1685
    %v1687 = vpop.f32.mrb[0].mxu0
    %1688 = vmatprep.mubr.bf16.mxu0 0
    %1689 = vmatmul.mubr.bf16.gmra.mrb[0].mxu0 %v1623
    %v1690 = vpop.f32.mrb[0].mxu0
    %v1691 = vadd.f32 0.0, %v1690
    %v1692 = vpop.f32.mrb[0].mxu0
    %v1693 = vpop.f32.mrb[0].mxu0
    %v1694 = vadd.f32 0.0, %v1693
    %v1695 = vpop.f32.mrb[0].mxu0
    %1696 = vmatprep.mubr.bf16.mxu0 0
    %1697 = vmatmul.mubr.bf16.gmra.mrb[0].mxu0 %v1626
    %v1698 = vpop.f32.mrb[0].mxu0
    %v1699 = vadd.f32 0.0, %v1698
    %v1700 = vpop.f32.mrb[0].mxu0
    %v1701 = vpop.f32.mrb[0].mxu0
    %v1702 = vadd.f32 0.0, %v1701
    %v1703 = vpop.f32.mrb[0].mxu0
    %1704 = vmatprep.mubr.bf16.mxu0 0
    %1705 = vmatmul.mubr.bf16.gmra.mrb[0].mxu0 %v1629
    %v1706 = vpop.f32.mrb[0].mxu0
    %v1707 = vadd.f32 0.0, %v1706
    %v1708 = vpop.f32.mrb[0].mxu0
    %v1709 = vpop.f32.mrb[0].mxu0
    %v1710 = vadd.f32 0.0, %v1709
    %v1711 = vpop.f32.mrb[0].mxu0
    %1712 = vmatprep.mubr.bf16.mxu0 0
    %1713 = vmatmul.mubr.bf16.gmra.mrb[0].mxu0 %v1632
    %v1714 = vpop.f32.mrb[0].mxu0
    %v1715 = vadd.f32 0.0, %v1714
    %v1716 = vpop.f32.mrb[0].mxu0
    %v1717 = vpop.f32.mrb[0].mxu0
    %v1718 = vadd.f32 0.0, %v1717
    %v1719 = vpop.f32.mrb[0].mxu0
    %1720 = vmatprep.mubr.bf16.mxu0 0
    %1721 = vmatmul.mubr.bf16.gmra.mrb[0].mxu0 %v1635
    %v1722 = vpop.f32.mrb[0].mxu0
    %v1723 = vadd.f32 0.0, %v1722
    %v1724 = vpop.f32.mrb[0].mxu0
    %v1725 = vpop.f32.mrb[0].mxu0
    %v1726 = vadd.f32 0.0, %v1725
    %v1727 = vpop.f32.mrb[0].mxu0
    %1728 = vmatprep.mubr.bf16.mxu0 0
    %1729 = vmatmul.mubr.bf16.gmra.mrb[0].mxu0 %v1638
    %v1730 = vpop.f32.mrb[0].mxu0
    %v1731 = vadd.f32 0.0, %v1730
    %v1732 = vpop.f32.mrb[0].mxu0
    %v1733 = vpop.f32.mrb[0].mxu0
    %v1734 = vadd.f32 0.0, %v1733
    %v1735 = vpop.f32.mrb[0].mxu0
    %1736 = vdwg.mxu0
    %v1737 = vadd.f32 %v1382, %v1675
    %v1738 = vadd.f32 %v1385, %v1678
    %v1739 = vadd.f32 %v1390, %v1683
    %v1740 = vadd.f32 %v1393, %v1686
    %v1741 = vadd.f32 %v1398, %v1691
    %v1742 = vadd.f32 %v1401, %v1694
    %v1743 = vadd.f32 %v1406, %v1699
    %v1744 = vadd.f32 %v1409, %v1702
    %v1745 = vadd.f32 %v1414, %v1707
    %v1746 = vadd.f32 %v1417, %v1710
    %v1747 = vadd.f32 %v1422, %v1715
    %v1748 = vadd.f32 %v1425, %v1718
    %v1749 = vadd.f32 %v1430, %v1723
    %v1750 = vadd.f32 %v1433, %v1726
    %v1751 = vadd.f32 %v1438, %v1731
    %v1752 = vadd.f32 %v1441, %v1734
    %v1753 = vld [vmem:[%s711] sm:$0xf]
    %v1754 = vld [vmem:[%s711 + $0x8] sm:$0xf]
    %v1755 = vld [vmem:[%s711 + $0x10] sm:$0xf]
    %v1756 = vld [vmem:[%s711 + $0x18] sm:$0xf]
    %v1757 = vld [vmem:[%s711 + $0x20] sm:$0xf]
    %v1758 = vld [vmem:[%s711 + $0x28] sm:$0xf]
    %v1759 = vld [vmem:[%s711 + $0x30] sm:$0xf]
    %v1760 = vld [vmem:[%s711 + $0x38] sm:$0xf]
    %v1761 = vld [vmem:[%s711 + $0x50] sm:$0xf]
    %v1762 = vld [vmem:[%s711 + $0x58] sm:$0xf]
    %v1763 = vld [vmem:[%s711 + $0x60] sm:$0xf]
    %v1764 = vld [vmem:[%s711 + $0x68] sm:$0xf]
    %v1765 = vld [vmem:[%s711 + $0x70] sm:$0xf]
    %v1766 = vld [vmem:[%s711 + $0x78] sm:$0xf]
    %v1767 = vld [vmem:[%s711 + $0x80] sm:$0xf]
    %v1768 = vld [vmem:[%s711 + $0x88] sm:$0xf]
    %s1769 = scalar_lea.vmem %s4, 96
    %v1770 = vld [vmem:[%s1769] sm:$0xf]
    %v1771 = vld [vmem:[%s1769 + $0x4] sm:$0xf]
    %v1772 = vld [vmem:[%s1769 + $0x8] sm:$0xf]
    %v1773 = vld [vmem:[%s1769 + $0xc] sm:$0xf]
    %v1774 = vld [vmem:[%s1769 + $0x10] sm:$0xf]
    %v1775 = vld [vmem:[%s1769 + $0x14] sm:$0xf]
    %v1776 = vld [vmem:[%s1769 + $0x18] sm:$0xf]
    %v1777 = vld [vmem:[%s1769 + $0x1c] sm:$0xf]
    %v1794 = vunpack.c.l.b16 %v1753
    %v1795 = vunpack.c.l.b16 %v1754
    %v1796 = vunpack.c.l.b16 %v1755
    %v1797 = vunpack.c.l.b16 %v1756
    %v1798 = vunpack.c.l.b16 %v1757
    %v1799 = vunpack.c.l.b16 %v1758
    %v1800 = vunpack.c.l.b16 %v1759
    %v1801 = vunpack.c.l.b16 %v1760
    %v1802 = vunpack.c.l.b16 %v1761
    %v1803 = vunpack.c.l.b16 %v1762
    %v1804 = vunpack.c.l.b16 %v1763
    %v1805 = vunpack.c.l.b16 %v1764
    %v1806 = vunpack.c.l.b16 %v1765
    %v1807 = vunpack.c.l.b16 %v1766
    %v1808 = vunpack.c.l.b16 %v1767
    %v1809 = vunpack.c.l.b16 %v1768
    %v1810 = vpack.c.b16 %v1795, %v1794
    %v1811 = vpack.c.b16 %v1797, %v1796
    %v1812 = vpack.c.b16 %v1799, %v1798
    %v1813 = vpack.c.b16 %v1801, %v1800
    %v1814 = vpack.c.b16 %v1803, %v1802
    %v1815 = vpack.c.b16 %v1805, %v1804
    %v1816 = vpack.c.b16 %v1807, %v1806
    %v1817 = vpack.c.b16 %v1809, %v1808
    %v1826 = vunpack.c.l.b16 %v1770
    %v1827 = vunpack.c.l.b16 %v1771
    %v1828 = vunpack.c.l.b16 %v1772
    %v1829 = vunpack.c.l.b16 %v1773
    %v1830 = vunpack.c.l.b16 %v1774
    %v1831 = vunpack.c.l.b16 %v1775
    %v1832 = vunpack.c.l.b16 %v1776
    %v1833 = vunpack.c.l.b16 %v1777
    %v1834 = vpack.c.b16 %v1827, %v1826
    %v1835 = vpack.c.b16 %v1829, %v1828
    %v1836 = vpack.c.b16 %v1831, %v1830
    %v1837 = vpack.c.b16 %v1833, %v1832
    %v1843 = vsel %vm134, %v1810, 0
    %v1846 = vsel %vm134, %v1811, 0
    %v1849 = vsel %vm134, %v1812, 0
    %v1852 = vsel %vm134, %v1813, 0
    %v1855 = vsel %vm134, %v1814, 0
    %v1858 = vsel %vm134, %v1815, 0
    %v1861 = vsel %vm134, %v1816, 0
    %v1864 = vsel %vm134, %v1817, 0
    %1866 = vmatprep.subr.bf16.mxu0 0
    %1867 = vmatpush1.bf16.msra.mxu0 %v1834
    %1868 = vmatprep.subr.bf16.mxu0 0
    %1869 = vmatpush1.bf16.msra.mxu0 %v1835
    %1870 = vmatprep.subr.bf16.mxu0 0
    %1871 = vmatpush1.bf16.msra.mxu0 %v1836
    %1872 = vmatprep.subr.bf16.mxu0 0
    %1873 = vmatpush1.bf16.msra.mxu0 %v1837
    %1874 = vmatprep.subr.bf16.mxu0 0
    %1875 = vmatpush1.bf16.msra.mxu0 0
    %1876 = vmatprep.subr.bf16.mxu0 0
    %1877 = vmatpush1.bf16.msra.mxu0 0
    %1878 = vmatprep.subr.bf16.mxu0 0
    %1879 = vmatpush1.bf16.msra.mxu0 0
    %1880 = vmatprep.subr.bf16.mxu0 0
    %1881 = vmatpush1.bf16.msra.mxu0 0
    %1882 = vmatprep.subr.bf16.mxu0 0
    %1883 = vmatpush1.bf16.msra.mxu0 0
    %1884 = vmatprep.subr.bf16.mxu0 0
    %1885 = vmatpush1.bf16.msra.mxu0 0
    %1886 = vmatprep.subr.bf16.mxu0 0
    %1887 = vmatpush1.bf16.msra.mxu0 0
    %1888 = vmatprep.subr.bf16.mxu0 0
    %1889 = vmatpush1.bf16.msra.mxu0 0
    %1890 = vmatprep.subr.bf16.mxu0 0
    %1891 = vmatpush1.bf16.msra.mxu0 0
    %1892 = vmatprep.subr.bf16.mxu0 0
    %1893 = vmatpush1.bf16.msra.mxu0 0
    %1894 = vmatprep.subr.bf16.mxu0 0
    %1895 = vmatpush1.bf16.msra.mxu0 0
    %1896 = vmatprep.subr.bf16.mxu0 0
    %1897 = vmatpush1.bf16.msra.mxu0 0
    %1898 = vmatprep.mubr.bf16.mxu0 0
    %1899 = vmatmul.mubr.bf16.gmra.mrb[0].mxu0 %v1843
    %v1900 = vpop.f32.mrb[0].mxu0
    %v1901 = vadd.f32 0.0, %v1900
    %v1902 = vpop.f32.mrb[0].mxu0
    %v1903 = vpop.f32.mrb[0].mxu0
    %v1904 = vadd.f32 0.0, %v1903
    %v1905 = vpop.f32.mrb[0].mxu0
    %1906 = vmatprep.mubr.bf16.mxu0 0
    %1907 = vmatmul.mubr.bf16.gmra.mrb[0].mxu0 %v1846
    %v1908 = vpop.f32.mrb[0].mxu0
    %v1909 = vadd.f32 0.0, %v1908
    %v1910 = vpop.f32.mrb[0].mxu0
    %v1911 = vpop.f32.mrb[0].mxu0
    %v1912 = vadd.f32 0.0, %v1911
    %v1913 = vpop.f32.mrb[0].mxu0
    %1914 = vmatprep.mubr.bf16.mxu0 0
    %1915 = vmatmul.mubr.bf16.gmra.mrb[0].mxu0 %v1849
    %v1916 = vpop.f32.mrb[0].mxu0
    %v1917 = vadd.f32 0.0, %v1916
    %v1918 = vpop.f32.mrb[0].mxu0
    %v1919 = vpop.f32.mrb[0].mxu0
    %v1920 = vadd.f32 0.0, %v1919
    %v1921 = vpop.f32.mrb[0].mxu0
    %1922 = vmatprep.mubr.bf16.mxu0 0
    %1923 = vmatmul.mubr.bf16.gmra.mrb[0].mxu0 %v1852
    %v1924 = vpop.f32.mrb[0].mxu0
    %v1925 = vadd.f32 0.0, %v1924
    %v1926 = vpop.f32.mrb[0].mxu0
    %v1927 = vpop.f32.mrb[0].mxu0
    %v1928 = vadd.f32 0.0, %v1927
    %v1929 = vpop.f32.mrb[0].mxu0
    %1930 = vmatprep.mubr.bf16.mxu0 0
    %1931 = vmatmul.mubr.bf16.gmra.mrb[0].mxu0 %v1855
    %v1932 = vpop.f32.mrb[0].mxu0
    %v1933 = vadd.f32 0.0, %v1932
    %v1934 = vpop.f32.mrb[0].mxu0
    %v1935 = vpop.f32.mrb[0].mxu0
    %v1936 = vadd.f32 0.0, %v1935
    %v1937 = vpop.f32.mrb[0].mxu0
    %1938 = vmatprep.mubr.bf16.mxu0 0
    %1939 = vmatmul.mubr.bf16.gmra.mrb[0].mxu0 %v1858
    %v1940 = vpop.f32.mrb[0].mxu0
    %v1941 = vadd.f32 0.0, %v1940
    %v1942 = vpop.f32.mrb[0].mxu0
    %v1943 = vpop.f32.mrb[0].mxu0
    %v1944 = vadd.f32 0.0, %v1943
    %v1945 = vpop.f32.mrb[0].mxu0
    %1946 = vmatprep.mubr.bf16.mxu0 0
    %1947 = vmatmul.mubr.bf16.gmra.mrb[0].mxu0 %v1861
    %v1948 = vpop.f32.mrb[0].mxu0
    %v1949 = vadd.f32 0.0, %v1948
    %v1950 = vpop.f32.mrb[0].mxu0
    %v1951 = vpop.f32.mrb[0].mxu0
    %v1952 = vadd.f32 0.0, %v1951
    %v1953 = vpop.f32.mrb[0].mxu0
    %1954 = vmatprep.mubr.bf16.mxu0 0
    %1955 = vmatmul.mubr.bf16.gmra.mrb[0].mxu0 %v1864
    %v1956 = vpop.f32.mrb[0].mxu0
    %v1957 = vadd.f32 0.0, %v1956
    %v1958 = vpop.f32.mrb[0].mxu0
    %v1959 = vpop.f32.mrb[0].mxu0
    %v1960 = vadd.f32 0.0, %v1959
    %v1961 = vpop.f32.mrb[0].mxu0
    %1962 = vdwg.mxu0
    %v1963 = vadd.f32 %v1737, %v1901
    %v1964 = vadd.f32 %v1738, %v1904
    %v1965 = vadd.f32 %v1739, %v1909
    %v1966 = vadd.f32 %v1740, %v1912
    %v1967 = vadd.f32 %v1741, %v1917
    %v1968 = vadd.f32 %v1742, %v1920
    %v1969 = vadd.f32 %v1743, %v1925
    %v1970 = vadd.f32 %v1744, %v1928
    %v1971 = vadd.f32 %v1745, %v1933
    %v1972 = vadd.f32 %v1746, %v1936
    %v1973 = vadd.f32 %v1747, %v1941
    %v1974 = vadd.f32 %v1748, %v1944
    %v1975 = vadd.f32 %v1749, %v1949
    %v1976 = vadd.f32 %v1750, %v1952
    %v1977 = vadd.f32 %v1751, %v1957
    %v1978 = vadd.f32 %v1752, %v1960
    %v1979 = vld [vmem:[%s711] sm:$0xf]
    %v1980 = vld [vmem:[%s711 + $0x4] sm:$0x1]
    %v1981 = vld [vmem:[%s711 + $0x8] sm:$0xf]
    %v1982 = vld [vmem:[%s711 + $0xc] sm:$0x1]
    %v1983 = vld [vmem:[%s711 + $0x10] sm:$0xf]
    %v1984 = vld [vmem:[%s711 + $0x14] sm:$0x1]
    %v1985 = vld [vmem:[%s711 + $0x18] sm:$0xf]
    %v1986 = vld [vmem:[%s711 + $0x1c] sm:$0x1]
    %v1987 = vld [vmem:[%s711 + $0x20] sm:$0xf]
    %v1988 = vld [vmem:[%s711 + $0x24] sm:$0x1]
    %v1989 = vld [vmem:[%s711 + $0x28] sm:$0xf]
    %v1990 = vld [vmem:[%s711 + $0x2c] sm:$0x1]
    %v1991 = vld [vmem:[%s711 + $0x30] sm:$0xf]
    %v1992 = vld [vmem:[%s711 + $0x34] sm:$0x1]
    %v1993 = vld [vmem:[%s711 + $0x38] sm:$0xf]
    %v1994 = vld [vmem:[%s711 + $0x3c] sm:$0x1]
    %v1995 = vld [vmem:[%s711 + $0x50] sm:$0xf]
    %v1996 = vld [vmem:[%s711 + $0x54] sm:$0x1]
    %v1997 = vld [vmem:[%s711 + $0x58] sm:$0xf]
    %v1998 = vld [vmem:[%s711 + $0x5c] sm:$0x1]
    %v1999 = vld [vmem:[%s711 + $0x60] sm:$0xf]
    %v2000 = vld [vmem:[%s711 + $0x64] sm:$0x1]
    %v2001 = vld [vmem:[%s711 + $0x68] sm:$0xf]
    %v2002 = vld [vmem:[%s711 + $0x6c] sm:$0x1]
    %v2003 = vld [vmem:[%s711 + $0x70] sm:$0xf]
    %v2004 = vld [vmem:[%s711 + $0x74] sm:$0x1]
    %v2005 = vld [vmem:[%s711 + $0x78] sm:$0xf]
    %v2006 = vld [vmem:[%s711 + $0x7c] sm:$0x1]
    %v2007 = vld [vmem:[%s711 + $0x80] sm:$0xf]
    %v2008 = vld [vmem:[%s711 + $0x84] sm:$0x1]
    %v2009 = vld [vmem:[%s711 + $0x88] sm:$0xf]
    %v2010 = vld [vmem:[%s711 + $0x8c] sm:$0x1]
    %v2012 = vshrl.u32 %v1979, 16
    %v2014 = vrot.slane %v2012, 4
    %v2015 = vshll.u32 %v1979, 16
    %v2017 = vrot.slane %v2015, 5
    %v2018 = vor.u32 %v2014, %v2017
    %v2019 = vrot.slane %v2018, 4
    %v2021 = vshll.u32 %v1980, 16
    %v2023 = vrot.slane %v2021, 5
    %v2024 = vsel %vm856, %v2019, %v2023
    %v2026 = vshrl.u32 %v1981, 16
    %v2028 = vrot.slane %v2026, 4
    %v2029 = vshll.u32 %v1981, 16
    %v2031 = vrot.slane %v2029, 5
    %v2032 = vor.u32 %v2028, %v2031
    %v2033 = vrot.slane %v2032, 4
    %v2035 = vshll.u32 %v1982, 16
    %v2037 = vrot.slane %v2035, 5
    %v2038 = vsel %vm856, %v2033, %v2037
    %v2040 = vshrl.u32 %v1983, 16
    %v2042 = vrot.slane %v2040, 4
    %v2043 = vshll.u32 %v1983, 16
    %v2045 = vrot.slane %v2043, 5
    %v2046 = vor.u32 %v2042, %v2045
    %v2047 = vrot.slane %v2046, 4
    %v2049 = vshll.u32 %v1984, 16
    %v2051 = vrot.slane %v2049, 5
    %v2052 = vsel %vm856, %v2047, %v2051
    %v2054 = vshrl.u32 %v1985, 16
    %v2056 = vrot.slane %v2054, 4
    %v2057 = vshll.u32 %v1985, 16
    %v2059 = vrot.slane %v2057, 5
    %v2060 = vor.u32 %v2056, %v2059
    %v2061 = vrot.slane %v2060, 4
    %v2063 = vshll.u32 %v1986, 16
    %v2065 = vrot.slane %v2063, 5
    %v2066 = vsel %vm856, %v2061, %v2065
    %v2068 = vshrl.u32 %v1987, 16
    %v2070 = vrot.slane %v2068, 4
    %v2071 = vshll.u32 %v1987, 16
    %v2073 = vrot.slane %v2071, 5
    %v2074 = vor.u32 %v2070, %v2073
    %v2075 = vrot.slane %v2074, 4
    %v2077 = vshll.u32 %v1988, 16
    %v2079 = vrot.slane %v2077, 5
    %v2080 = vsel %vm856, %v2075, %v2079
    %v2082 = vshrl.u32 %v1989, 16
    %v2084 = vrot.slane %v2082, 4
    %v2085 = vshll.u32 %v1989, 16
    %v2087 = vrot.slane %v2085, 5
    %v2088 = vor.u32 %v2084, %v2087
    %v2089 = vrot.slane %v2088, 4
    %v2091 = vshll.u32 %v1990, 16
    %v2093 = vrot.slane %v2091, 5
    %v2094 = vsel %vm856, %v2089, %v2093
    %v2096 = vshrl.u32 %v1991, 16
    %v2098 = vrot.slane %v2096, 4
    %v2099 = vshll.u32 %v1991, 16
    %v2101 = vrot.slane %v2099, 5
    %v2102 = vor.u32 %v2098, %v2101
    %v2103 = vrot.slane %v2102, 4
    %v2105 = vshll.u32 %v1992, 16
    %v2107 = vrot.slane %v2105, 5
    %v2108 = vsel %vm856, %v2103, %v2107
    %v2110 = vshrl.u32 %v1993, 16
    %v2112 = vrot.slane %v2110, 4
    %v2113 = vshll.u32 %v1993, 16
    %v2115 = vrot.slane %v2113, 5
    %v2116 = vor.u32 %v2112, %v2115
    %v2117 = vrot.slane %v2116, 4
    %v2119 = vshll.u32 %v1994, 16
    %v2121 = vrot.slane %v2119, 5
    %v2122 = vsel %vm856, %v2117, %v2121
    %v2124 = vshrl.u32 %v1995, 16
    %v2126 = vrot.slane %v2124, 4
    %v2127 = vshll.u32 %v1995, 16
    %v2129 = vrot.slane %v2127, 5
    %v2130 = vor.u32 %v2126, %v2129
    %v2131 = vrot.slane %v2130, 4
    %v2133 = vshll.u32 %v1996, 16
    %v2135 = vrot.slane %v2133, 5
    %v2136 = vsel %vm856, %v2131, %v2135
    %v2138 = vshrl.u32 %v1997, 16
    %v2140 = vrot.slane %v2138, 4
    %v2141 = vshll.u32 %v1997, 16
    %v2143 = vrot.slane %v2141, 5
    %v2144 = vor.u32 %v2140, %v2143
    %v2145 = vrot.slane %v2144, 4
    %v2147 = vshll.u32 %v1998, 16
    %v2149 = vrot.slane %v2147, 5
    %v2150 = vsel %vm856, %v2145, %v2149
    %v2152 = vshrl.u32 %v1999, 16
    %v2154 = vrot.slane %v2152, 4
    %v2155 = vshll.u32 %v1999, 16
    %v2157 = vrot.slane %v2155, 5
    %v2158 = vor.u32 %v2154, %v2157
    %v2159 = vrot.slane %v2158, 4
    %v2161 = vshll.u32 %v2000, 16
    %v2163 = vrot.slane %v2161, 5
    %v2164 = vsel %vm856, %v2159, %v2163
    %v2166 = vshrl.u32 %v2001, 16
    %v2168 = vrot.slane %v2166, 4
    %v2169 = vshll.u32 %v2001, 16
    %v2171 = vrot.slane %v2169, 5
    %v2172 = vor.u32 %v2168, %v2171
    %v2173 = vrot.slane %v2172, 4
    %v2175 = vshll.u32 %v2002, 16
    %v2177 = vrot.slane %v2175, 5
    %v2178 = vsel %vm856, %v2173, %v2177
    %v2180 = vshrl.u32 %v2003, 16
    %v2182 = vrot.slane %v2180, 4
    %v2183 = vshll.u32 %v2003, 16
    %v2185 = vrot.slane %v2183, 5
    %v2186 = vor.u32 %v2182, %v2185
    %v2187 = vrot.slane %v2186, 4
    %v2189 = vshll.u32 %v2004, 16
    %v2191 = vrot.slane %v2189, 5
    %v2192 = vsel %vm856, %v2187, %v2191
    %v2194 = vshrl.u32 %v2005, 16
    %v2196 = vrot.slane %v2194, 4
    %v2197 = vshll.u32 %v2005, 16
    %v2199 = vrot.slane %v2197, 5
    %v2200 = vor.u32 %v2196, %v2199
    %v2201 = vrot.slane %v2200, 4
    %v2203 = vshll.u32 %v2006, 16
    %v2205 = vrot.slane %v2203, 5
    %v2206 = vsel %vm856, %v2201, %v2205
    %v2208 = vshrl.u32 %v2007, 16
    %v2210 = vrot.slane %v2208, 4
    %v2211 = vshll.u32 %v2007, 16
    %v2213 = vrot.slane %v2211, 5
    %v2214 = vor.u32 %v2210, %v2213
    %v2215 = vrot.slane %v2214, 4
    %v2217 = vshll.u32 %v2008, 16
    %v2219 = vrot.slane %v2217, 5
    %v2220 = vsel %vm856, %v2215, %v2219
    %v2222 = vshrl.u32 %v2009, 16
    %v2224 = vrot.slane %v2222, 4
    %v2225 = vshll.u32 %v2009, 16
    %v2227 = vrot.slane %v2225, 5
    %v2228 = vor.u32 %v2224, %v2227
    %v2229 = vrot.slane %v2228, 4
    %v2231 = vshll.u32 %v2010, 16
    %v2233 = vrot.slane %v2231, 5
    %v2234 = vsel %vm856, %v2229, %v2233
    %s2235 = scalar_lea.vmem %s4, 128
    %v2236 = vld [vmem:[%s2235] sm:$0xf]
    %v2237 = vld [vmem:[%s2235 + $0x4] sm:$0xf]
    %v2238 = vld [vmem:[%s2235 + $0x8] sm:$0xf]
    %v2239 = vld [vmem:[%s2235 + $0xc] sm:$0xf]
    %v2240 = vld [vmem:[%s2235 + $0x10] sm:$0xf]
    %v2241 = vld [vmem:[%s2235 + $0x14] sm:$0xf]
    %v2242 = vld [vmem:[%s2235 + $0x18] sm:$0xf]
    %v2243 = vld [vmem:[%s2235 + $0x1c] sm:$0xf]
    %v2244 = vunpack.c.l.b16 %v2024
    %v2245 = vunpack.c.l.b16 %v2038
    %v2246 = vunpack.c.l.b16 %v2052
    %v2247 = vunpack.c.l.b16 %v2066
    %v2248 = vunpack.c.l.b16 %v2080
    %v2249 = vunpack.c.l.b16 %v2094
    %v2250 = vunpack.c.l.b16 %v2108
    %v2251 = vunpack.c.l.b16 %v2122
    %v2252 = vunpack.c.l.b16 %v2136
    %v2253 = vunpack.c.l.b16 %v2150
    %v2254 = vunpack.c.l.b16 %v2164
    %v2255 = vunpack.c.l.b16 %v2178
    %v2256 = vunpack.c.l.b16 %v2192
    %v2257 = vunpack.c.l.b16 %v2206
    %v2258 = vunpack.c.l.b16 %v2220
    %v2259 = vunpack.c.l.b16 %v2234
    %v2260 = vpack.c.b16 %v2245, %v2244
    %v2261 = vpack.c.b16 %v2247, %v2246
    %v2262 = vpack.c.b16 %v2249, %v2248
    %v2263 = vpack.c.b16 %v2251, %v2250
    %v2264 = vpack.c.b16 %v2253, %v2252
    %v2265 = vpack.c.b16 %v2255, %v2254
    %v2266 = vpack.c.b16 %v2257, %v2256
    %v2267 = vpack.c.b16 %v2259, %v2258
    %v2276 = vunpack.c.l.b16 %v2236
    %v2277 = vunpack.c.l.b16 %v2237
    %v2278 = vunpack.c.l.b16 %v2238
    %v2279 = vunpack.c.l.b16 %v2239
    %v2280 = vunpack.c.l.b16 %v2240
    %v2281 = vunpack.c.l.b16 %v2241
    %v2282 = vunpack.c.l.b16 %v2242
    %v2283 = vunpack.c.l.b16 %v2243
    %v2284 = vpack.c.b16 %v2277, %v2276
    %v2285 = vpack.c.b16 %v2279, %v2278
    %v2286 = vpack.c.b16 %v2281, %v2280
    %v2287 = vpack.c.b16 %v2283, %v2282
    %v2293 = vsel %vm134, %v2260, 0
    %v2296 = vsel %vm134, %v2261, 0
    %v2299 = vsel %vm134, %v2262, 0
    %v2302 = vsel %vm134, %v2263, 0
    %v2305 = vsel %vm134, %v2264, 0
    %v2308 = vsel %vm134, %v2265, 0
    %v2311 = vsel %vm134, %v2266, 0
    %v2314 = vsel %vm134, %v2267, 0
    %2316 = vmatprep.subr.bf16.mxu0 0
    %2317 = vmatpush1.bf16.msra.mxu0 %v2284
    %2318 = vmatprep.subr.bf16.mxu0 0
    %2319 = vmatpush1.bf16.msra.mxu0 %v2285
    %2320 = vmatprep.subr.bf16.mxu0 0
    %2321 = vmatpush1.bf16.msra.mxu0 %v2286
    %2322 = vmatprep.subr.bf16.mxu0 0
    %2323 = vmatpush1.bf16.msra.mxu0 %v2287
    %2324 = vmatprep.subr.bf16.mxu0 0
    %2325 = vmatpush1.bf16.msra.mxu0 0
    %2326 = vmatprep.subr.bf16.mxu0 0
    %2327 = vmatpush1.bf16.msra.mxu0 0
    %2328 = vmatprep.subr.bf16.mxu0 0
    %2329 = vmatpush1.bf16.msra.mxu0 0
    %2330 = vmatprep.subr.bf16.mxu0 0
    %2331 = vmatpush1.bf16.msra.mxu0 0
    %2332 = vmatprep.subr.bf16.mxu0 0
    %2333 = vmatpush1.bf16.msra.mxu0 0
    %2334 = vmatprep.subr.bf16.mxu0 0
    %2335 = vmatpush1.bf16.msra.mxu0 0
    %2336 = vmatprep.subr.bf16.mxu0 0
    %2337 = vmatpush1.bf16.msra.mxu0 0
    %2338 = vmatprep.subr.bf16.mxu0 0
    %2339 = vmatpush1.bf16.msra.mxu0 0
    %2340 = vmatprep.subr.bf16.mxu0 0
    %2341 = vmatpush1.bf16.msra.mxu0 0
    %2342 = vmatprep.subr.bf16.mxu0 0
    %2343 = vmatpush1.bf16.msra.mxu0 0
    %2344 = vmatprep.subr.bf16.mxu0 0
    %2345 = vmatpush1.bf16.msra.mxu0 0
    %2346 = vmatprep.subr.bf16.mxu0 0
    %2347 = vmatpush1.bf16.msra.mxu0 0
    %2348 = vmatprep.mubr.bf16.mxu0 0
    %2349 = vmatmul.mubr.bf16.gmra.mrb[0].mxu0 %v2293
    %v2350 = vpop.f32.mrb[0].mxu0
    %v2351 = vadd.f32 0.0, %v2350
    %v2352 = vpop.f32.mrb[0].mxu0
    %v2353 = vpop.f32.mrb[0].mxu0
    %v2354 = vadd.f32 0.0, %v2353
    %v2355 = vpop.f32.mrb[0].mxu0
    %2356 = vmatprep.mubr.bf16.mxu0 0
    %2357 = vmatmul.mubr.bf16.gmra.mrb[0].mxu0 %v2296
    %v2358 = vpop.f32.mrb[0].mxu0
    %v2359 = vadd.f32 0.0, %v2358
    %v2360 = vpop.f32.mrb[0].mxu0
    %v2361 = vpop.f32.mrb[0].mxu0
    %v2362 = vadd.f32 0.0, %v2361
    %v2363 = vpop.f32.mrb[0].mxu0
    %2364 = vmatprep.mubr.bf16.mxu0 0
    %2365 = vmatmul.mubr.bf16.gmra.mrb[0].mxu0 %v2299
    %v2366 = vpop.f32.mrb[0].mxu0
    %v2367 = vadd.f32 0.0, %v2366
    %v2368 = vpop.f32.mrb[0].mxu0
    %v2369 = vpop.f32.mrb[0].mxu0
    %v2370 = vadd.f32 0.0, %v2369
    %v2371 = vpop.f32.mrb[0].mxu0
    %2372 = vmatprep.mubr.bf16.mxu0 0
    %2373 = vmatmul.mubr.bf16.gmra.mrb[0].mxu0 %v2302
    %v2374 = vpop.f32.mrb[0].mxu0
    %v2375 = vadd.f32 0.0, %v2374
    %v2376 = vpop.f32.mrb[0].mxu0
    %v2377 = vpop.f32.mrb[0].mxu0
    %v2378 = vadd.f32 0.0, %v2377
    %v2379 = vpop.f32.mrb[0].mxu0
    %2380 = vmatprep.mubr.bf16.mxu0 0
    %2381 = vmatmul.mubr.bf16.gmra.mrb[0].mxu0 %v2305
    %v2382 = vpop.f32.mrb[0].mxu0
    %v2383 = vadd.f32 0.0, %v2382
    %v2384 = vpop.f32.mrb[0].mxu0
    %v2385 = vpop.f32.mrb[0].mxu0
    %v2386 = vadd.f32 0.0, %v2385
    %v2387 = vpop.f32.mrb[0].mxu0
    %2388 = vmatprep.mubr.bf16.mxu0 0
    %2389 = vmatmul.mubr.bf16.gmra.mrb[0].mxu0 %v2308
    %v2390 = vpop.f32.mrb[0].mxu0
    %v2391 = vadd.f32 0.0, %v2390
    %v2392 = vpop.f32.mrb[0].mxu0
    %v2393 = vpop.f32.mrb[0].mxu0
    %v2394 = vadd.f32 0.0, %v2393
    %v2395 = vpop.f32.mrb[0].mxu0
    %2396 = vmatprep.mubr.bf16.mxu0 0
    %2397 = vmatmul.mubr.bf16.gmra.mrb[0].mxu0 %v2311
    %v2398 = vpop.f32.mrb[0].mxu0
    %v2399 = vadd.f32 0.0, %v2398
    %v2400 = vpop.f32.mrb[0].mxu0
    %v2401 = vpop.f32.mrb[0].mxu0
    %v2402 = vadd.f32 0.0, %v2401
    %v2403 = vpop.f32.mrb[0].mxu0
    %2404 = vmatprep.mubr.bf16.mxu0 0
    %2405 = vmatmul.mubr.bf16.gmra.mrb[0].mxu0 %v2314
    %v2406 = vpop.f32.mrb[0].mxu0
    %v2407 = vadd.f32 0.0, %v2406
    %v2408 = vpop.f32.mrb[0].mxu0
    %v2409 = vpop.f32.mrb[0].mxu0
    %v2410 = vadd.f32 0.0, %v2409
    %v2411 = vpop.f32.mrb[0].mxu0
    %2412 = vdwg.mxu0
    %v2413 = vadd.f32 %v1963, %v2351
    %v2414 = vadd.f32 %v1964, %v2354
    %v2415 = vadd.f32 %v1965, %v2359
    %v2416 = vadd.f32 %v1966, %v2362
    %v2417 = vadd.f32 %v1967, %v2367
    %v2418 = vadd.f32 %v1968, %v2370
    %v2419 = vadd.f32 %v1969, %v2375
    %v2420 = vadd.f32 %v1970, %v2378
    %v2421 = vadd.f32 %v1971, %v2383
    %v2422 = vadd.f32 %v1972, %v2386
    %v2423 = vadd.f32 %v1973, %v2391
    %v2424 = vadd.f32 %v1974, %v2394
    %v2425 = vadd.f32 %v1975, %v2399
    %v2426 = vadd.f32 %v1976, %v2402
    %v2427 = vadd.f32 %v1977, %v2407
    %v2428 = vadd.f32 %v1978, %v2410
    %v2429 = vld [vmem:[%s711] sm:$0xe]
    %v2430 = vld [vmem:[%s711 + $0x8] sm:$0xe]
    %v2431 = vld [vmem:[%s711 + $0x10] sm:$0xe]
    %v2432 = vld [vmem:[%s711 + $0x18] sm:$0xe]
    %v2433 = vld [vmem:[%s711 + $0x20] sm:$0xe]
    %v2434 = vld [vmem:[%s711 + $0x28] sm:$0xe]
    %v2435 = vld [vmem:[%s711 + $0x30] sm:$0xe]
    %v2436 = vld [vmem:[%s711 + $0x38] sm:$0xe]
    %v2437 = vld [vmem:[%s711 + $0x50] sm:$0xe]
    %v2438 = vld [vmem:[%s711 + $0x58] sm:$0xe]
    %v2439 = vld [vmem:[%s711 + $0x60] sm:$0xe]
    %v2440 = vld [vmem:[%s711 + $0x68] sm:$0xe]
    %v2441 = vld [vmem:[%s711 + $0x70] sm:$0xe]
    %v2442 = vld [vmem:[%s711 + $0x78] sm:$0xe]
    %v2443 = vld [vmem:[%s711 + $0x80] sm:$0xe]
    %v2444 = vld [vmem:[%s711 + $0x88] sm:$0xe]
    %v2477 = vrot.slane %v2429, 5
    %v2478 = vrot.slane %v2477, 4
    %v2479 = vrot.slane %v1980, 5
    %v2480 = vsel %vm1494, %v2478, %v2479
    %v2481 = vrot.slane %v2430, 5
    %v2482 = vrot.slane %v2481, 4
    %v2483 = vrot.slane %v1982, 5
    %v2484 = vsel %vm1494, %v2482, %v2483
    %v2485 = vrot.slane %v2431, 5
    %v2486 = vrot.slane %v2485, 4
    %v2487 = vrot.slane %v1984, 5
    %v2488 = vsel %vm1494, %v2486, %v2487
    %v2489 = vrot.slane %v2432, 5
    %v2490 = vrot.slane %v2489, 4
    %v2491 = vrot.slane %v1986, 5
    %v2492 = vsel %vm1494, %v2490, %v2491
    %v2493 = vrot.slane %v2433, 5
    %v2494 = vrot.slane %v2493, 4
    %v2495 = vrot.slane %v1988, 5
    %v2496 = vsel %vm1494, %v2494, %v2495
    %v2497 = vrot.slane %v2434, 5
    %v2498 = vrot.slane %v2497, 4
    %v2499 = vrot.slane %v1990, 5
    %v2500 = vsel %vm1494, %v2498, %v2499
    %v2501 = vrot.slane %v2435, 5
    %v2502 = vrot.slane %v2501, 4
    %v2503 = vrot.slane %v1992, 5
    %v2504 = vsel %vm1494, %v2502, %v2503
    %v2505 = vrot.slane %v2436, 5
    %v2506 = vrot.slane %v2505, 4
    %v2507 = vrot.slane %v1994, 5
    %v2508 = vsel %vm1494, %v2506, %v2507
    %v2509 = vrot.slane %v2437, 5
    %v2510 = vrot.slane %v2509, 4
    %v2511 = vrot.slane %v1996, 5
    %v2512 = vsel %vm1494, %v2510, %v2511
    %v2513 = vrot.slane %v2438, 5
    %v2514 = vrot.slane %v2513, 4
    %v2515 = vrot.slane %v1998, 5
    %v2516 = vsel %vm1494, %v2514, %v2515
    %v2517 = vrot.slane %v2439, 5
    %v2518 = vrot.slane %v2517, 4
    %v2519 = vrot.slane %v2000, 5
    %v2520 = vsel %vm1494, %v2518, %v2519
    %v2521 = vrot.slane %v2440, 5
    %v2522 = vrot.slane %v2521, 4
    %v2523 = vrot.slane %v2002, 5
    %v2524 = vsel %vm1494, %v2522, %v2523
    %v2525 = vrot.slane %v2441, 5
    %v2526 = vrot.slane %v2525, 4
    %v2527 = vrot.slane %v2004, 5
    %v2528 = vsel %vm1494, %v2526, %v2527
    %v2529 = vrot.slane %v2442, 5
    %v2530 = vrot.slane %v2529, 4
    %v2531 = vrot.slane %v2006, 5
    %v2532 = vsel %vm1494, %v2530, %v2531
    %v2533 = vrot.slane %v2443, 5
    %v2534 = vrot.slane %v2533, 4
    %v2535 = vrot.slane %v2008, 5
    %v2536 = vsel %vm1494, %v2534, %v2535
    %v2537 = vrot.slane %v2444, 5
    %v2538 = vrot.slane %v2537, 4
    %v2539 = vrot.slane %v2010, 5
    %v2540 = vsel %vm1494, %v2538, %v2539
    %s2541 = scalar_lea.vmem %s4, 160
    %v2542 = vld [vmem:[%s2541] sm:$0xf]
    %v2543 = vld [vmem:[%s2541 + $0x4] sm:$0xf]
    %v2544 = vld [vmem:[%s2541 + $0x8] sm:$0xf]
    %v2545 = vld [vmem:[%s2541 + $0xc] sm:$0xf]
    %v2546 = vld [vmem:[%s2541 + $0x10] sm:$0xf]
    %v2547 = vld [vmem:[%s2541 + $0x14] sm:$0xf]
    %v2548 = vld [vmem:[%s2541 + $0x18] sm:$0xf]
    %v2549 = vld [vmem:[%s2541 + $0x1c] sm:$0xf]
    %v2550 = vunpack.c.l.b16 %v2480
    %v2551 = vunpack.c.l.b16 %v2484
    %v2552 = vunpack.c.l.b16 %v2488
    %v2553 = vunpack.c.l.b16 %v2492
    %v2554 = vunpack.c.l.b16 %v2496
    %v2555 = vunpack.c.l.b16 %v2500
    %v2556 = vunpack.c.l.b16 %v2504
    %v2557 = vunpack.c.l.b16 %v2508
    %v2558 = vunpack.c.l.b16 %v2512
    %v2559 = vunpack.c.l.b16 %v2516
    %v2560 = vunpack.c.l.b16 %v2520
    %v2561 = vunpack.c.l.b16 %v2524
    %v2562 = vunpack.c.l.b16 %v2528
    %v2563 = vunpack.c.l.b16 %v2532
    %v2564 = vunpack.c.l.b16 %v2536
    %v2565 = vunpack.c.l.b16 %v2540
    %v2566 = vpack.c.b16 %v2551, %v2550
    %v2567 = vpack.c.b16 %v2553, %v2552
    %v2568 = vpack.c.b16 %v2555, %v2554
    %v2569 = vpack.c.b16 %v2557, %v2556
    %v2570 = vpack.c.b16 %v2559, %v2558
    %v2571 = vpack.c.b16 %v2561, %v2560
    %v2572 = vpack.c.b16 %v2563, %v2562
    %v2573 = vpack.c.b16 %v2565, %v2564
    %v2582 = vunpack.c.l.b16 %v2542
    %v2583 = vunpack.c.l.b16 %v2543
    %v2584 = vunpack.c.l.b16 %v2544
    %v2585 = vunpack.c.l.b16 %v2545
    %v2586 = vunpack.c.l.b16 %v2546
    %v2587 = vunpack.c.l.b16 %v2547
    %v2588 = vunpack.c.l.b16 %v2548
    %v2589 = vunpack.c.l.b16 %v2549
    %v2590 = vpack.c.b16 %v2583, %v2582
    %v2591 = vpack.c.b16 %v2585, %v2584
    %v2592 = vpack.c.b16 %v2587, %v2586
    %v2593 = vpack.c.b16 %v2589, %v2588
    %v2599 = vsel %vm134, %v2566, 0
    %v2602 = vsel %vm134, %v2567, 0
    %v2605 = vsel %vm134, %v2568, 0
    %v2608 = vsel %vm134, %v2569, 0
    %v2611 = vsel %vm134, %v2570, 0
    %v2614 = vsel %vm134, %v2571, 0
    %v2617 = vsel %vm134, %v2572, 0
    %v2620 = vsel %vm134, %v2573, 0
    %2622 = vmatprep.subr.bf16.mxu0 0
    %2623 = vmatpush1.bf16.msra.mxu0 %v2590
    %2624 = vmatprep.subr.bf16.mxu0 0
    %2625 = vmatpush1.bf16.msra.mxu0 %v2591
    %2626 = vmatprep.subr.bf16.mxu0 0
    %2627 = vmatpush1.bf16.msra.mxu0 %v2592
    %2628 = vmatprep.subr.bf16.mxu0 0
    %2629 = vmatpush1.bf16.msra.mxu0 %v2593
    %2630 = vmatprep.subr.bf16.mxu0 0
    %2631 = vmatpush1.bf16.msra.mxu0 0
    %2632 = vmatprep.subr.bf16.mxu0 0
    %2633 = vmatpush1.bf16.msra.mxu0 0
    %2634 = vmatprep.subr.bf16.mxu0 0
    %2635 = vmatpush1.bf16.msra.mxu0 0
    %2636 = vmatprep.subr.bf16.mxu0 0
    %2637 = vmatpush1.bf16.msra.mxu0 0
    %2638 = vmatprep.subr.bf16.mxu0 0
    %2639 = vmatpush1.bf16.msra.mxu0 0
    %2640 = vmatprep.subr.bf16.mxu0 0
    %2641 = vmatpush1.bf16.msra.mxu0 0
    %2642 = vmatprep.subr.bf16.mxu0 0
    %2643 = vmatpush1.bf16.msra.mxu0 0
    %2644 = vmatprep.subr.bf16.mxu0 0
    %2645 = vmatpush1.bf16.msra.mxu0 0
    %2646 = vmatprep.subr.bf16.mxu0 0
    %2647 = vmatpush1.bf16.msra.mxu0 0
    %2648 = vmatprep.subr.bf16.mxu0 0
    %2649 = vmatpush1.bf16.msra.mxu0 0
    %2650 = vmatprep.subr.bf16.mxu0 0
    %2651 = vmatpush1.bf16.msra.mxu0 0
    %2652 = vmatprep.subr.bf16.mxu0 0
    %2653 = vmatpush1.bf16.msra.mxu0 0
    %2654 = vmatprep.mubr.bf16.mxu0 0
    %2655 = vmatmul.mubr.bf16.gmra.mrb[0].mxu0 %v2599
    %v2656 = vpop.f32.mrb[0].mxu0
    %v2657 = vadd.f32 0.0, %v2656
    %v2658 = vpop.f32.mrb[0].mxu0
    %v2659 = vpop.f32.mrb[0].mxu0
    %v2660 = vadd.f32 0.0, %v2659
    %v2661 = vpop.f32.mrb[0].mxu0
    %2662 = vmatprep.mubr.bf16.mxu0 0
    %2663 = vmatmul.mubr.bf16.gmra.mrb[0].mxu0 %v2602
    %v2664 = vpop.f32.mrb[0].mxu0
    %v2665 = vadd.f32 0.0, %v2664
    %v2666 = vpop.f32.mrb[0].mxu0
    %v2667 = vpop.f32.mrb[0].mxu0
    %v2668 = vadd.f32 0.0, %v2667
    %v2669 = vpop.f32.mrb[0].mxu0
    %2670 = vmatprep.mubr.bf16.mxu0 0
    %2671 = vmatmul.mubr.bf16.gmra.mrb[0].mxu0 %v2605
    %v2672 = vpop.f32.mrb[0].mxu0
    %v2673 = vadd.f32 0.0, %v2672
    %v2674 = vpop.f32.mrb[0].mxu0
    %v2675 = vpop.f32.mrb[0].mxu0
    %v2676 = vadd.f32 0.0, %v2675
    %v2677 = vpop.f32.mrb[0].mxu0
    %2678 = vmatprep.mubr.bf16.mxu0 0
    %2679 = vmatmul.mubr.bf16.gmra.mrb[0].mxu0 %v2608
    %v2680 = vpop.f32.mrb[0].mxu0
    %v2681 = vadd.f32 0.0, %v2680
    %v2682 = vpop.f32.mrb[0].mxu0
    %v2683 = vpop.f32.mrb[0].mxu0
    %v2684 = vadd.f32 0.0, %v2683
    %v2685 = vpop.f32.mrb[0].mxu0
    %2686 = vmatprep.mubr.bf16.mxu0 0
    %2687 = vmatmul.mubr.bf16.gmra.mrb[0].mxu0 %v2611
    %v2688 = vpop.f32.mrb[0].mxu0
    %v2689 = vadd.f32 0.0, %v2688
    %v2690 = vpop.f32.mrb[0].mxu0
    %v2691 = vpop.f32.mrb[0].mxu0
    %v2692 = vadd.f32 0.0, %v2691
    %v2693 = vpop.f32.mrb[0].mxu0
    %2694 = vmatprep.mubr.bf16.mxu0 0
    %2695 = vmatmul.mubr.bf16.gmra.mrb[0].mxu0 %v2614
    %v2696 = vpop.f32.mrb[0].mxu0
    %v2697 = vadd.f32 0.0, %v2696
    %v2698 = vpop.f32.mrb[0].mxu0
    %v2699 = vpop.f32.mrb[0].mxu0
    %v2700 = vadd.f32 0.0, %v2699
    %v2701 = vpop.f32.mrb[0].mxu0
    %2702 = vmatprep.mubr.bf16.mxu0 0
    %2703 = vmatmul.mubr.bf16.gmra.mrb[0].mxu0 %v2617
    %v2704 = vpop.f32.mrb[0].mxu0
    %v2705 = vadd.f32 0.0, %v2704
    %v2706 = vpop.f32.mrb[0].mxu0
    %v2707 = vpop.f32.mrb[0].mxu0
    %v2708 = vadd.f32 0.0, %v2707
    %v2709 = vpop.f32.mrb[0].mxu0
    %2710 = vmatprep.mubr.bf16.mxu0 0
    %2711 = vmatmul.mubr.bf16.gmra.mrb[0].mxu0 %v2620
    %v2712 = vpop.f32.mrb[0].mxu0
    %v2713 = vadd.f32 0.0, %v2712
    %v2714 = vpop.f32.mrb[0].mxu0
    %v2715 = vpop.f32.mrb[0].mxu0
    %v2716 = vadd.f32 0.0, %v2715
    %v2717 = vpop.f32.mrb[0].mxu0
    %2718 = vdwg.mxu0
    %v2719 = vadd.f32 %v2413, %v2657
    %v2720 = vadd.f32 %v2414, %v2660
    %v2721 = vadd.f32 %v2415, %v2665
    %v2722 = vadd.f32 %v2416, %v2668
    %v2723 = vadd.f32 %v2417, %v2673
    %v2724 = vadd.f32 %v2418, %v2676
    %v2725 = vadd.f32 %v2419, %v2681
    %v2726 = vadd.f32 %v2420, %v2684
    %v2727 = vadd.f32 %v2421, %v2689
    %v2728 = vadd.f32 %v2422, %v2692
    %v2729 = vadd.f32 %v2423, %v2697
    %v2730 = vadd.f32 %v2424, %v2700
    %v2731 = vadd.f32 %v2425, %v2705
    %v2732 = vadd.f32 %v2426, %v2708
    %v2733 = vadd.f32 %v2427, %v2713
    %v2734 = vadd.f32 %v2428, %v2716
    %s2735 = scalar_lea.vmem [#allocation2], 16
    %v2736 = vld [vmem:[%s2735] sm:$0xf]
    %v2737 = vld [vmem:[%s2735 + $0x8] sm:$0xf]
    %v2738 = vld [vmem:[%s2735 + $0x10] sm:$0xf]
    %v2739 = vld [vmem:[%s2735 + $0x18] sm:$0xf]
    %v2740 = vld [vmem:[%s2735 + $0x20] sm:$0xf]
    %v2741 = vld [vmem:[%s2735 + $0x28] sm:$0xf]
    %v2742 = vld [vmem:[%s2735 + $0x30] sm:$0xf]
    %v2743 = vld [vmem:[%s2735 + $0x38] sm:$0xf]
    %v2744 = vld [vmem:[%s2735 + $0x50] sm:$0xf]
    %v2745 = vld [vmem:[%s2735 + $0x58] sm:$0xf]
    %v2746 = vld [vmem:[%s2735 + $0x60] sm:$0xf]
    %v2747 = vld [vmem:[%s2735 + $0x68] sm:$0xf]
    %v2748 = vld [vmem:[%s2735 + $0x70] sm:$0xf]
    %v2749 = vld [vmem:[%s2735 + $0x78] sm:$0xf]
    %v2750 = vld [vmem:[%s2735 + $0x80] sm:$0xf]
    %v2751 = vld [vmem:[%s2735 + $0x88] sm:$0xf]
    %s2752 = scalar_lea.vmem %s4, 192
    %v2753 = vld [vmem:[%s2752] sm:$0xf]
    %v2754 = vld [vmem:[%s2752 + $0x4] sm:$0xf]
    %v2755 = vld [vmem:[%s2752 + $0x8] sm:$0xf]
    %v2756 = vld [vmem:[%s2752 + $0xc] sm:$0xf]
    %v2757 = vld [vmem:[%s2752 + $0x10] sm:$0xf]
    %v2758 = vld [vmem:[%s2752 + $0x14] sm:$0xf]
    %v2759 = vld [vmem:[%s2752 + $0x18] sm:$0xf]
    %v2760 = vld [vmem:[%s2752 + $0x1c] sm:$0xf]
    %v2777 = vunpack.c.l.b16 %v2736
    %v2778 = vunpack.c.l.b16 %v2737
    %v2779 = vunpack.c.l.b16 %v2738
    %v2780 = vunpack.c.l.b16 %v2739
    %v2781 = vunpack.c.l.b16 %v2740
    %v2782 = vunpack.c.l.b16 %v2741
    %v2783 = vunpack.c.l.b16 %v2742
    %v2784 = vunpack.c.l.b16 %v2743
    %v2785 = vunpack.c.l.b16 %v2744
    %v2786 = vunpack.c.l.b16 %v2745
    %v2787 = vunpack.c.l.b16 %v2746
    %v2788 = vunpack.c.l.b16 %v2747
    %v2789 = vunpack.c.l.b16 %v2748
    %v2790 = vunpack.c.l.b16 %v2749
    %v2791 = vunpack.c.l.b16 %v2750
    %v2792 = vunpack.c.l.b16 %v2751
    %v2793 = vpack.c.b16 %v2778, %v2777
    %v2794 = vpack.c.b16 %v2780, %v2779
    %v2795 = vpack.c.b16 %v2782, %v2781
    %v2796 = vpack.c.b16 %v2784, %v2783
    %v2797 = vpack.c.b16 %v2786, %v2785
    %v2798 = vpack.c.b16 %v2788, %v2787
    %v2799 = vpack.c.b16 %v2790, %v2789
    %v2800 = vpack.c.b16 %v2792, %v2791
    %v2809 = vunpack.c.l.b16 %v2753
    %v2810 = vunpack.c.l.b16 %v2754
    %v2811 = vunpack.c.l.b16 %v2755
    %v2812 = vunpack.c.l.b16 %v2756
    %v2813 = vunpack.c.l.b16 %v2757
    %v2814 = vunpack.c.l.b16 %v2758
    %v2815 = vunpack.c.l.b16 %v2759
    %v2816 = vunpack.c.l.b16 %v2760
    %v2817 = vpack.c.b16 %v2810, %v2809
    %v2818 = vpack.c.b16 %v2812, %v2811
    %v2819 = vpack.c.b16 %v2814, %v2813
    %v2820 = vpack.c.b16 %v2816, %v2815
    %v2826 = vsel %vm134, %v2793, 0
    %v2829 = vsel %vm134, %v2794, 0
    %v2832 = vsel %vm134, %v2795, 0
    %v2835 = vsel %vm134, %v2796, 0
    %v2838 = vsel %vm134, %v2797, 0
    %v2841 = vsel %vm134, %v2798, 0
    %v2844 = vsel %vm134, %v2799, 0
    %v2847 = vsel %vm134, %v2800, 0
    %2849 = vmatprep.subr.bf16.mxu0 0
    %2850 = vmatpush1.bf16.msra.mxu0 %v2817
    %2851 = vmatprep.subr.bf16.mxu0 0
    %2852 = vmatpush1.bf16.msra.mxu0 %v2818
    %2853 = vmatprep.subr.bf16.mxu0 0
    %2854 = vmatpush1.bf16.msra.mxu0 %v2819
    %2855 = vmatprep.subr.bf16.mxu0 0
    %2856 = vmatpush1.bf16.msra.mxu0 %v2820
    %2857 = vmatprep.subr.bf16.mxu0 0
    %2858 = vmatpush1.bf16.msra.mxu0 0
    %2859 = vmatprep.subr.bf16.mxu0 0
    %2860 = vmatpush1.bf16.msra.mxu0 0
    %2861 = vmatprep.subr.bf16.mxu0 0
    %2862 = vmatpush1.bf16.msra.mxu0 0
    %2863 = vmatprep.subr.bf16.mxu0 0
    %2864 = vmatpush1.bf16.msra.mxu0 0
    %2865 = vmatprep.subr.bf16.mxu0 0
    %2866 = vmatpush1.bf16.msra.mxu0 0
    %2867 = vmatprep.subr.bf16.mxu0 0
    %2868 = vmatpush1.bf16.msra.mxu0 0
    %2869 = vmatprep.subr.bf16.mxu0 0
    %2870 = vmatpush1.bf16.msra.mxu0 0
    %2871 = vmatprep.subr.bf16.mxu0 0
    %2872 = vmatpush1.bf16.msra.mxu0 0
    %2873 = vmatprep.subr.bf16.mxu0 0
    %2874 = vmatpush1.bf16.msra.mxu0 0
    %2875 = vmatprep.subr.bf16.mxu0 0
    %2876 = vmatpush1.bf16.msra.mxu0 0
    %2877 = vmatprep.subr.bf16.mxu0 0
    %2878 = vmatpush1.bf16.msra.mxu0 0
    %2879 = vmatprep.subr.bf16.mxu0 0
    %2880 = vmatpush1.bf16.msra.mxu0 0
    %2881 = vmatprep.mubr.bf16.mxu0 0
    %2882 = vmatmul.mubr.bf16.gmra.mrb[0].mxu0 %v2826
    %v2883 = vpop.f32.mrb[0].mxu0
    %v2884 = vadd.f32 0.0, %v2883
    %v2885 = vpop.f32.mrb[0].mxu0
    %v2886 = vpop.f32.mrb[0].mxu0
    %v2887 = vadd.f32 0.0, %v2886
    %v2888 = vpop.f32.mrb[0].mxu0
    %2889 = vmatprep.mubr.bf16.mxu0 0
    %2890 = vmatmul.mubr.bf16.gmra.mrb[0].mxu0 %v2829
    %v2891 = vpop.f32.mrb[0].mxu0
    %v2892 = vadd.f32 0.0, %v2891
    %v2893 = vpop.f32.mrb[0].mxu0
    %v2894 = vpop.f32.mrb[0].mxu0
    %v2895 = vadd.f32 0.0, %v2894
    %v2896 = vpop.f32.mrb[0].mxu0
    %2897 = vmatprep.mubr.bf16.mxu0 0
    %2898 = vmatmul.mubr.bf16.gmra.mrb[0].mxu0 %v2832
    %v2899 = vpop.f32.mrb[0].mxu0
    %v2900 = vadd.f32 0.0, %v2899
    %v2901 = vpop.f32.mrb[0].mxu0
    %v2902 = vpop.f32.mrb[0].mxu0
    %v2903 = vadd.f32 0.0, %v2902
    %v2904 = vpop.f32.mrb[0].mxu0
    %2905 = vmatprep.mubr.bf16.mxu0 0
    %2906 = vmatmul.mubr.bf16.gmra.mrb[0].mxu0 %v2835
    %v2907 = vpop.f32.mrb[0].mxu0
    %v2908 = vadd.f32 0.0, %v2907
    %v2909 = vpop.f32.mrb[0].mxu0
    %v2910 = vpop.f32.mrb[0].mxu0
    %v2911 = vadd.f32 0.0, %v2910
    %v2912 = vpop.f32.mrb[0].mxu0
    %2913 = vmatprep.mubr.bf16.mxu0 0
    %2914 = vmatmul.mubr.bf16.gmra.mrb[0].mxu0 %v2838
    %v2915 = vpop.f32.mrb[0].mxu0
    %v2916 = vadd.f32 0.0, %v2915
    %v2917 = vpop.f32.mrb[0].mxu0
    %v2918 = vpop.f32.mrb[0].mxu0
    %v2919 = vadd.f32 0.0, %v2918
    %v2920 = vpop.f32.mrb[0].mxu0
    %2921 = vmatprep.mubr.bf16.mxu0 0
    %2922 = vmatmul.mubr.bf16.gmra.mrb[0].mxu0 %v2841
    %v2923 = vpop.f32.mrb[0].mxu0
    %v2924 = vadd.f32 0.0, %v2923
    %v2925 = vpop.f32.mrb[0].mxu0
    %v2926 = vpop.f32.mrb[0].mxu0
    %v2927 = vadd.f32 0.0, %v2926
    %v2928 = vpop.f32.mrb[0].mxu0
    %2929 = vmatprep.mubr.bf16.mxu0 0
    %2930 = vmatmul.mubr.bf16.gmra.mrb[0].mxu0 %v2844
    %v2931 = vpop.f32.mrb[0].mxu0
    %v2932 = vadd.f32 0.0, %v2931
    %v2933 = vpop.f32.mrb[0].mxu0
    %v2934 = vpop.f32.mrb[0].mxu0
    %v2935 = vadd.f32 0.0, %v2934
    %v2936 = vpop.f32.mrb[0].mxu0
    %2937 = vmatprep.mubr.bf16.mxu0 0
    %2938 = vmatmul.mubr.bf16.gmra.mrb[0].mxu0 %v2847
    %v2939 = vpop.f32.mrb[0].mxu0
    %v2940 = vadd.f32 0.0, %v2939
    %v2941 = vpop.f32.mrb[0].mxu0
    %v2942 = vpop.f32.mrb[0].mxu0
    %v2943 = vadd.f32 0.0, %v2942
    %v2944 = vpop.f32.mrb[0].mxu0
    %2945 = vdwg.mxu0
    %v2946 = vadd.f32 %v2719, %v2884
    %v2947 = vadd.f32 %v2720, %v2887
    %v2948 = vadd.f32 %v2721, %v2892
    %v2949 = vadd.f32 %v2722, %v2895
    %v2950 = vadd.f32 %v2723, %v2900
    %v2951 = vadd.f32 %v2724, %v2903
    %v2952 = vadd.f32 %v2725, %v2908
    %v2953 = vadd.f32 %v2726, %v2911
    %v2954 = vadd.f32 %v2727, %v2916
    %v2955 = vadd.f32 %v2728, %v2919
    %v2956 = vadd.f32 %v2729, %v2924
    %v2957 = vadd.f32 %v2730, %v2927
    %v2958 = vadd.f32 %v2731, %v2932
    %v2959 = vadd.f32 %v2732, %v2935
    %v2960 = vadd.f32 %v2733, %v2940
    %v2961 = vadd.f32 %v2734, %v2943
    %v2962 = vld [vmem:[%s2735] sm:$0xf]
    %v2963 = vld [vmem:[%s2735 + $0x4] sm:$0x1]
    %v2964 = vld [vmem:[%s2735 + $0x8] sm:$0xf]
    %v2965 = vld [vmem:[%s2735 + $0xc] sm:$0x1]
    %v2966 = vld [vmem:[%s2735 + $0x10] sm:$0xf]
    %v2967 = vld [vmem:[%s2735 + $0x14] sm:$0x1]
    %v2968 = vld [vmem:[%s2735 + $0x18] sm:$0xf]
    %v2969 = vld [vmem:[%s2735 + $0x1c] sm:$0x1]
    %v2970 = vld [vmem:[%s2735 + $0x20] sm:$0xf]
    %v2971 = vld [vmem:[%s2735 + $0x24] sm:$0x1]
    %v2972 = vld [vmem:[%s2735 + $0x28] sm:$0xf]
    %v2973 = vld [vmem:[%s2735 + $0x2c] sm:$0x1]
    %v2974 = vld [vmem:[%s2735 + $0x30] sm:$0xf]
    %v2975 = vld [vmem:[%s2735 + $0x34] sm:$0x1]
    %v2976 = vld [vmem:[%s2735 + $0x38] sm:$0xf]
    %v2977 = vld [vmem:[%s2735 + $0x3c] sm:$0x1]
    %v2978 = vld [vmem:[%s2735 + $0x50] sm:$0xf]
    %v2979 = vld [vmem:[%s2735 + $0x54] sm:$0x1]
    %v2980 = vld [vmem:[%s2735 + $0x58] sm:$0xf]
    %v2981 = vld [vmem:[%s2735 + $0x5c] sm:$0x1]
    %v2982 = vld [vmem:[%s2735 + $0x60] sm:$0xf]
    %v2983 = vld [vmem:[%s2735 + $0x64] sm:$0x1]
    %v2984 = vld [vmem:[%s2735 + $0x68] sm:$0xf]
    %v2985 = vld [vmem:[%s2735 + $0x6c] sm:$0x1]
    %v2986 = vld [vmem:[%s2735 + $0x70] sm:$0xf]
    %v2987 = vld [vmem:[%s2735 + $0x74] sm:$0x1]
    %v2988 = vld [vmem:[%s2735 + $0x78] sm:$0xf]
    %v2989 = vld [vmem:[%s2735 + $0x7c] sm:$0x1]
    %v2990 = vld [vmem:[%s2735 + $0x80] sm:$0xf]
    %v2991 = vld [vmem:[%s2735 + $0x84] sm:$0x1]
    %v2992 = vld [vmem:[%s2735 + $0x88] sm:$0xf]
    %v2993 = vld [vmem:[%s2735 + $0x8c] sm:$0x1]
    %v2995 = vshrl.u32 %v2962, 16
    %v2997 = vrot.slane %v2995, 4
    %v2998 = vshll.u32 %v2962, 16
    %v3000 = vrot.slane %v2998, 5
    %v3001 = vor.u32 %v2997, %v3000
    %v3002 = vrot.slane %v3001, 4
    %v3004 = vshll.u32 %v2963, 16
    %v3006 = vrot.slane %v3004, 5
    %v3007 = vsel %vm856, %v3002, %v3006
    %v3009 = vshrl.u32 %v2964, 16
    %v3011 = vrot.slane %v3009, 4
    %v3012 = vshll.u32 %v2964, 16
    %v3014 = vrot.slane %v3012, 5
    %v3015 = vor.u32 %v3011, %v3014
    %v3016 = vrot.slane %v3015, 4
    %v3018 = vshll.u32 %v2965, 16
    %v3020 = vrot.slane %v3018, 5
    %v3021 = vsel %vm856, %v3016, %v3020
    %v3023 = vshrl.u32 %v2966, 16
    %v3025 = vrot.slane %v3023, 4
    %v3026 = vshll.u32 %v2966, 16
    %v3028 = vrot.slane %v3026, 5
    %v3029 = vor.u32 %v3025, %v3028
    %v3030 = vrot.slane %v3029, 4
    %v3032 = vshll.u32 %v2967, 16
    %v3034 = vrot.slane %v3032, 5
    %v3035 = vsel %vm856, %v3030, %v3034
    %v3037 = vshrl.u32 %v2968, 16
    %v3039 = vrot.slane %v3037, 4
    %v3040 = vshll.u32 %v2968, 16
    %v3042 = vrot.slane %v3040, 5
    %v3043 = vor.u32 %v3039, %v3042
    %v3044 = vrot.slane %v3043, 4
    %v3046 = vshll.u32 %v2969, 16
    %v3048 = vrot.slane %v3046, 5
    %v3049 = vsel %vm856, %v3044, %v3048
    %v3051 = vshrl.u32 %v2970, 16
    %v3053 = vrot.slane %v3051, 4
    %v3054 = vshll.u32 %v2970, 16
    %v3056 = vrot.slane %v3054, 5
    %v3057 = vor.u32 %v3053, %v3056
    %v3058 = vrot.slane %v3057, 4
    %v3060 = vshll.u32 %v2971, 16
    %v3062 = vrot.slane %v3060, 5
    %v3063 = vsel %vm856, %v3058, %v3062
    %v3065 = vshrl.u32 %v2972, 16
    %v3067 = vrot.slane %v3065, 4
    %v3068 = vshll.u32 %v2972, 16
    %v3070 = vrot.slane %v3068, 5
    %v3071 = vor.u32 %v3067, %v3070
    %v3072 = vrot.slane %v3071, 4
    %v3074 = vshll.u32 %v2973, 16
    %v3076 = vrot.slane %v3074, 5
    %v3077 = vsel %vm856, %v3072, %v3076
    %v3079 = vshrl.u32 %v2974, 16
    %v3081 = vrot.slane %v3079, 4
    %v3082 = vshll.u32 %v2974, 16
    %v3084 = vrot.slane %v3082, 5
    %v3085 = vor.u32 %v3081, %v3084
    %v3086 = vrot.slane %v3085, 4
    %v3088 = vshll.u32 %v2975, 16
    %v3090 = vrot.slane %v3088, 5
    %v3091 = vsel %vm856, %v3086, %v3090
    %v3093 = vshrl.u32 %v2976, 16
    %v3095 = vrot.slane %v3093, 4
    %v3096 = vshll.u32 %v2976, 16
    %v3098 = vrot.slane %v3096, 5
    %v3099 = vor.u32 %v3095, %v3098
    %v3100 = vrot.slane %v3099, 4
    %v3102 = vshll.u32 %v2977, 16
    %v3104 = vrot.slane %v3102, 5
    %v3105 = vsel %vm856, %v3100, %v3104
    %v3107 = vshrl.u32 %v2978, 16
    %v3109 = vrot.slane %v3107, 4
    %v3110 = vshll.u32 %v2978, 16
    %v3112 = vrot.slane %v3110, 5
    %v3113 = vor.u32 %v3109, %v3112
    %v3114 = vrot.slane %v3113, 4
    %v3116 = vshll.u32 %v2979, 16
    %v3118 = vrot.slane %v3116, 5
    %v3119 = vsel %vm856, %v3114, %v3118
    %v3121 = vshrl.u32 %v2980, 16
    %v3123 = vrot.slane %v3121, 4
    %v3124 = vshll.u32 %v2980, 16
    %v3126 = vrot.slane %v3124, 5
    %v3127 = vor.u32 %v3123, %v3126
    %v3128 = vrot.slane %v3127, 4
    %v3130 = vshll.u32 %v2981, 16
    %v3132 = vrot.slane %v3130, 5
    %v3133 = vsel %vm856, %v3128, %v3132
    %v3135 = vshrl.u32 %v2982, 16
    %v3137 = vrot.slane %v3135, 4
    %v3138 = vshll.u32 %v2982, 16
    %v3140 = vrot.slane %v3138, 5
    %v3141 = vor.u32 %v3137, %v3140
    %v3142 = vrot.slane %v3141, 4
    %v3144 = vshll.u32 %v2983, 16
    %v3146 = vrot.slane %v3144, 5
    %v3147 = vsel %vm856, %v3142, %v3146
    %v3149 = vshrl.u32 %v2984, 16
    %v3151 = vrot.slane %v3149, 4
    %v3152 = vshll.u32 %v2984, 16
    %v3154 = vrot.slane %v3152, 5
    %v3155 = vor.u32 %v3151, %v3154
    %v3156 = vrot.slane %v3155, 4
    %v3158 = vshll.u32 %v2985, 16
    %v3160 = vrot.slane %v3158, 5
    %v3161 = vsel %vm856, %v3156, %v3160
    %v3163 = vshrl.u32 %v2986, 16
    %v3165 = vrot.slane %v3163, 4
    %v3166 = vshll.u32 %v2986, 16
    %v3168 = vrot.slane %v3166, 5
    %v3169 = vor.u32 %v3165, %v3168
    %v3170 = vrot.slane %v3169, 4
    %v3172 = vshll.u32 %v2987, 16
    %v3174 = vrot.slane %v3172, 5
    %v3175 = vsel %vm856, %v3170, %v3174
    %v3177 = vshrl.u32 %v2988, 16
    %v3179 = vrot.slane %v3177, 4
    %v3180 = vshll.u32 %v2988, 16
    %v3182 = vrot.slane %v3180, 5
    %v3183 = vor.u32 %v3179, %v3182
    %v3184 = vrot.slane %v3183, 4
    %v3186 = vshll.u32 %v2989, 16
    %v3188 = vrot.slane %v3186, 5
    %v3189 = vsel %vm856, %v3184, %v3188
    %v3191 = vshrl.u32 %v2990, 16
    %v3193 = vrot.slane %v3191, 4
    %v3194 = vshll.u32 %v2990, 16
    %v3196 = vrot.slane %v3194, 5
    %v3197 = vor.u32 %v3193, %v3196
    %v3198 = vrot.slane %v3197, 4
    %v3200 = vshll.u32 %v2991, 16
    %v3202 = vrot.slane %v3200, 5
    %v3203 = vsel %vm856, %v3198, %v3202
    %v3205 = vshrl.u32 %v2992, 16
    %v3207 = vrot.slane %v3205, 4
    %v3208 = vshll.u32 %v2992, 16
    %v3210 = vrot.slane %v3208, 5
    %v3211 = vor.u32 %v3207, %v3210
    %v3212 = vrot.slane %v3211, 4
    %v3214 = vshll.u32 %v2993, 16
    %v3216 = vrot.slane %v3214, 5
    %v3217 = vsel %vm856, %v3212, %v3216
    %s3218 = scalar_lea.vmem %s4, 224
    %v3219 = vld [vmem:[%s3218] sm:$0xf]
    %v3220 = vld [vmem:[%s3218 + $0x4] sm:$0xf]
    %v3221 = vld [vmem:[%s3218 + $0x8] sm:$0xf]
    %v3222 = vld [vmem:[%s3218 + $0xc] sm:$0xf]
    %v3223 = vld [vmem:[%s3218 + $0x10] sm:$0xf]
    %v3224 = vld [vmem:[%s3218 + $0x14] sm:$0xf]
    %v3225 = vld [vmem:[%s3218 + $0x18] sm:$0xf]
    %v3226 = vld [vmem:[%s3218 + $0x1c] sm:$0xf]
    %v3227 = vunpack.c.l.b16 %v3007
    %v3228 = vunpack.c.l.b16 %v3021
    %v3229 = vunpack.c.l.b16 %v3035
    %v3230 = vunpack.c.l.b16 %v3049
    %v3231 = vunpack.c.l.b16 %v3063
    %v3232 = vunpack.c.l.b16 %v3077
    %v3233 = vunpack.c.l.b16 %v3091
    %v3234 = vunpack.c.l.b16 %v3105
    %v3235 = vunpack.c.l.b16 %v3119
    %v3236 = vunpack.c.l.b16 %v3133
    %v3237 = vunpack.c.l.b16 %v3147
    %v3238 = vunpack.c.l.b16 %v3161
    %v3239 = vunpack.c.l.b16 %v3175
    %v3240 = vunpack.c.l.b16 %v3189
    %v3241 = vunpack.c.l.b16 %v3203
    %v3242 = vunpack.c.l.b16 %v3217
    %v3243 = vpack.c.b16 %v3228, %v3227
    %v3244 = vpack.c.b16 %v3230, %v3229
    %v3245 = vpack.c.b16 %v3232, %v3231
    %v3246 = vpack.c.b16 %v3234, %v3233
    %v3247 = vpack.c.b16 %v3236, %v3235
    %v3248 = vpack.c.b16 %v3238, %v3237
    %v3249 = vpack.c.b16 %v3240, %v3239
    %v3250 = vpack.c.b16 %v3242, %v3241
    %v3259 = vunpack.c.l.b16 %v3219
    %v3260 = vunpack.c.l.b16 %v3220
    %v3261 = vunpack.c.l.b16 %v3221
    %v3262 = vunpack.c.l.b16 %v3222
    %v3263 = vunpack.c.l.b16 %v3223
    %v3264 = vunpack.c.l.b16 %v3224
    %v3265 = vunpack.c.l.b16 %v3225
    %v3266 = vunpack.c.l.b16 %v3226
    %v3267 = vpack.c.b16 %v3260, %v3259
    %v3268 = vpack.c.b16 %v3262, %v3261
    %v3269 = vpack.c.b16 %v3264, %v3263
    %v3270 = vpack.c.b16 %v3266, %v3265
    %v3276 = vsel %vm134, %v3243, 0
    %v3279 = vsel %vm134, %v3244, 0
    %v3282 = vsel %vm134, %v3245, 0
    %v3285 = vsel %vm134, %v3246, 0
    %v3288 = vsel %vm134, %v3247, 0
    %v3291 = vsel %vm134, %v3248, 0
    %v3294 = vsel %vm134, %v3249, 0
    %v3297 = vsel %vm134, %v3250, 0
    %3299 = vmatprep.subr.bf16.mxu0 0
    %3300 = vmatpush1.bf16.msra.mxu0 %v3267
    %3301 = vmatprep.subr.bf16.mxu0 0
    %3302 = vmatpush1.bf16.msra.mxu0 %v3268
    %3303 = vmatprep.subr.bf16.mxu0 0
    %3304 = vmatpush1.bf16.msra.mxu0 %v3269
    %3305 = vmatprep.subr.bf16.mxu0 0
    %3306 = vmatpush1.bf16.msra.mxu0 %v3270
    %3307 = vmatprep.subr.bf16.mxu0 0
    %3308 = vmatpush1.bf16.msra.mxu0 0
    %3309 = vmatprep.subr.bf16.mxu0 0
    %3310 = vmatpush1.bf16.msra.mxu0 0
    %3311 = vmatprep.subr.bf16.mxu0 0
    %3312 = vmatpush1.bf16.msra.mxu0 0
    %3313 = vmatprep.subr.bf16.mxu0 0
    %3314 = vmatpush1.bf16.msra.mxu0 0
    %3315 = vmatprep.subr.bf16.mxu0 0
    %3316 = vmatpush1.bf16.msra.mxu0 0
    %3317 = vmatprep.subr.bf16.mxu0 0
    %3318 = vmatpush1.bf16.msra.mxu0 0
    %3319 = vmatprep.subr.bf16.mxu0 0
    %3320 = vmatpush1.bf16.msra.mxu0 0
    %3321 = vmatprep.subr.bf16.mxu0 0
    %3322 = vmatpush1.bf16.msra.mxu0 0
    %3323 = vmatprep.subr.bf16.mxu0 0
    %3324 = vmatpush1.bf16.msra.mxu0 0
    %3325 = vmatprep.subr.bf16.mxu0 0
    %3326 = vmatpush1.bf16.msra.mxu0 0
    %3327 = vmatprep.subr.bf16.mxu0 0
    %3328 = vmatpush1.bf16.msra.mxu0 0
    %3329 = vmatprep.subr.bf16.mxu0 0
    %3330 = vmatpush1.bf16.msra.mxu0 0
    %3331 = vmatprep.mubr.bf16.mxu0 0
    %3332 = vmatmul.mubr.bf16.gmra.mrb[0].mxu0 %v3276
    %v3333 = vpop.f32.mrb[0].mxu0
    %v3334 = vadd.f32 0.0, %v3333
    %v3335 = vpop.f32.mrb[0].mxu0
    %v3336 = vpop.f32.mrb[0].mxu0
    %v3337 = vadd.f32 0.0, %v3336
    %v3338 = vpop.f32.mrb[0].mxu0
    %3339 = vmatprep.mubr.bf16.mxu0 0
    %3340 = vmatmul.mubr.bf16.gmra.mrb[0].mxu0 %v3279
    %v3341 = vpop.f32.mrb[0].mxu0
    %v3342 = vadd.f32 0.0, %v3341
    %v3343 = vpop.f32.mrb[0].mxu0
    %v3344 = vpop.f32.mrb[0].mxu0
    %v3345 = vadd.f32 0.0, %v3344
    %v3346 = vpop.f32.mrb[0].mxu0
    %3347 = vmatprep.mubr.bf16.mxu0 0
    %3348 = vmatmul.mubr.bf16.gmra.mrb[0].mxu0 %v3282
    %v3349 = vpop.f32.mrb[0].mxu0
    %v3350 = vadd.f32 0.0, %v3349
    %v3351 = vpop.f32.mrb[0].mxu0
    %v3352 = vpop.f32.mrb[0].mxu0
    %v3353 = vadd.f32 0.0, %v3352
    %v3354 = vpop.f32.mrb[0].mxu0
    %3355 = vmatprep.mubr.bf16.mxu0 0
    %3356 = vmatmul.mubr.bf16.gmra.mrb[0].mxu0 %v3285
    %v3357 = vpop.f32.mrb[0].mxu0
    %v3358 = vadd.f32 0.0, %v3357
    %v3359 = vpop.f32.mrb[0].mxu0
    %v3360 = vpop.f32.mrb[0].mxu0
    %v3361 = vadd.f32 0.0, %v3360
    %v3362 = vpop.f32.mrb[0].mxu0
    %3363 = vmatprep.mubr.bf16.mxu0 0
    %3364 = vmatmul.mubr.bf16.gmra.mrb[0].mxu0 %v3288
    %v3365 = vpop.f32.mrb[0].mxu0
    %v3366 = vadd.f32 0.0, %v3365
    %v3367 = vpop.f32.mrb[0].mxu0
    %v3368 = vpop.f32.mrb[0].mxu0
    %v3369 = vadd.f32 0.0, %v3368
    %v3370 = vpop.f32.mrb[0].mxu0
    %3371 = vmatprep.mubr.bf16.mxu0 0
    %3372 = vmatmul.mubr.bf16.gmra.mrb[0].mxu0 %v3291
    %v3373 = vpop.f32.mrb[0].mxu0
    %v3374 = vadd.f32 0.0, %v3373
    %v3375 = vpop.f32.mrb[0].mxu0
    %v3376 = vpop.f32.mrb[0].mxu0
    %v3377 = vadd.f32 0.0, %v3376
    %v3378 = vpop.f32.mrb[0].mxu0
    %3379 = vmatprep.mubr.bf16.mxu0 0
    %3380 = vmatmul.mubr.bf16.gmra.mrb[0].mxu0 %v3294
    %v3381 = vpop.f32.mrb[0].mxu0
    %v3382 = vadd.f32 0.0, %v3381
    %v3383 = vpop.f32.mrb[0].mxu0
    %v3384 = vpop.f32.mrb[0].mxu0
    %v3385 = vadd.f32 0.0, %v3384
    %v3386 = vpop.f32.mrb[0].mxu0
    %3387 = vmatprep.mubr.bf16.mxu0 0
    %3388 = vmatmul.mubr.bf16.gmra.mrb[0].mxu0 %v3297
    %v3389 = vpop.f32.mrb[0].mxu0
    %v3390 = vadd.f32 0.0, %v3389
    %v3391 = vpop.f32.mrb[0].mxu0
    %v3392 = vpop.f32.mrb[0].mxu0
    %v3393 = vadd.f32 0.0, %v3392
    %v3394 = vpop.f32.mrb[0].mxu0
    %3395 = vdwg.mxu0
    %v3396 = vadd.f32 %v2946, %v3334
    %v3397 = vadd.f32 %v2947, %v3337
    %v3398 = vadd.f32 %v2948, %v3342
    %v3399 = vadd.f32 %v2949, %v3345
    %v3400 = vadd.f32 %v2950, %v3350
    %v3401 = vadd.f32 %v2951, %v3353
    %v3402 = vadd.f32 %v2952, %v3358
    %v3403 = vadd.f32 %v2953, %v3361
    %v3404 = vadd.f32 %v2954, %v3366
    %v3405 = vadd.f32 %v2955, %v3369
    %v3406 = vadd.f32 %v2956, %v3374
    %v3407 = vadd.f32 %v2957, %v3377
    %v3408 = vadd.f32 %v2958, %v3382
    %v3409 = vadd.f32 %v2959, %v3385
    %v3410 = vadd.f32 %v2960, %v3390
    %v3411 = vadd.f32 %v2961, %v3393
    %v3412 = vld [vmem:[%s2735] sm:$0xe]
    %v3413 = vld [vmem:[%s2735 + $0x8] sm:$0xe]
    %v3414 = vld [vmem:[%s2735 + $0x10] sm:$0xe]
    %v3415 = vld [vmem:[%s2735 + $0x18] sm:$0xe]
    %v3416 = vld [vmem:[%s2735 + $0x20] sm:$0xe]
    %v3417 = vld [vmem:[%s2735 + $0x28] sm:$0xe]
    %v3418 = vld [vmem:[%s2735 + $0x30] sm:$0xe]
    %v3419 = vld [vmem:[%s2735 + $0x38] sm:$0xe]
    %v3420 = vld [vmem:[%s2735 + $0x50] sm:$0xe]
    %v3421 = vld [vmem:[%s2735 + $0x58] sm:$0xe]
    %v3422 = vld [vmem:[%s2735 + $0x60] sm:$0xe]
    %v3423 = vld [vmem:[%s2735 + $0x68] sm:$0xe]
    %v3424 = vld [vmem:[%s2735 + $0x70] sm:$0xe]
    %v3425 = vld [vmem:[%s2735 + $0x78] sm:$0xe]
    %v3426 = vld [vmem:[%s2735 + $0x80] sm:$0xe]
    %v3427 = vld [vmem:[%s2735 + $0x88] sm:$0xe]
    %v3460 = vrot.slane %v3412, 5
    %v3461 = vrot.slane %v3460, 4
    %v3462 = vrot.slane %v2963, 5
    %v3463 = vsel %vm1494, %v3461, %v3462
    %v3464 = vrot.slane %v3413, 5
    %v3465 = vrot.slane %v3464, 4
    %v3466 = vrot.slane %v2965, 5
    %v3467 = vsel %vm1494, %v3465, %v3466
    %v3468 = vrot.slane %v3414, 5
    %v3469 = vrot.slane %v3468, 4
    %v3470 = vrot.slane %v2967, 5
    %v3471 = vsel %vm1494, %v3469, %v3470
    %v3472 = vrot.slane %v3415, 5
    %v3473 = vrot.slane %v3472, 4
    %v3474 = vrot.slane %v2969, 5
    %v3475 = vsel %vm1494, %v3473, %v3474
    %v3476 = vrot.slane %v3416, 5
    %v3477 = vrot.slane %v3476, 4
    %v3478 = vrot.slane %v2971, 5
    %v3479 = vsel %vm1494, %v3477, %v3478
    %v3480 = vrot.slane %v3417, 5
    %v3481 = vrot.slane %v3480, 4
    %v3482 = vrot.slane %v2973, 5
    %v3483 = vsel %vm1494, %v3481, %v3482
    %v3484 = vrot.slane %v3418, 5
    %v3485 = vrot.slane %v3484, 4
    %v3486 = vrot.slane %v2975, 5
    %v3487 = vsel %vm1494, %v3485, %v3486
    %v3488 = vrot.slane %v3419, 5
    %v3489 = vrot.slane %v3488, 4
    %v3490 = vrot.slane %v2977, 5
    %v3491 = vsel %vm1494, %v3489, %v3490
    %v3492 = vrot.slane %v3420, 5
    %v3493 = vrot.slane %v3492, 4
    %v3494 = vrot.slane %v2979, 5
    %v3495 = vsel %vm1494, %v3493, %v3494
    %v3496 = vrot.slane %v3421, 5
    %v3497 = vrot.slane %v3496, 4
    %v3498 = vrot.slane %v2981, 5
    %v3499 = vsel %vm1494, %v3497, %v3498
    %v3500 = vrot.slane %v3422, 5
    %v3501 = vrot.slane %v3500, 4
    %v3502 = vrot.slane %v2983, 5
    %v3503 = vsel %vm1494, %v3501, %v3502
    %v3504 = vrot.slane %v3423, 5
    %v3505 = vrot.slane %v3504, 4
    %v3506 = vrot.slane %v2985, 5
    %v3507 = vsel %vm1494, %v3505, %v3506
    %v3508 = vrot.slane %v3424, 5
    %v3509 = vrot.slane %v3508, 4
    %v3510 = vrot.slane %v2987, 5
    %v3511 = vsel %vm1494, %v3509, %v3510
    %v3512 = vrot.slane %v3425, 5
    %v3513 = vrot.slane %v3512, 4
    %v3514 = vrot.slane %v2989, 5
    %v3515 = vsel %vm1494, %v3513, %v3514
    %v3516 = vrot.slane %v3426, 5
    %v3517 = vrot.slane %v3516, 4
    %v3518 = vrot.slane %v2991, 5
    %v3519 = vsel %vm1494, %v3517, %v3518
    %v3520 = vrot.slane %v3427, 5
    %v3521 = vrot.slane %v3520, 4
    %v3522 = vrot.slane %v2993, 5
    %v3523 = vsel %vm1494, %v3521, %v3522
    %s3524 = scalar_lea.vmem %s4, 256
    %v3525 = vld [vmem:[%s3524] sm:$0xf]
    %v3526 = vld [vmem:[%s3524 + $0x4] sm:$0xf]
    %v3527 = vld [vmem:[%s3524 + $0x8] sm:$0xf]
    %v3528 = vld [vmem:[%s3524 + $0xc] sm:$0xf]
    %v3529 = vld [vmem:[%s3524 + $0x10] sm:$0xf]
    %v3530 = vld [vmem:[%s3524 + $0x14] sm:$0xf]
    %v3531 = vld [vmem:[%s3524 + $0x18] sm:$0xf]
    %v3532 = vld [vmem:[%s3524 + $0x1c] sm:$0xf]
    %v3533 = vunpack.c.l.b16 %v3463
    %v3534 = vunpack.c.l.b16 %v3467
    %v3535 = vunpack.c.l.b16 %v3471
    %v3536 = vunpack.c.l.b16 %v3475
    %v3537 = vunpack.c.l.b16 %v3479
    %v3538 = vunpack.c.l.b16 %v3483
    %v3539 = vunpack.c.l.b16 %v3487
    %v3540 = vunpack.c.l.b16 %v3491
    %v3541 = vunpack.c.l.b16 %v3495
    %v3542 = vunpack.c.l.b16 %v3499
    %v3543 = vunpack.c.l.b16 %v3503
    %v3544 = vunpack.c.l.b16 %v3507
    %v3545 = vunpack.c.l.b16 %v3511
    %v3546 = vunpack.c.l.b16 %v3515
    %v3547 = vunpack.c.l.b16 %v3519
    %v3548 = vunpack.c.l.b16 %v3523
    %v3549 = vpack.c.b16 %v3534, %v3533
    %v3550 = vpack.c.b16 %v3536, %v3535
    %v3551 = vpack.c.b16 %v3538, %v3537
    %v3552 = vpack.c.b16 %v3540, %v3539
    %v3553 = vpack.c.b16 %v3542, %v3541
    %v3554 = vpack.c.b16 %v3544, %v3543
    %v3555 = vpack.c.b16 %v3546, %v3545
    %v3556 = vpack.c.b16 %v3548, %v3547
    %v3565 = vunpack.c.l.b16 %v3525
    %v3566 = vunpack.c.l.b16 %v3526
    %v3567 = vunpack.c.l.b16 %v3527
    %v3568 = vunpack.c.l.b16 %v3528
    %v3569 = vunpack.c.l.b16 %v3529
    %v3570 = vunpack.c.l.b16 %v3530
    %v3571 = vunpack.c.l.b16 %v3531
    %v3572 = vunpack.c.l.b16 %v3532
    %v3573 = vpack.c.b16 %v3566, %v3565
    %v3574 = vpack.c.b16 %v3568, %v3567
    %v3575 = vpack.c.b16 %v3570, %v3569
    %v3576 = vpack.c.b16 %v3572, %v3571
    %v3582 = vsel %vm134, %v3549, 0
    %v3585 = vsel %vm134, %v3550, 0
    %v3588 = vsel %vm134, %v3551, 0
    %v3591 = vsel %vm134, %v3552, 0
    %v3594 = vsel %vm134, %v3553, 0
    %v3597 = vsel %vm134, %v3554, 0
    %v3600 = vsel %vm134, %v3555, 0
    %v3603 = vsel %vm134, %v3556, 0
    %3605 = vmatprep.subr.bf16.mxu0 0
    %3606 = vmatpush1.bf16.msra.mxu0 %v3573
    %3607 = vmatprep.subr.bf16.mxu0 0
    %3608 = vmatpush1.bf16.msra.mxu0 %v3574
    %3609 = vmatprep.subr.bf16.mxu0 0
    %3610 = vmatpush1.bf16.msra.mxu0 %v3575
    %3611 = vmatprep.subr.bf16.mxu0 0
    %3612 = vmatpush1.bf16.msra.mxu0 %v3576
    %3613 = vmatprep.subr.bf16.mxu0 0
    %3614 = vmatpush1.bf16.msra.mxu0 0
    %3615 = vmatprep.subr.bf16.mxu0 0
    %3616 = vmatpush1.bf16.msra.mxu0 0
    %3617 = vmatprep.subr.bf16.mxu0 0
    %3618 = vmatpush1.bf16.msra.mxu0 0
    %3619 = vmatprep.subr.bf16.mxu0 0
    %3620 = vmatpush1.bf16.msra.mxu0 0
    %3621 = vmatprep.subr.bf16.mxu0 0
    %3622 = vmatpush1.bf16.msra.mxu0 0
    %3623 = vmatprep.subr.bf16.mxu0 0
    %3624 = vmatpush1.bf16.msra.mxu0 0
    %3625 = vmatprep.subr.bf16.mxu0 0
    %3626 = vmatpush1.bf16.msra.mxu0 0
    %3627 = vmatprep.subr.bf16.mxu0 0
    %3628 = vmatpush1.bf16.msra.mxu0 0
    %3629 = vmatprep.subr.bf16.mxu0 0
    %3630 = vmatpush1.bf16.msra.mxu0 0
    %3631 = vmatprep.subr.bf16.mxu0 0
    %3632 = vmatpush1.bf16.msra.mxu0 0
    %3633 = vmatprep.subr.bf16.mxu0 0
    %3634 = vmatpush1.bf16.msra.mxu0 0
    %3635 = vmatprep.subr.bf16.mxu0 0
    %3636 = vmatpush1.bf16.msra.mxu0 0
    %3637 = vmatprep.mubr.bf16.mxu0 0
    %3638 = vmatmul.mubr.bf16.gmra.mrb[0].mxu0 %v3582
    %v3639 = vpop.f32.mrb[0].mxu0
    %v3640 = vadd.f32 0.0, %v3639
    %v3641 = vpop.f32.mrb[0].mxu0
    %v3642 = vpop.f32.mrb[0].mxu0
    %v3643 = vadd.f32 0.0, %v3642
    %v3644 = vpop.f32.mrb[0].mxu0
    %3645 = vmatprep.mubr.bf16.mxu0 0
    %3646 = vmatmul.mubr.bf16.gmra.mrb[0].mxu0 %v3585
    %v3647 = vpop.f32.mrb[0].mxu0
    %v3648 = vadd.f32 0.0, %v3647
    %v3649 = vpop.f32.mrb[0].mxu0
    %v3650 = vpop.f32.mrb[0].mxu0
    %v3651 = vadd.f32 0.0, %v3650
    %v3652 = vpop.f32.mrb[0].mxu0
    %3653 = vmatprep.mubr.bf16.mxu0 0
    %3654 = vmatmul.mubr.bf16.gmra.mrb[0].mxu0 %v3588
    %v3655 = vpop.f32.mrb[0].mxu0
    %v3656 = vadd.f32 0.0, %v3655
    %v3657 = vpop.f32.mrb[0].mxu0
    %v3658 = vpop.f32.mrb[0].mxu0
    %v3659 = vadd.f32 0.0, %v3658
    %v3660 = vpop.f32.mrb[0].mxu0
    %3661 = vmatprep.mubr.bf16.mxu0 0
    %3662 = vmatmul.mubr.bf16.gmra.mrb[0].mxu0 %v3591
    %v3663 = vpop.f32.mrb[0].mxu0
    %v3664 = vadd.f32 0.0, %v3663
    %v3665 = vpop.f32.mrb[0].mxu0
    %v3666 = vpop.f32.mrb[0].mxu0
    %v3667 = vadd.f32 0.0, %v3666
    %v3668 = vpop.f32.mrb[0].mxu0
    %3669 = vmatprep.mubr.bf16.mxu0 0
    %3670 = vmatmul.mubr.bf16.gmra.mrb[0].mxu0 %v3594
    %v3671 = vpop.f32.mrb[0].mxu0
    %v3672 = vadd.f32 0.0, %v3671
    %v3673 = vpop.f32.mrb[0].mxu0
    %v3674 = vpop.f32.mrb[0].mxu0
    %v3675 = vadd.f32 0.0, %v3674
    %v3676 = vpop.f32.mrb[0].mxu0
    %3677 = vmatprep.mubr.bf16.mxu0 0
    %3678 = vmatmul.mubr.bf16.gmra.mrb[0].mxu0 %v3597
    %v3679 = vpop.f32.mrb[0].mxu0
    %v3680 = vadd.f32 0.0, %v3679
    %v3681 = vpop.f32.mrb[0].mxu0
    %v3682 = vpop.f32.mrb[0].mxu0
    %v3683 = vadd.f32 0.0, %v3682
    %v3684 = vpop.f32.mrb[0].mxu0
    %3685 = vmatprep.mubr.bf16.mxu0 0
    %3686 = vmatmul.mubr.bf16.gmra.mrb[0].mxu0 %v3600
    %v3687 = vpop.f32.mrb[0].mxu0
    %v3688 = vadd.f32 0.0, %v3687
    %v3689 = vpop.f32.mrb[0].mxu0
    %v3690 = vpop.f32.mrb[0].mxu0
    %v3691 = vadd.f32 0.0, %v3690
    %v3692 = vpop.f32.mrb[0].mxu0
    %3693 = vmatprep.mubr.bf16.mxu0 0
    %3694 = vmatmul.mubr.bf16.gmra.mrb[0].mxu0 %v3603
    %v3695 = vpop.f32.mrb[0].mxu0
    %v3696 = vadd.f32 0.0, %v3695
    %v3697 = vpop.f32.mrb[0].mxu0
    %v3698 = vpop.f32.mrb[0].mxu0
    %v3699 = vadd.f32 0.0, %v3698
    %v3700 = vpop.f32.mrb[0].mxu0
    %3701 = vdwg.mxu0
    %v3702 = vadd.f32 %v3396, %v3640
    %v3703 = vadd.f32 %v3397, %v3643
    %v3704 = vadd.f32 %v3398, %v3648
    %v3705 = vadd.f32 %v3399, %v3651
    %v3706 = vadd.f32 %v3400, %v3656
    %v3707 = vadd.f32 %v3401, %v3659
    %v3708 = vadd.f32 %v3402, %v3664
    %v3709 = vadd.f32 %v3403, %v3667
    %v3710 = vadd.f32 %v3404, %v3672
    %v3711 = vadd.f32 %v3405, %v3675
    %v3712 = vadd.f32 %v3406, %v3680
    %v3713 = vadd.f32 %v3407, %v3683
    %v3714 = vadd.f32 %v3408, %v3688
    %v3715 = vadd.f32 %v3409, %v3691
    %v3716 = vadd.f32 %v3410, %v3696
    %v3717 = vadd.f32 %v3411, %v3699
    %v3718 = vld [vmem:[%s5] sm:$0x1]
    %v3719 = vld [vmem:[%s6] sm:$0x1]
    %v3720 = vsel %vm134, %v3702, 0.0
    %v3721 = vsel %vm134, %v3703, 0.0
    %v3722 = vadd.f32 %v3720, %v3721
    %v3723 = vsel %vm134, %v3704, 0.0
    %v3724 = vadd.f32 %v3722, %v3723
    %v3725 = vsel %vm134, %v3705, 0.0
    %v3726 = vadd.f32 %v3724, %v3725
    %v3727 = vsel %vm134, %v3706, 0.0
    %v3728 = vadd.f32 %v3726, %v3727
    %v3729 = vsel %vm134, %v3707, 0.0
    %v3730 = vadd.f32 %v3728, %v3729
    %v3731 = vsel %vm134, %v3708, 0.0
    %v3732 = vadd.f32 %v3730, %v3731
    %v3733 = vsel %vm134, %v3709, 0.0
    %v3734 = vadd.f32 %v3732, %v3733
    %v3735 = vsel %vm134, %v3710, 0.0
    %v3736 = vadd.f32 %v3734, %v3735
    %v3737 = vsel %vm134, %v3711, 0.0
    %v3738 = vadd.f32 %v3736, %v3737
    %v3739 = vsel %vm134, %v3712, 0.0
    %v3740 = vadd.f32 %v3738, %v3739
    %v3741 = vsel %vm134, %v3713, 0.0
    %v3742 = vadd.f32 %v3740, %v3741
    %v3743 = vsel %vm134, %v3714, 0.0
    %v3744 = vadd.f32 %v3742, %v3743
    %v3745 = vsel %vm134, %v3715, 0.0
    %v3746 = vadd.f32 %v3744, %v3745
    %v3747 = vsel %vm134, %v3716, 0.0
    %v3748 = vadd.f32 %v3746, %v3747
    %v3749 = vsel %vm134, %v3717, 0.0
    %v3750 = vadd.f32 %v3748, %v3749
    %v3751 = vrot.slane %v3750, 4
    %v3752 = vadd.f32 %v3750, %v3751
    %v3753 = vrot.slane %v3752, 2
    %v3754 = vadd.f32 %v3752, %v3753
    %v3755 = vrot.slane %v3754, 1
    %v3756 = vadd.f32 %v3754, %v3755
    %v3757 = vmul.f32 %v3756, %v295
    %v3758 = vsub.f32 %v3702, %v3757
    %v3759 = vsub.f32 %v3703, %v3757
    %v3760 = vsub.f32 %v3704, %v3757
    %v3761 = vsub.f32 %v3705, %v3757
    %v3762 = vsub.f32 %v3706, %v3757
    %v3763 = vsub.f32 %v3707, %v3757
    %v3764 = vsub.f32 %v3708, %v3757
    %v3765 = vsub.f32 %v3709, %v3757
    %v3766 = vsub.f32 %v3710, %v3757
    %v3767 = vsub.f32 %v3711, %v3757
    %v3768 = vsub.f32 %v3712, %v3757
    %v3769 = vsub.f32 %v3713, %v3757
    %v3770 = vsub.f32 %v3714, %v3757
    %v3771 = vsub.f32 %v3715, %v3757
    %v3772 = vsub.f32 %v3716, %v3757
    %v3773 = vsub.f32 %v3717, %v3757
    %v3774 = vmul.f32 %v3758, %v3758
    %v3775 = vmul.f32 %v3759, %v3759
    %v3776 = vmul.f32 %v3760, %v3760
    %v3777 = vmul.f32 %v3761, %v3761
    %v3778 = vmul.f32 %v3762, %v3762
    %v3779 = vmul.f32 %v3763, %v3763
    %v3780 = vmul.f32 %v3764, %v3764
    %v3781 = vmul.f32 %v3765, %v3765
    %v3782 = vmul.f32 %v3766, %v3766
    %v3783 = vmul.f32 %v3767, %v3767
    %v3784 = vmul.f32 %v3768, %v3768
    %v3785 = vmul.f32 %v3769, %v3769
    %v3786 = vmul.f32 %v3770, %v3770
    %v3787 = vmul.f32 %v3771, %v3771
    %v3788 = vmul.f32 %v3772, %v3772
    %v3789 = vmul.f32 %v3773, %v3773
    %v3790 = vsel %vm134, %v3774, 0.0
    %v3791 = vsel %vm134, %v3775, 0.0
    %v3792 = vadd.f32 %v3790, %v3791
    %v3793 = vsel %vm134, %v3776, 0.0
    %v3794 = vadd.f32 %v3792, %v3793
    %v3795 = vsel %vm134, %v3777, 0.0
    %v3796 = vadd.f32 %v3794, %v3795
    %v3797 = vsel %vm134, %v3778, 0.0
    %v3798 = vadd.f32 %v3796, %v3797
    %v3799 = vsel %vm134, %v3779, 0.0
    %v3800 = vadd.f32 %v3798, %v3799
    %v3801 = vsel %vm134, %v3780, 0.0
    %v3802 = vadd.f32 %v3800, %v3801
    %v3803 = vsel %vm134, %v3781, 0.0
    %v3804 = vadd.f32 %v3802, %v3803
    %v3805 = vsel %vm134, %v3782, 0.0
    %v3806 = vadd.f32 %v3804, %v3805
    %v3807 = vsel %vm134, %v3783, 0.0
    %v3808 = vadd.f32 %v3806, %v3807
    %v3809 = vsel %vm134, %v3784, 0.0
    %v3810 = vadd.f32 %v3808, %v3809
    %v3811 = vsel %vm134, %v3785, 0.0
    %v3812 = vadd.f32 %v3810, %v3811
    %v3813 = vsel %vm134, %v3786, 0.0
    %v3814 = vadd.f32 %v3812, %v3813
    %v3815 = vsel %vm134, %v3787, 0.0
    %v3816 = vadd.f32 %v3814, %v3815
    %v3817 = vsel %vm134, %v3788, 0.0
    %v3818 = vadd.f32 %v3816, %v3817
    %v3819 = vsel %vm134, %v3789, 0.0
    %v3820 = vadd.f32 %v3818, %v3819
    %v3821 = vrot.slane %v3820, 4
    %v3822 = vadd.f32 %v3820, %v3821
    %v3823 = vrot.slane %v3822, 2
    %v3824 = vadd.f32 %v3822, %v3823
    %v3825 = vrot.slane %v3824, 1
    %v3826 = vadd.f32 %v3824, %v3825
    %v3827 = vmul.f32 %v3826, %v295
    %v3828 = vadd.f32 %v3827, 1e-05
    %v3829 = vrsqrt.pop %v3828
    %v3830 = vmul.f32 %v3758, %v3829
    %v3831 = vmul.f32 %v3759, %v3829
    %v3832 = vmul.f32 %v3760, %v3829
    %v3833 = vmul.f32 %v3761, %v3829
    %v3834 = vmul.f32 %v3762, %v3829
    %v3835 = vmul.f32 %v3763, %v3829
    %v3836 = vmul.f32 %v3764, %v3829
    %v3837 = vmul.f32 %v3765, %v3829
    %v3838 = vmul.f32 %v3766, %v3829
    %v3839 = vmul.f32 %v3767, %v3829
    %v3840 = vmul.f32 %v3768, %v3829
    %v3841 = vmul.f32 %v3769, %v3829
    %v3842 = vmul.f32 %v3770, %v3829
    %v3843 = vmul.f32 %v3771, %v3829
    %v3844 = vmul.f32 %v3772, %v3829
    %v3845 = vmul.f32 %v3773, %v3829
    %v3847 = vlaneseq
    %v3848 = vshrl.u32 %v3847, 7
    %v3849 = vsub.s32 0, %v3848
    %v3850 = vrot.slane %v3718, %v3849
    %v3852 = vmul.f32 %v3830, %v3850
    %v3853 = vmul.f32 %v3831, %v3850
    %v3854 = vmul.f32 %v3832, %v3850
    %v3855 = vmul.f32 %v3833, %v3850
    %v3856 = vmul.f32 %v3834, %v3850
    %v3857 = vmul.f32 %v3835, %v3850
    %v3858 = vmul.f32 %v3836, %v3850
    %v3859 = vmul.f32 %v3837, %v3850
    %v3860 = vmul.f32 %v3838, %v3850
    %v3861 = vmul.f32 %v3839, %v3850
    %v3862 = vmul.f32 %v3840, %v3850
    %v3863 = vmul.f32 %v3841, %v3850
    %v3864 = vmul.f32 %v3842, %v3850
    %v3865 = vmul.f32 %v3843, %v3850
    %v3866 = vmul.f32 %v3844, %v3850
    %v3867 = vmul.f32 %v3845, %v3850
    %v3869 = vlaneseq
    %v3870 = vshrl.u32 %v3869, 7
    %v3871 = vsub.s32 0, %v3870
    %v3872 = vrot.slane %v3719, %v3871
    %v3874 = vadd.f32 %v3852, %v3872
    %v3875 = vadd.f32 %v3853, %v3872
    %v3876 = vadd.f32 %v3854, %v3872
    %v3877 = vadd.f32 %v3855, %v3872
    %v3878 = vadd.f32 %v3856, %v3872
    %v3879 = vadd.f32 %v3857, %v3872
    %v3880 = vadd.f32 %v3858, %v3872
    %v3881 = vadd.f32 %v3859, %v3872
    %v3882 = vadd.f32 %v3860, %v3872
    %v3883 = vadd.f32 %v3861, %v3872
    %v3884 = vadd.f32 %v3862, %v3872
    %v3885 = vadd.f32 %v3863, %v3872
    %v3886 = vadd.f32 %v3864, %v3872
    %v3887 = vadd.f32 %v3865, %v3872
    %v3888 = vadd.f32 %v3866, %v3872
    %v3889 = vadd.f32 %v3867, %v3872
    %v3890 = vmax.f32 %v3874, 0.0
    %v3891 = vmax.f32 %v3875, 0.0
    %v3892 = vmax.f32 %v3876, 0.0
    %v3893 = vmax.f32 %v3877, 0.0
    %v3894 = vmax.f32 %v3878, 0.0
    %v3895 = vmax.f32 %v3879, 0.0
    %v3896 = vmax.f32 %v3880, 0.0
    %v3897 = vmax.f32 %v3881, 0.0
    %v3898 = vmax.f32 %v3882, 0.0
    %v3899 = vmax.f32 %v3883, 0.0
    %v3900 = vmax.f32 %v3884, 0.0
    %v3901 = vmax.f32 %v3885, 0.0
    %v3902 = vmax.f32 %v3886, 0.0
    %v3903 = vmax.f32 %v3887, 0.0
    %v3904 = vmax.f32 %v3888, 0.0
    %v3905 = vmax.f32 %v3889, 0.0
    %v3906 = vpack.c.bf16 %v3891, %v3890
    %v3907 = vpack.c.bf16 %v3893, %v3892
    %v3908 = vpack.c.bf16 %v3895, %v3894
    %v3909 = vpack.c.bf16 %v3897, %v3896
    %v3910 = vpack.c.bf16 %v3899, %v3898
    %v3911 = vpack.c.bf16 %v3901, %v3900
    %v3912 = vpack.c.bf16 %v3903, %v3902
    %v3913 = vpack.c.bf16 %v3905, %v3904
    %v3914 = vld [vmem:[%s7] sm:$0xf]
    %v3915 = vld [vmem:[%s7 + $0x4] sm:$0xf]
    %v3916 = vld [vmem:[%s7 + $0x8] sm:$0xf]
    %v3917 = vld [vmem:[%s7 + $0xc] sm:$0xf]
    %v3918 = vld [vmem:[%s7 + $0x10] sm:$0xf]
    %v3919 = vld [vmem:[%s7 + $0x14] sm:$0xf]
    %v3920 = vld [vmem:[%s7 + $0x18] sm:$0xf]
    %v3921 = vld [vmem:[%s7 + $0x1c] sm:$0xf]
    %v3930 = vunpack.c.l.b16 %v3914
    %v3931 = vunpack.c.l.b16 %v3915
    %v3932 = vunpack.c.l.b16 %v3916
    %v3933 = vunpack.c.l.b16 %v3917
    %v3934 = vunpack.c.l.b16 %v3918
    %v3935 = vunpack.c.l.b16 %v3919
    %v3936 = vunpack.c.l.b16 %v3920
    %v3937 = vunpack.c.l.b16 %v3921
    %v3938 = vpack.c.b16 %v3931, %v3930
    %v3939 = vpack.c.b16 %v3933, %v3932
    %v3940 = vpack.c.b16 %v3935, %v3934
    %v3941 = vpack.c.b16 %v3937, %v3936
    %v3947 = vsel %vm134, %v3906, 0
    %v3950 = vsel %vm134, %v3907, 0
    %v3953 = vsel %vm134, %v3908, 0
    %v3956 = vsel %vm134, %v3909, 0
    %v3959 = vsel %vm134, %v3910, 0
    %v3962 = vsel %vm134, %v3911, 0
    %v3965 = vsel %vm134, %v3912, 0
    %v3968 = vsel %vm134, %v3913, 0
    %3970 = vmatprep.subr.bf16.mxu0 0
    %3971 = vmatpush1.bf16.msra.mxu0 %v3938
    %3972 = vmatprep.subr.bf16.mxu0 0
    %3973 = vmatpush1.bf16.msra.mxu0 %v3939
    %3974 = vmatprep.subr.bf16.mxu0 0
    %3975 = vmatpush1.bf16.msra.mxu0 %v3940
    %3976 = vmatprep.subr.bf16.mxu0 0
    %3977 = vmatpush1.bf16.msra.mxu0 %v3941
    %3978 = vmatprep.subr.bf16.mxu0 0
    %3979 = vmatpush1.bf16.msra.mxu0 0
    %3980 = vmatprep.subr.bf16.mxu0 0
    %3981 = vmatpush1.bf16.msra.mxu0 0
    %3982 = vmatprep.subr.bf16.mxu0 0
    %3983 = vmatpush1.bf16.msra.mxu0 0
    %3984 = vmatprep.subr.bf16.mxu0 0
    %3985 = vmatpush1.bf16.msra.mxu0 0
    %3986 = vmatprep.subr.bf16.mxu0 0
    %3987 = vmatpush1.bf16.msra.mxu0 0
    %3988 = vmatprep.subr.bf16.mxu0 0
    %3989 = vmatpush1.bf16.msra.mxu0 0
    %3990 = vmatprep.subr.bf16.mxu0 0
    %3991 = vmatpush1.bf16.msra.mxu0 0
    %3992 = vmatprep.subr.bf16.mxu0 0
    %3993 = vmatpush1.bf16.msra.mxu0 0
    %3994 = vmatprep.subr.bf16.mxu0 0
    %3995 = vmatpush1.bf16.msra.mxu0 0
    %3996 = vmatprep.subr.bf16.mxu0 0
    %3997 = vmatpush1.bf16.msra.mxu0 0
    %3998 = vmatprep.subr.bf16.mxu0 0
    %3999 = vmatpush1.bf16.msra.mxu0 0
    %4000 = vmatprep.subr.bf16.mxu0 0
    %4001 = vmatpush1.bf16.msra.mxu0 0
    %4002 = vmatprep.mubr.bf16.mxu0 0
    %4003 = vmatmul.mubr.bf16.gmra.mrb[0].mxu0 %v3947
    %v4004 = vpop.f32.mrb[0].mxu0
    %v4005 = vadd.f32 0.0, %v4004
    %v4006 = vpop.f32.mrb[0].mxu0
    %v4007 = vpop.f32.mrb[0].mxu0
    %v4008 = vadd.f32 0.0, %v4007
    %v4009 = vpop.f32.mrb[0].mxu0
    %4010 = vmatprep.mubr.bf16.mxu0 0
    %4011 = vmatmul.mubr.bf16.gmra.mrb[0].mxu0 %v3950
    %v4012 = vpop.f32.mrb[0].mxu0
    %v4013 = vadd.f32 0.0, %v4012
    %v4014 = vpop.f32.mrb[0].mxu0
    %v4015 = vpop.f32.mrb[0].mxu0
    %v4016 = vadd.f32 0.0, %v4015
    %v4017 = vpop.f32.mrb[0].mxu0
    %4018 = vmatprep.mubr.bf16.mxu0 0
    %4019 = vmatmul.mubr.bf16.gmra.mrb[0].mxu0 %v3953
    %v4020 = vpop.f32.mrb[0].mxu0
    %v4021 = vadd.f32 0.0, %v4020
    %v4022 = vpop.f32.mrb[0].mxu0
    %v4023 = vpop.f32.mrb[0].mxu0
    %v4024 = vadd.f32 0.0, %v4023
    %v4025 = vpop.f32.mrb[0].mxu0
    %4026 = vmatprep.mubr.bf16.mxu0 0
    %4027 = vmatmul.mubr.bf16.gmra.mrb[0].mxu0 %v3956
    %v4028 = vpop.f32.mrb[0].mxu0
    %v4029 = vadd.f32 0.0, %v4028
    %v4030 = vpop.f32.mrb[0].mxu0
    %v4031 = vpop.f32.mrb[0].mxu0
    %v4032 = vadd.f32 0.0, %v4031
    %v4033 = vpop.f32.mrb[0].mxu0
    %4034 = vmatprep.mubr.bf16.mxu0 0
    %4035 = vmatmul.mubr.bf16.gmra.mrb[0].mxu0 %v3959
    %v4036 = vpop.f32.mrb[0].mxu0
    %v4037 = vadd.f32 0.0, %v4036
    %v4038 = vpop.f32.mrb[0].mxu0
    %v4039 = vpop.f32.mrb[0].mxu0
    %v4040 = vadd.f32 0.0, %v4039
    %v4041 = vpop.f32.mrb[0].mxu0
    %4042 = vmatprep.mubr.bf16.mxu0 0
    %4043 = vmatmul.mubr.bf16.gmra.mrb[0].mxu0 %v3962
    %v4044 = vpop.f32.mrb[0].mxu0
    %v4045 = vadd.f32 0.0, %v4044
    %v4046 = vpop.f32.mrb[0].mxu0
    %v4047 = vpop.f32.mrb[0].mxu0
    %v4048 = vadd.f32 0.0, %v4047
    %v4049 = vpop.f32.mrb[0].mxu0
    %4050 = vmatprep.mubr.bf16.mxu0 0
    %4051 = vmatmul.mubr.bf16.gmra.mrb[0].mxu0 %v3965
    %v4052 = vpop.f32.mrb[0].mxu0
    %v4053 = vadd.f32 0.0, %v4052
    %v4054 = vpop.f32.mrb[0].mxu0
    %v4055 = vpop.f32.mrb[0].mxu0
    %v4056 = vadd.f32 0.0, %v4055
    %v4057 = vpop.f32.mrb[0].mxu0
    %4058 = vmatprep.mubr.bf16.mxu0 0
    %4059 = vmatmul.mubr.bf16.gmra.mrb[0].mxu0 %v3968
    %v4060 = vpop.f32.mrb[0].mxu0
    %v4061 = vadd.f32 0.0, %v4060
    %v4062 = vpop.f32.mrb[0].mxu0
    %v4063 = vpop.f32.mrb[0].mxu0
    %v4064 = vadd.f32 0.0, %v4063
    %v4065 = vpop.f32.mrb[0].mxu0
    %4066 = vdwg.mxu0
    %v4067 = vld [vmem:[%s8] sm:$0x1]
    %v4068 = vld [vmem:[%s9] sm:$0x1]
    %v4069 = vadd.f32 %v4005, %v4008
    %v4070 = vadd.f32 %v4069, %v4013
    %v4071 = vadd.f32 %v4070, %v4016
    %v4072 = vadd.f32 %v4071, %v4021
    %v4073 = vadd.f32 %v4072, %v4024
    %v4074 = vadd.f32 %v4073, %v4029
    %v4075 = vadd.f32 %v4074, %v4032
    %v4076 = vadd.f32 %v4075, %v4037
    %v4077 = vadd.f32 %v4076, %v4040
    %v4078 = vadd.f32 %v4077, %v4045
    %v4079 = vadd.f32 %v4078, %v4048
    %v4080 = vadd.f32 %v4079, %v4053
    %v4081 = vadd.f32 %v4080, %v4056
    %v4082 = vadd.f32 %v4081, %v4061
    %v4083 = vadd.f32 %v4082, %v4064
    %v4084 = vrot.slane %v4083, 4
    %v4085 = vadd.f32 %v4083, %v4084
    %v4086 = vrot.slane %v4085, 2
    %v4087 = vadd.f32 %v4085, %v4086
    %v4088 = vrot.slane %v4087, 1
    %v4089 = vadd.f32 %v4087, %v4088
    %v4090 = vmul.f32 %v4089, %v295
    %v4091 = vsub.f32 %v4005, %v4090
    %v4092 = vsub.f32 %v4008, %v4090
    %v4093 = vsub.f32 %v4013, %v4090
    %v4094 = vsub.f32 %v4016, %v4090
    %v4095 = vsub.f32 %v4021, %v4090
    %v4096 = vsub.f32 %v4024, %v4090
    %v4097 = vsub.f32 %v4029, %v4090
    %v4098 = vsub.f32 %v4032, %v4090
    %v4099 = vsub.f32 %v4037, %v4090
    %v4100 = vsub.f32 %v4040, %v4090
    %v4101 = vsub.f32 %v4045, %v4090
    %v4102 = vsub.f32 %v4048, %v4090
    %v4103 = vsub.f32 %v4053, %v4090
    %v4104 = vsub.f32 %v4056, %v4090
    %v4105 = vsub.f32 %v4061, %v4090
    %v4106 = vsub.f32 %v4064, %v4090
    %v4107 = vmul.f32 %v4091, %v4091
    %v4108 = vmul.f32 %v4092, %v4092
    %v4109 = vmul.f32 %v4093, %v4093
    %v4110 = vmul.f32 %v4094, %v4094
    %v4111 = vmul.f32 %v4095, %v4095
    %v4112 = vmul.f32 %v4096, %v4096
    %v4113 = vmul.f32 %v4097, %v4097
    %v4114 = vmul.f32 %v4098, %v4098
    %v4115 = vmul.f32 %v4099, %v4099
    %v4116 = vmul.f32 %v4100, %v4100
    %v4117 = vmul.f32 %v4101, %v4101
    %v4118 = vmul.f32 %v4102, %v4102
    %v4119 = vmul.f32 %v4103, %v4103
    %v4120 = vmul.f32 %v4104, %v4104
    %v4121 = vmul.f32 %v4105, %v4105
    %v4122 = vmul.f32 %v4106, %v4106
    %v4123 = vadd.f32 %v4107, %v4108
    %v4124 = vadd.f32 %v4123, %v4109
    %v4125 = vadd.f32 %v4124, %v4110
    %v4126 = vadd.f32 %v4125, %v4111
    %v4127 = vadd.f32 %v4126, %v4112
    %v4128 = vadd.f32 %v4127, %v4113
    %v4129 = vadd.f32 %v4128, %v4114
    %v4130 = vadd.f32 %v4129, %v4115
    %v4131 = vadd.f32 %v4130, %v4116
    %v4132 = vadd.f32 %v4131, %v4117
    %v4133 = vadd.f32 %v4132, %v4118
    %v4134 = vadd.f32 %v4133, %v4119
    %v4135 = vadd.f32 %v4134, %v4120
    %v4136 = vadd.f32 %v4135, %v4121
    %v4137 = vadd.f32 %v4136, %v4122
    %v4138 = vrot.slane %v4137, 4
    %v4139 = vadd.f32 %v4137, %v4138
    %v4140 = vrot.slane %v4139, 2
    %v4141 = vadd.f32 %v4139, %v4140
    %v4142 = vrot.slane %v4141, 1
    %v4143 = vadd.f32 %v4141, %v4142
    %v4144 = vmul.f32 %v4143, %v295
    %v4145 = vadd.f32 %v4144, 1e-05
    %v4146 = vrsqrt.pop %v4145
    %v4147 = vmul.f32 %v4091, %v4146
    %v4148 = vmul.f32 %v4092, %v4146
    %v4149 = vmul.f32 %v4093, %v4146
    %v4150 = vmul.f32 %v4094, %v4146
    %v4151 = vmul.f32 %v4095, %v4146
    %v4152 = vmul.f32 %v4096, %v4146
    %v4153 = vmul.f32 %v4097, %v4146
    %v4154 = vmul.f32 %v4098, %v4146
    %v4155 = vmul.f32 %v4099, %v4146
    %v4156 = vmul.f32 %v4100, %v4146
    %v4157 = vmul.f32 %v4101, %v4146
    %v4158 = vmul.f32 %v4102, %v4146
    %v4159 = vmul.f32 %v4103, %v4146
    %v4160 = vmul.f32 %v4104, %v4146
    %v4161 = vmul.f32 %v4105, %v4146
    %v4162 = vmul.f32 %v4106, %v4146
    %v4164 = vlaneseq
    %v4165 = vshrl.u32 %v4164, 7
    %v4166 = vsub.s32 0, %v4165
    %v4167 = vrot.slane %v4067, %v4166
    %v4169 = vmul.f32 %v4147, %v4167
    %v4170 = vmul.f32 %v4148, %v4167
    %v4171 = vmul.f32 %v4149, %v4167
    %v4172 = vmul.f32 %v4150, %v4167
    %v4173 = vmul.f32 %v4151, %v4167
    %v4174 = vmul.f32 %v4152, %v4167
    %v4175 = vmul.f32 %v4153, %v4167
    %v4176 = vmul.f32 %v4154, %v4167
    %v4177 = vmul.f32 %v4155, %v4167
    %v4178 = vmul.f32 %v4156, %v4167
    %v4179 = vmul.f32 %v4157, %v4167
    %v4180 = vmul.f32 %v4158, %v4167
    %v4181 = vmul.f32 %v4159, %v4167
    %v4182 = vmul.f32 %v4160, %v4167
    %v4183 = vmul.f32 %v4161, %v4167
    %v4184 = vmul.f32 %v4162, %v4167
    %v4186 = vlaneseq
    %v4187 = vshrl.u32 %v4186, 7
    %v4188 = vsub.s32 0, %v4187
    %v4189 = vrot.slane %v4068, %v4188
    %v4191 = vadd.f32 %v4169, %v4189
    %v4192 = vadd.f32 %v4170, %v4189
    %v4193 = vadd.f32 %v4171, %v4189
    %v4194 = vadd.f32 %v4172, %v4189
    %v4195 = vadd.f32 %v4173, %v4189
    %v4196 = vadd.f32 %v4174, %v4189
    %v4197 = vadd.f32 %v4175, %v4189
    %v4198 = vadd.f32 %v4176, %v4189
    %v4199 = vadd.f32 %v4177, %v4189
    %v4200 = vadd.f32 %v4178, %v4189
    %v4201 = vadd.f32 %v4179, %v4189
    %v4202 = vadd.f32 %v4180, %v4189
    %v4203 = vadd.f32 %v4181, %v4189
    %v4204 = vadd.f32 %v4182, %v4189
    %v4205 = vadd.f32 %v4183, %v4189
    %v4206 = vadd.f32 %v4184, %v4189
    %v4207 = vmax.f32 %v4191, 0.0
    %v4208 = vmax.f32 %v4192, 0.0
    %v4209 = vmax.f32 %v4193, 0.0
    %v4210 = vmax.f32 %v4194, 0.0
    %v4211 = vmax.f32 %v4195, 0.0
    %v4212 = vmax.f32 %v4196, 0.0
    %v4213 = vmax.f32 %v4197, 0.0
    %v4214 = vmax.f32 %v4198, 0.0
    %v4215 = vmax.f32 %v4199, 0.0
    %v4216 = vmax.f32 %v4200, 0.0
    %v4217 = vmax.f32 %v4201, 0.0
    %v4218 = vmax.f32 %v4202, 0.0
    %v4219 = vmax.f32 %v4203, 0.0
    %v4220 = vmax.f32 %v4204, 0.0
    %v4221 = vmax.f32 %v4205, 0.0
    %v4222 = vmax.f32 %v4206, 0.0
    %4223 = vst [vmem:[#allocation3] sm:$0xff] %v4207
    %4224 = vst [vmem:[#allocation3 + $0x8] sm:$0xff] %v4208
    %4225 = vst [vmem:[#allocation3 + $0x10] sm:$0xff] %v4209
    %4226 = vst [vmem:[#allocation3 + $0x18] sm:$0xff] %v4210
    %4227 = vst [vmem:[#allocation3 + $0x20] sm:$0xff] %v4211
    %4228 = vst [vmem:[#allocation3 + $0x28] sm:$0xff] %v4212
    %4229 = vst [vmem:[#allocation3 + $0x30] sm:$0xff] %v4213
    %4230 = vst [vmem:[#allocation3 + $0x38] sm:$0xff] %v4214
    %4231 = vst [vmem:[#allocation3 + $0x40] sm:$0xff] %v4215
    %4232 = vst [vmem:[#allocation3 + $0x48] sm:$0xff] %v4216
    %4233 = vst [vmem:[#allocation3 + $0x50] sm:$0xff] %v4217
    %4234 = vst [vmem:[#allocation3 + $0x58] sm:$0xff] %v4218
    %4235 = vst [vmem:[#allocation3 + $0x60] sm:$0xff] %v4219
    %4236 = vst [vmem:[#allocation3 + $0x68] sm:$0xff] %v4220
    %4237 = vst [vmem:[#allocation3 + $0x70] sm:$0xff] %v4221
    %4238 = vst [vmem:[#allocation3 + $0x78] sm:$0xff] %v4222
    %v4239 = vadd.f32 %v4207, %v4208
    %v4240 = vadd.f32 %v4239, %v4209
    %v4241 = vadd.f32 %v4240, %v4210
    %v4242 = vadd.f32 %v4241, %v4211
    %v4243 = vadd.f32 %v4242, %v4212
    %v4244 = vadd.f32 %v4243, %v4213
    %v4245 = vadd.f32 %v4244, %v4214
    %v4246 = vrot.slane %v4245, 4
    %v4247 = vadd.f32 %v4245, %v4246
    %v4248 = vrot.slane %v4247, 2
    %v4249 = vadd.f32 %v4247, %v4248
    %v4250 = vrot.slane %v4249, 1
    %v4251 = vadd.f32 %v4249, %v4250
    %v4252 = vrcp.pop 64.0
    %v4253 = vmul.f32 %v4251, %v4252
    %v4254 = vadd.f32 %v4215, %v4216
    %v4255 = vadd.f32 %v4254, %v4217
    %v4256 = vadd.f32 %v4255, %v4218
    %v4257 = vadd.f32 %v4256, %v4219
    %v4258 = vadd.f32 %v4257, %v4220
    %v4259 = vadd.f32 %v4258, %v4221
    %v4260 = vadd.f32 %v4259, %v4222
    %v4261 = vrot.slane %v4260, 4
    %v4262 = vadd.f32 %v4260, %v4261
    %v4263 = vrot.slane %v4262, 2
    %v4264 = vadd.f32 %v4262, %v4263
    %v4265 = vrot.slane %v4264, 1
    %v4266 = vadd.f32 %v4264, %v4265
    %v4267 = vmul.f32 %v4266, %v4252
    %vm4268 = vcmask 1040384
    %v4269 = vsel %vm4268, %v4253, %v4267
    %v4270 = vpack.c.bf16 %v4269, %v4269
    %v4271 = vld [vmem:[%s10] sm:$0xf]
    %v4272 = vld [vmem:[%s10 + $0x4] sm:$0xf]
    %v4273 = vld [vmem:[%s10 + $0x8] sm:$0xf]
    %v4274 = vld [vmem:[%s10 + $0xc] sm:$0xf]
    %v4275 = vld [vmem:[%s10 + $0x10] sm:$0xf]
    %v4276 = vld [vmem:[%s10 + $0x14] sm:$0xf]
    %v4277 = vld [vmem:[%s10 + $0x18] sm:$0xf]
    %v4278 = vld [vmem:[%s10 + $0x1c] sm:$0xf]
    %v4279 = vld [vmem:[%s10 + $0x20] sm:$0xf]
    %v4280 = vld [vmem:[%s10 + $0x24] sm:$0xf]
    %v4281 = vld [vmem:[%s10 + $0x28] sm:$0xf]
    %v4282 = vld [vmem:[%s10 + $0x2c] sm:$0xf]
    %v4283 = vld [vmem:[%s10 + $0x30] sm:$0xf]
    %v4284 = vld [vmem:[%s10 + $0x34] sm:$0xf]
    %v4285 = vld [vmem:[%s10 + $0x38] sm:$0xf]
    %v4286 = vld [vmem:[%s10 + $0x3c] sm:$0xf]
    %v4287 = vld [vmem:[%s11] sm:$0x1]
    %v4289 = vlaneseq
    %v4290 = vshrl.u32 %v4289, 7
    %v4291 = vsub.s32 0, %v4290
    %v4292 = vrot.slane %v4287, %v4291
    %v4310 = vunpack.c.l.b16 %v4271
    %v4311 = vunpack.c.l.b16 %v4272
    %v4312 = vunpack.c.l.b16 %v4273
    %v4313 = vunpack.c.l.b16 %v4274
    %v4314 = vunpack.c.l.b16 %v4275
    %v4315 = vunpack.c.l.b16 %v4276
    %v4316 = vunpack.c.l.b16 %v4277
    %v4317 = vunpack.c.l.b16 %v4278
    %v4318 = vunpack.c.l.b16 %v4279
    %v4319 = vunpack.c.l.b16 %v4280
    %v4320 = vunpack.c.l.b16 %v4281
    %v4321 = vunpack.c.l.b16 %v4282
    %v4322 = vunpack.c.l.b16 %v4283
    %v4323 = vunpack.c.l.b16 %v4284
    %v4324 = vunpack.c.l.b16 %v4285
    %v4325 = vunpack.c.l.b16 %v4286
    %v4326 = vpack.c.b16 %v4311, %v4310
    %v4327 = vpack.c.b16 %v4313, %v4312
    %v4328 = vpack.c.b16 %v4315, %v4314
    %v4329 = vpack.c.b16 %v4317, %v4316
    %v4330 = vpack.c.b16 %v4319, %v4318
    %v4331 = vpack.c.b16 %v4321, %v4320
    %v4332 = vpack.c.b16 %v4323, %v4322
    %v4333 = vpack.c.b16 %v4325, %v4324
    %4342 = vmatprep.subr.bf16.mxu0 0
    %4343 = vmatpush1.bf16.msra.mxu0 %v4326
    %4344 = vmatprep.subr.bf16.mxu0 0
    %4345 = vmatpush1.bf16.msra.mxu0 %v4327
    %4346 = vmatprep.subr.bf16.mxu0 0
    %4347 = vmatpush1.bf16.msra.mxu0 %v4328
    %4348 = vmatprep.subr.bf16.mxu0 0
    %4349 = vmatpush1.bf16.msra.mxu0 %v4329
    %4350 = vmatprep.subr.bf16.mxu0 0
    %4351 = vmatpush1.bf16.msra.mxu0 %v4330
    %4352 = vmatprep.subr.bf16.mxu0 0
    %4353 = vmatpush1.bf16.msra.mxu0 %v4331
    %4354 = vmatprep.subr.bf16.mxu0 0
    %4355 = vmatpush1.bf16.msra.mxu0 %v4332
    %4356 = vmatprep.subr.bf16.mxu0 0
    %4357 = vmatpush1.bf16.msra.mxu0 %v4333
    %4358 = vmatprep.subr.bf16.mxu0 0
    %4359 = vmatpush1.bf16.msra.mxu0 0
    %4360 = vmatprep.subr.bf16.mxu0 0
    %4361 = vmatpush1.bf16.msra.mxu0 0
    %4362 = vmatprep.subr.bf16.mxu0 0
    %4363 = vmatpush1.bf16.msra.mxu0 0
    %4364 = vmatprep.subr.bf16.mxu0 0
    %4365 = vmatpush1.bf16.msra.mxu0 0
    %4366 = vmatprep.subr.bf16.mxu0 0
    %4367 = vmatpush1.bf16.msra.mxu0 0
    %4368 = vmatprep.subr.bf16.mxu0 0
    %4369 = vmatpush1.bf16.msra.mxu0 0
    %4370 = vmatprep.subr.bf16.mxu0 0
    %4371 = vmatpush1.bf16.msra.mxu0 0
    %4372 = vmatprep.subr.bf16.mxu0 0
    %4373 = vmatpush1.bf16.msra.mxu0 0
    %4374 = vmatprep.mubr.bf16.mxu0 0
    %4375 = vmatmul.mubr.bf16.gmra.mrb[0].mxu0 %v4270
    %v4376 = vpop.f32.mrb[0].mxu0
    %v4377 = vadd.f32 %v4292, %v4376
    %v4378 = vpop.f32.mrb[0].mxu0
    %v4379 = vpop.f32.mrb[0].mxu0
    %v4380 = vpop.f32.mrb[0].mxu0
    %4381 = vdwg.mxu0
    %vm4382 = vcmask 812032
    %4383 = vst.msk [vmem:[#allocation5] sm:$0x3] %vm4382, %v4377
    // Predicated region
    $region50: #{simkd_forward.1} parent=1 // pred_check
      _
    $region51: #{simkd_forward.1} parent=1 // pred_check_branch
      %4385 = sbr.rel (0) target = $region53
    $region52: #{simkd_forward.1} parent=1 // pred_region
      %s4387 = ssub.s32 2048, 2048
      %4388 = vsyncadd [#allocation4], %s4387
      %s4389 = sshll.u32 [#allocation3], 4
      %s4390 = int_to_ptr.vmem [resolvable:$true] %s4389
      %4395 = dma.vmem_to_hbm [thread:$0]  %s4390, 2048, %s12, [#allocation4], 128, 128, 8
    $region53: #{simkd_forward.1} parent=1 // pred_fallthru
      _
    // Predicated region
    $region54: #{simkd_forward.1} parent=1 // pred_check
      _
    $region55: #{simkd_forward.1} parent=1 // pred_check_branch
      %4397 = sbr.rel (0) target = $region57
    $region56: #{simkd_forward.1} parent=1 // pred_region
      %s4399 = ssub.s32 32, 32
      %4400 = vsyncadd [#allocation6], %s4399
      %s4402 = sshll.u32 [#allocation5], 4
      %s4403 = int_to_ptr.vmem [resolvable:$true] %s4402
      %4405 = dma.vmem_to_hbm [thread:$0]  %s4403, 32, %s13, [#allocation6]
    $region57: #{simkd_forward.1} parent=1 // pred_fallthru
      _
    // Predicated region
    $region58: #{simkd_forward.1} parent=1 // pred_check
      _
    $region59: #{simkd_forward.1} parent=1 // pred_check_branch
      %4407 = sbr.rel (0) target = $region61
    $region60: #{simkd_forward.1} parent=1 // pred_region
      %4408 = dma.done [#allocation4], 2048
    $region61: #{simkd_forward.1} parent=1 // pred_fallthru
      _
    // Predicated region
    $region62: #{simkd_forward.1} parent=1 // pred_check
      _
    $region63: #{simkd_forward.1} parent=1 // pred_check_branch
      %4410 = sbr.rel (0) target = $region65
    $region64: #{simkd_forward.1} parent=1 // pred_region
      %4411 = dma.done [#allocation6], 32
    $region65: #{simkd_forward.1} parent=1 // pred_fallthru
      _
    %4412 = vsyncpa [#allocation4], 1
    %4413 = vsyncpa [#allocation6], 1

</llo_original>
